<compile_context>
chip_gen: v5e
topology: v5e:2x2
jax: 0.10.0
libtpu: 0.0.40
codegen_flags: <defaults>
</compile_context>

<pallas_src>
import functools

import jax
import jax.numpy as jnp
from jax.experimental import pallas as pl
from jax.experimental.pallas import tpu as pltpu

NUM_SPATIAL = 60
NUM_VIEW = 24
NUM_FEAT = 256
NUM_HIDDEN_RGB = NUM_FEAT // 2        # 128
NUM_RGB = 3
NUM_SIGMA = 1
NUM_OUT = NUM_RGB + NUM_SIGMA         # 4
SIGMA_COL = NUM_HIDDEN_RGB            # lane of the fused matmul that carries sigma
HID_AUG = 2 * NUM_HIDDEN_RGB          # 128 rgb-hidden lanes + sigma lane, padded to 256


def mlp_kernel(x_ref, d_ref,
               w0_ref, b0_ref,
               wcat_ref, wd_ref, bcat_ref,
               wout_ref, bout_ref,
               out_ref):
    f32 = jnp.float32
    cdt = w0_ref.dtype                      # MXU operand dtype (bf16 by default)

    x = x_ref[...].astype(cdt)
    d = d_ref[...].astype(cdt)

    # fc_0 -> ReLU (the trunk's single ReLU; fc_1..fc_7 are folded into w_cat).
    h0 = jnp.dot(x, w0_ref[...], preferred_element_type=f32) + b0_ref[...]
    h0 = jnp.maximum(h0, 0.0).astype(cdt)

    # Folded trunk tail + fc_10 feature part + sigma head in one augmented matmul:
    #   lanes [0,128)   -> rgb-hidden pre-activation contribution from features
    #   lane  128       -> sigma (kept in the f32 accumulator, no bf16 re-round)
    #   lanes (128,256) -> zero padding
    acc = jnp.dot(h0, wcat_ref[...], preferred_element_type=f32)

    sigma = acc[:, SIGMA_COL:SIGMA_COL + 1] + bcat_ref[:, SIGMA_COL:SIGMA_COL + 1]

    hid = (acc[:, :NUM_HIDDEN_RGB]
           + jnp.dot(d, wd_ref[...], preferred_element_type=f32)
           + bcat_ref[:, :NUM_HIDDEN_RGB])
    z = jnp.maximum(hid, 0.0).astype(cdt)    # (tile, 128) rgb hidden, plain ReLU

    # fc_11 over the 128 live hidden lanes only (K=128); wout column 3 is zero.
    rgb = jnp.dot(z, wout_ref[...], preferred_element_type=f32) + bout_ref[...]

    lane = jax.lax.broadcasted_iota(jnp.int32, (1, NUM_OUT), 1)
    out = jnp.where(lane == NUM_RGB, sigma, rgb)          # [r, g, b, sigma]
    out_ref[...] = out.astype(out_ref.dtype)


def init_params(key):
    """Deterministic synthetic parameters with the shapes implied by MLP.__init__."""
    ks = jax.random.split(key, 16)
    scale = 0.05
    p = {}
    p["w0"] = scale * jax.random.normal(ks[0], (NUM_SPATIAL, NUM_FEAT), jnp.float32)
    p["b0"] = scale * jax.random.normal(ks[1], (1, NUM_FEAT), jnp.float32)
    p["wstack"] = scale * jax.random.normal(ks[2], (7, NUM_FEAT, NUM_FEAT), jnp.float32)
    p["bstack"] = scale * jax.random.normal(ks[3], (7, 1, NUM_FEAT), jnp.float32)
    p["wsig"] = scale * jax.random.normal(ks[4], (NUM_FEAT, NUM_SIGMA), jnp.float32)
    p["bsig"] = scale * jax.random.normal(ks[5], (1, NUM_SIGMA), jnp.float32)
    # fc_10: Linear(256 + 24 -> 128) on cat([features, d])
    p["w10"] = scale * jax.random.normal(ks[6], (NUM_FEAT + NUM_VIEW, NUM_HIDDEN_RGB), jnp.float32)
    p["b10"] = scale * jax.random.normal(ks[7], (1, NUM_HIDDEN_RGB), jnp.float32)
    p["w11"] = scale * jax.random.normal(ks[8], (NUM_HIDDEN_RGB, NUM_RGB), jnp.float32)
    p["b11"] = scale * jax.random.normal(ks[9], (1, NUM_RGB), jnp.float32)
    return p


def fold_params(p, compute_dtype=jnp.bfloat16):
    """Fold the activation-free fc_1..fc_7 chain and both heads into 4 small
    matrices.  Mathematically identical to the layer-by-layer module (floats
    are merely reassociated).  Call ONCE per weight set and reuse the result."""
    f32 = jnp.float32
    hp = jax.lax.Precision.HIGHEST

    # affine fold of fc_1..fc_7:  h7 = h0 @ W_fold + b_fold
    W_fold = jnp.eye(NUM_FEAT, dtype=f32)
    b_fold = jnp.zeros((1, NUM_FEAT), f32)
    for i in range(7):
        b_fold = jnp.dot(b_fold, p["wstack"][i], precision=hp) + p["bstack"][i]
        W_fold = jnp.dot(W_fold, p["wstack"][i], precision=hp)

    w10x = p["w10"][:NUM_FEAT]       # (256, 128) feature part of fc_10
    w10d = p["w10"][NUM_FEAT:]       # (24, 128)  view-direction part of fc_10

    w10x_eff = jnp.dot(W_fold, w10x, precision=hp)                   # (256, 128)
    b10_eff = jnp.dot(b_fold, w10x, precision=hp) + p["b10"]         # (1, 128)
    wsig_eff = jnp.dot(W_fold, p["wsig"], precision=hp)              # (256, 1)
    bsig_eff = jnp.dot(b_fold, p["wsig"], precision=hp) + p["bsig"]  # (1, 1)

    # augmented fused matrix: cols 0..127 rgb hidden, col 128 sigma, rest zero
    w_cat = jnp.zeros((NUM_FEAT, HID_AUG), f32)
    w_cat = w_cat.at[:, :NUM_HIDDEN_RGB].set(w10x_eff)
    w_cat = w_cat.at[:, SIGMA_COL:SIGMA_COL + 1].set(wsig_eff)
    b_cat = jnp.zeros((1, HID_AUG), f32)
    b_cat = b_cat.at[:, :NUM_HIDDEN_RGB].set(b10_eff)
    b_cat = b_cat.at[:, SIGMA_COL:SIGMA_COL + 1].set(bsig_eff)

    # fc_11 contracted over the 128 live hidden lanes; output column 3 stays
    # zero (sigma is injected from the f32 accumulator inside the kernel).
    w_out = jnp.zeros((NUM_HIDDEN_RGB, NUM_OUT), f32)
    w_out = w_out.at[:, :NUM_RGB].set(p["w11"])
    b_out = jnp.concatenate([p["b11"], jnp.zeros((1, NUM_SIGMA), f32)], axis=1)

    return {
        "w0": p["w0"].astype(compute_dtype),
        "b0": p["b0"],                        # biases stay f32 (post-accumulation)
        "w_cat": w_cat.astype(compute_dtype),
        "w_d": w10d.astype(compute_dtype),
        "b_cat": b_cat,
        "w_out": w_out.astype(compute_dtype),
        "b_out": b_out,
    }


def nerf_mlp_forward(x, d, folded, *, tile_n=2048):
    """Pallas forward over pre-folded params (see fold_params).

    tile_n: rows per grid step.  2048 (with bf16 weights) stays under every
    generation's default scoped-VMEM budget; sweep 1024-4096 for production N
    (cap ~4096 on v7x's 64 MiB VMEM or raise vmem_limit_bytes).  x/d may be
    f32 or bf16 -- they are cast to the weights' dtype inside the kernel, so no
    wrapper-side HBM cast/pad pass is performed; a partial last tile is clipped.
    """
    N = x.shape[0]
    assert x.shape == (N, NUM_SPATIAL) and d.shape == (N, NUM_VIEW)
    tile_n = min(tile_n, N)                  # whole-array block for tiny N
    grid = (pl.cdiv(N, tile_n),)             # partial last block clipped by Pallas

    def _const2d(arr):
        return pl.BlockSpec(arr.shape, lambda i: (0, 0))

    in_specs = [
        pl.BlockSpec((tile_n, NUM_SPATIAL), lambda i: (i, 0)),   # x
        pl.BlockSpec((tile_n, NUM_VIEW), lambda i: (i, 0)),      # d
        _const2d(folded["w0"]), _const2d(folded["b0"]),
        _const2d(folded["w_cat"]), _const2d(folded["w_d"]), _const2d(folded["b_cat"]),
        _const2d(folded["w_out"]), _const2d(folded["b_out"]),
    ]
    out_spec = pl.BlockSpec((tile_n, NUM_OUT), lambda i: (i, 0))

    in_bytes = int(x.size) * x.dtype.itemsize + int(d.size) * d.dtype.itemsize
    w_bytes = sum(int(v.size) * v.dtype.itemsize for v in folded.values())
    cost = pl.CostEstimate(
        flops=int(2 * N * (NUM_SPATIAL * NUM_FEAT + NUM_FEAT * HID_AUG
                           + NUM_VIEW * NUM_HIDDEN_RGB + NUM_HIDDEN_RGB * NUM_OUT)),
        transcendentals=0,
        bytes_accessed=int(in_bytes + N * NUM_OUT * 4 + w_bytes),
    )

    return pl.pallas_call(
        mlp_kernel,
        out_shape=jax.ShapeDtypeStruct((N, NUM_OUT), jnp.float32),
        grid_spec=pltpu.PrefetchScalarGridSpec(
            num_scalar_prefetch=0,
            grid=grid,
            in_specs=in_specs,
            out_specs=out_spec,
        ),
        compiler_params=pltpu.CompilerParams(
            dimension_semantics=("parallel",),
        ),
        cost_estimate=cost,
    )(x, d,
      folded["w0"], folded["b0"],
      folded["w_cat"], folded["w_d"], folded["b_cat"],
      folded["w_out"], folded["b_out"])


def nerf_mlp_reference(x, d, p):
    """Pure-JAX layer-by-layer reference with the module's exact semantics."""
    h = jnp.maximum(x @ p["w0"] + p["b0"], 0.0)       # fc_0 -> ReLU (single ReLU)
    for i in range(7):                                 # fc_1 .. fc_7, no activation
        h = h @ p["wstack"][i] + p["bstack"][i]
    sigma = h @ p["wsig"] + p["bsig"]
    cat = jnp.concatenate([h, d], axis=-1)
    z = jnp.maximum(cat @ p["w10"] + p["b10"], 0.0)
    rgb = z @ p["w11"] + p["b11"]
    return jnp.concatenate([rgb, sigma], axis=-1)


if __name__ == "__main__":
    key = jax.random.PRNGKey(0)
    k_param, k_x, k_d = jax.random.split(key, 3)

    N = 2048
    x = jax.random.normal(k_x, (N, NUM_SPATIAL), jnp.float32)
    d = jax.random.normal(k_d, (N, NUM_VIEW), jnp.float32)
    params = init_params(k_param)
    ref = nerf_mlp_reference(x, d, params)

    # 1) f32 compute path: folding only reassociates floats -> tight check.
    folded_f32 = fold_params(params, compute_dtype=jnp.float32)
    out_f32 = jax.block_until_ready(nerf_mlp_forward(x, d, folded_f32, tile_n=1024))
    assert out_f32.shape == (N, NUM_OUT)
    assert jnp.allclose(out_f32, ref, atol=1e-3, rtol=1e-3), \
        "f32 Pallas output mismatch vs reference"

    # 2) bf16 default path (fold once, jit the forward); grid=(2,) so both
    #    v7x TensorCores get work.
    folded_bf16 = fold_params(params)               # bf16 weights, f32 biases
    fwd = jax.jit(functools.partial(nerf_mlp_forward, tile_n=1024))
    out_bf16 = jax.block_until_ready(fwd(x, d, folded_bf16))
    assert out_bf16.shape == (N, NUM_OUT)
    assert jnp.allclose(out_bf16, ref, atol=5e-2, rtol=5e-2), \
        "bf16 Pallas output mismatch vs reference"

    # 3) ragged N with no wrapper pad/slice: partial last block is clipped.
    Nr = 777
    out_r = jax.block_until_ready(
        nerf_mlp_forward(x[:Nr], d[:Nr], folded_bf16, tile_n=512))
    assert out_r.shape == (Nr, NUM_OUT)
    assert jnp.allclose(out_r, ref[:Nr], atol=5e-2, rtol=5e-2), \
        "ragged-N Pallas output mismatch vs reference"

    print("KERNEL_OK")
</pallas_src>

<mosaic_0001>
module attributes {stable_mosaic.version = 11 : i64} {
  func.func @mlp_kernel(%arg0: i32, %arg1: memref<1024x60xf32, #tpu.memory_space<vmem>>, %arg2: memref<1024x24xf32, #tpu.memory_space<vmem>>, %arg3: memref<60x256xf32, #tpu.memory_space<vmem>>, %arg4: memref<1x256xf32, #tpu.memory_space<vmem>>, %arg5: memref<256x256xf32, #tpu.memory_space<vmem>>, %arg6: memref<24x128xf32, #tpu.memory_space<vmem>>, %arg7: memref<1x256xf32, #tpu.memory_space<vmem>>, %arg8: memref<128x4xf32, #tpu.memory_space<vmem>>, %arg9: memref<1x4xf32, #tpu.memory_space<vmem>>, %arg10: memref<1024x4xf32, #tpu.memory_space<vmem>>) attributes {dimension_semantics = [#tpu.dimension_semantics<parallel>], iteration_bounds = array<i64: 2>, scalar_prefetch = 0 : i64, scratch_operands = 0 : i64, tpu.core_type = #tpu.core_type<tc>, window_params = [{transform_indices = @transform_0, window_bounds = array<i64: 1024, 60>}, {transform_indices = @transform_1, window_bounds = array<i64: 1024, 24>}, {pipeline_mode = #tpu.pipeline_mode<synchronous>, transform_indices = @transform_2, window_bounds = array<i64: 60, 256>}, {pipeline_mode = #tpu.pipeline_mode<synchronous>, transform_indices = @transform_3, window_bounds = array<i64: 1, 256>}, {pipeline_mode = #tpu.pipeline_mode<synchronous>, transform_indices = @transform_4, window_bounds = array<i64: 256, 256>}, {pipeline_mode = #tpu.pipeline_mode<synchronous>, transform_indices = @transform_5, window_bounds = array<i64: 24, 128>}, {pipeline_mode = #tpu.pipeline_mode<synchronous>, transform_indices = @transform_6, window_bounds = array<i64: 1, 256>}, {pipeline_mode = #tpu.pipeline_mode<synchronous>, transform_indices = @transform_7, window_bounds = array<i64: 128, 4>}, {pipeline_mode = #tpu.pipeline_mode<synchronous>, transform_indices = @transform_8, window_bounds = array<i64: 1, 4>}, {transform_indices = @transform_9, window_bounds = array<i64: 1024, 4>}]} {
    %c0 = arith.constant 0 : index
    %c0_0 = arith.constant 0 : index
    %0 = vector.load %arg1[%c0, %c0_0] : memref<1024x60xf32, #tpu.memory_space<vmem>>, vector<1024x60xf32>
    %c0_1 = arith.constant 0 : index
    %c0_2 = arith.constant 0 : index
    %1 = vector.load %arg2[%c0_1, %c0_2] : memref<1024x24xf32, #tpu.memory_space<vmem>>, vector<1024x24xf32>
    %c0_3 = arith.constant 0 : index
    %c0_4 = arith.constant 0 : index
    %2 = vector.load %arg3[%c0_3, %c0_4] : memref<60x256xf32, #tpu.memory_space<vmem>>, vector<60x256xf32>
    %cst = arith.constant dense<0.000000e+00> : vector<1024x256xf32>
    %3 = tpu.matmul %0, %2, %cst {dimension_numbers = #tpu.dot_dimension_numbers<[1], [0], [0], [1], [0, 0, 1, 1], [], []>} : vector<1024x60xf32>, vector<60x256xf32>, vector<1024x256xf32> -> vector<1024x256xf32>
    %c0_5 = arith.constant 0 : index
    %c0_6 = arith.constant 0 : index
    %4 = vector.load %arg4[%c0_5, %c0_6] : memref<1x256xf32, #tpu.memory_space<vmem>>, vector<1x256xf32>
    %5 = vector.broadcast %4 : vector<1x256xf32> to vector<1024x256xf32>
    %6 = arith.addf %3, %5 : vector<1024x256xf32>
    %cst_7 = arith.constant 0.000000e+00 : f32
    %7 = vector.broadcast %cst_7 : f32 to vector<1024x256xf32>
    %8 = arith.maximumf %6, %7 : vector<1024x256xf32>
    %c0_8 = arith.constant 0 : index
    %c0_9 = arith.constant 0 : index
    %9 = vector.load %arg5[%c0_8, %c0_9] : memref<256x256xf32, #tpu.memory_space<vmem>>, vector<256x256xf32>
    %cst_10 = arith.constant dense<0.000000e+00> : vector<1024x256xf32>
    %10 = tpu.matmul %8, %9, %cst_10 {dimension_numbers = #tpu.dot_dimension_numbers<[1], [0], [0], [1], [0, 0, 1, 1], [], []>} : vector<1024x256xf32>, vector<256x256xf32>, vector<1024x256xf32> -> vector<1024x256xf32>
    %11 = vector.extract_strided_slice %10 {offsets = [0, 128], sizes = [1024, 1], strides = [1, 1]} : vector<1024x256xf32> to vector<1024x1xf32>
    %c0_11 = arith.constant 0 : index
    %c128 = arith.constant 128 : index
    %12 = vector.load %arg7[%c0_11, %c128] : memref<1x256xf32, #tpu.memory_space<vmem>>, vector<1x1xf32>
    %13 = vector.broadcast %12 : vector<1x1xf32> to vector<1024x1xf32>
    %14 = arith.addf %11, %13 : vector<1024x1xf32>
    %15 = vector.extract_strided_slice %10 {offsets = [0, 0], sizes = [1024, 128], strides = [1, 1]} : vector<1024x256xf32> to vector<1024x128xf32>
    %c0_12 = arith.constant 0 : index
    %c0_13 = arith.constant 0 : index
    %16 = vector.load %arg6[%c0_12, %c0_13] : memref<24x128xf32, #tpu.memory_space<vmem>>, vector<24x128xf32>
    %cst_14 = arith.constant dense<0.000000e+00> : vector<1024x128xf32>
    %17 = tpu.matmul %1, %16, %cst_14 {dimension_numbers = #tpu.dot_dimension_numbers<[1], [0], [0], [1], [0, 0, 1, 1], [], []>} : vector<1024x24xf32>, vector<24x128xf32>, vector<1024x128xf32> -> vector<1024x128xf32>
    %18 = arith.addf %15, %17 : vector<1024x128xf32>
    %c0_15 = arith.constant 0 : index
    %c0_16 = arith.constant 0 : index
    %19 = vector.load %arg7[%c0_15, %c0_16] : memref<1x256xf32, #tpu.memory_space<vmem>>, vector<1x128xf32>
    %20 = vector.broadcast %19 : vector<1x128xf32> to vector<1024x128xf32>
    %21 = arith.addf %18, %20 : vector<1024x128xf32>
    %cst_17 = arith.constant 0.000000e+00 : f32
    %22 = vector.broadcast %cst_17 : f32 to vector<1024x128xf32>
    %23 = arith.maximumf %21, %22 : vector<1024x128xf32>
    %c0_18 = arith.constant 0 : index
    %c0_19 = arith.constant 0 : index
    %24 = vector.load %arg8[%c0_18, %c0_19] : memref<128x4xf32, #tpu.memory_space<vmem>>, vector<128x4xf32>
    %cst_20 = arith.constant dense<0.000000e+00> : vector<1024x4xf32>
    %25 = tpu.matmul %23, %24, %cst_20 {dimension_numbers = #tpu.dot_dimension_numbers<[1], [0], [0], [1], [0, 0, 1, 1], [], []>} : vector<1024x128xf32>, vector<128x4xf32>, vector<1024x4xf32> -> vector<1024x4xf32>
    %c0_21 = arith.constant 0 : index
    %c0_22 = arith.constant 0 : index
    %26 = vector.load %arg9[%c0_21, %c0_22] : memref<1x4xf32, #tpu.memory_space<vmem>>, vector<1x4xf32>
    %27 = vector.broadcast %26 : vector<1x4xf32> to vector<1024x4xf32>
    %28 = arith.addf %25, %27 : vector<1024x4xf32>
    %29 = tpu.iota {dimensions = array<i32: 1>} : vector<1x4xi32>
    %c3_i32 = arith.constant 3 : i32
    %30 = vector.broadcast %c3_i32 : i32 to vector<1x4xi32>
    %31 = arith.cmpi eq, %29, %30 : vector<1x4xi32>
    %32 = vector.shape_cast %31 : vector<1x4xi1> to vector<1x4xi1>
    %33 = vector.broadcast %32 : vector<1x4xi1> to vector<1024x4xi1>
    %34 = vector.shape_cast %14 : vector<1024x1xf32> to vector<1024x1xf32>
    %35 = vector.broadcast %34 : vector<1024x1xf32> to vector<1024x4xf32>
    %36 = arith.select %33, %35, %28 : vector<1024x4xi1>, vector<1024x4xf32>
    %c0_23 = arith.constant 0 : index
    %c0_24 = arith.constant 0 : index
    %37 = vector.load %arg10[%c0_23, %c0_24] : memref<1024x4xf32, #tpu.memory_space<vmem>>, vector<1024x4xf32>
    tpu.vector_store %arg10[%c0_23, %c0_24], %36 {strides = array<i32>} : memref<1024x4xf32, #tpu.memory_space<vmem>>, vector<1024x4xf32>,
    return
  }
  func.func @transform_0(%arg0: i32) -> (i32, i32) {
    %c0_i32 = arith.constant 0 : i32
    %c0_i32_0 = arith.constant 0 : i32
    return %arg0, %c0_i32 : i32, i32
  }
  func.func @transform_1(%arg0: i32) -> (i32, i32) {
    %c0_i32 = arith.constant 0 : i32
    %c0_i32_0 = arith.constant 0 : i32
    return %arg0, %c0_i32 : i32, i32
  }
  func.func @transform_2(%arg0: i32) -> (i32, i32) {
    %c0_i32 = arith.constant 0 : i32
    %c0_i32_0 = arith.constant 0 : i32
    %c0_i32_1 = arith.constant 0 : i32
    return %c0_i32, %c0_i32_0 : i32, i32
  }
  func.func @transform_3(%arg0: i32) -> (i32, i32) {
    %c0_i32 = arith.constant 0 : i32
    %c0_i32_0 = arith.constant 0 : i32
    %c0_i32_1 = arith.constant 0 : i32
    return %c0_i32, %c0_i32_0 : i32, i32
  }
  func.func @transform_4(%arg0: i32) -> (i32, i32) {
    %c0_i32 = arith.constant 0 : i32
    %c0_i32_0 = arith.constant 0 : i32
    %c0_i32_1 = arith.constant 0 : i32
    return %c0_i32, %c0_i32_0 : i32, i32
  }
  func.func @transform_5(%arg0: i32) -> (i32, i32) {
    %c0_i32 = arith.constant 0 : i32
    %c0_i32_0 = arith.constant 0 : i32
    %c0_i32_1 = arith.constant 0 : i32
    return %c0_i32, %c0_i32_0 : i32, i32
  }
  func.func @transform_6(%arg0: i32) -> (i32, i32) {
    %c0_i32 = arith.constant 0 : i32
    %c0_i32_0 = arith.constant 0 : i32
    %c0_i32_1 = arith.constant 0 : i32
    return %c0_i32, %c0_i32_0 : i32, i32
  }
  func.func @transform_7(%arg0: i32) -> (i32, i32) {
    %c0_i32 = arith.constant 0 : i32
    %c0_i32_0 = arith.constant 0 : i32
    %c0_i32_1 = arith.constant 0 : i32
    return %c0_i32, %c0_i32_0 : i32, i32
  }
  func.func @transform_8(%arg0: i32) -> (i32, i32) {
    %c0_i32 = arith.constant 0 : i32
    %c0_i32_0 = arith.constant 0 : i32
    %c0_i32_1 = arith.constant 0 : i32
    return %c0_i32, %c0_i32_0 : i32, i32
  }
  func.func @transform_9(%arg0: i32) -> (i32, i32) {
    %c0_i32 = arith.constant 0 : i32
    %c0_i32_0 = arith.constant 0 : i32
    return %arg0, %c0_i32 : i32, i32
  }
}

</mosaic_0001>

<llo_original>
// kernel: tpu_custom_call.1
$region0: #{tpu_custom_call.1}
  #allocation0 [shape = 'u32[]', space=smem, size = 0x4, offset = 0x4, fixed_abs, tag = 'smem constant byte address 0x4 - core index']
  #allocation1 [shape = 'u32[72,128]{1,0:T(1,128)}', space=vmem, size = 0x9000, scoped, tag = 'internal scratch']
  %s0 = inlined_call_operand.vmem [shape: f32[2048,60], index: 0, kind: input, shape index: {}]
  %s1 = inlined_call_operand.vmem [shape: f32[2048,24], index: 1, kind: input, shape index: {}]
  %s2 = inlined_call_operand.vmem [shape: f32[60,256], index: 2, kind: input, shape index: {}]
  %s3 = inlined_call_operand.vmem [shape: f32[1,256], index: 3, kind: input, shape index: {}]
  %s4 = inlined_call_operand.vmem [shape: f32[256,256], index: 4, kind: input, shape index: {}]
  %s5 = inlined_call_operand.vmem [shape: f32[24,128], index: 5, kind: input, shape index: {}]
  %s6 = inlined_call_operand.vmem [shape: f32[1,256], index: 6, kind: input, shape index: {}]
  %s7 = inlined_call_operand.vmem [shape: f32[128,4], index: 7, kind: input, shape index: {}]
  %s8 = inlined_call_operand.vmem [shape: f32[1,4], index: 8, kind: input, shape index: {}]
  %s9 = inlined_call_operand.vmem [shape: f32[2048,4], index: 9, kind: output, shape index: {}]
  %s10 = sld [smem:[#allocation0]]
  $region69: #{tpu_custom_call.1} parent=0
    _
  %s12 = ssub.s32 1, %s10
  %s13 = scalar_select 0, %s12, %s10
  loop: start=0, step=1, limit=4
  $region2: #{tpu_custom_call.1} parent=0 // loop_pre_header
    _
  $region3: #{tpu_custom_call.1} parent=0 // loop_header
    %s15 = sphi 0, %s19
    %p16 = scmp.ge.s32.totalorder %s15, 4
    %s25 = sphi 0, %s27
    %s28 = sphi 0, %s25
    %s29 = sphi 0, %s28
    %s45 = sphi 0, %s29
    %s51 = sphi 0, %s53
    %s54 = sphi 0, %s51
    %s55 = sphi 0, %s54
    %s71 = sphi 0, %s55
    %s75 = sphi 0, %s75
    %s77 = sphi 0, %s75
    %s78 = sphi 0, %s77
    %s92 = sphi 0, %s78
    %s96 = sphi 0, %s96
    %s98 = sphi 0, %s96
    %s99 = sphi 0, %s98
    %s113 = sphi 0, %s99
    %s117 = sphi 0, %s117
    %s119 = sphi 0, %s117
    %s120 = sphi 0, %s119
    %s134 = sphi 0, %s120
    %s138 = sphi 0, %s138
    %s140 = sphi 0, %s138
    %s141 = sphi 0, %s140
    %s155 = sphi 0, %s141
    %s159 = sphi 0, %s159
    %s161 = sphi 0, %s159
    %s162 = sphi 0, %s161
    %s176 = sphi 0, %s162
    %s180 = sphi 0, %s180
    %s182 = sphi 0, %s180
    %s183 = sphi 0, %s182
    %s197 = sphi 0, %s183
    %s201 = sphi 0, %s201
    %s203 = sphi 0, %s201
    %s204 = sphi 0, %s203
    %s218 = sphi 0, %s204
    %s224 = sphi 0, %s226
    %s227 = sphi 0, %s224
    %s228 = sphi 0, %s227
    %s244 = sphi 0, %s228
  $region4: #{tpu_custom_call.1} parent=0 // loop_header_branch
    %18 = sbr.rel (%p16) target = $region8
  $region5: #{tpu_custom_call.1} parent=0 // loop_body
    %s20 = ssub.s32 %s15, 1
    %s21 = ssub.s32 %s15, 2
    %s22 = sadd.s32 %s15, 1
    %s23 = ssub.s32 %s15, %s22
    %p24 = scmp.eq.s32.totalorder %s23, 0
    %s26 = sadd.s32 %s25, 1
    %s27 = scalar_select %p24, %s25, %s26
    %p30 = pneg %p24
    %p31 = scmp.eq.s32.totalorder %s15, 1
    %p32 = por %p30, %p31
    %p33 = scmp.ne.s32.totalorder %s25, %s28
    %p34 = scmp.eq.s32.totalorder %s15, 0
    %p35 = por %p33, %p34
    %p36 = scmp.ne.s32.totalorder %s25, %s28
    %p37 = scmp.eq.s32.totalorder %s20, 1
    %p38 = por %p36, %p37
    %p39 = scmp.ne.s32.totalorder %s28, %s29
    %p40 = scmp.eq.s32.totalorder %s20, 0
    %p41 = por %p39, %p40
    %p42 = scmp.ne.s32.totalorder %s28, %s29
    %p43 = scmp.eq.s32.totalorder %s21, 1
    %p44 = por %p42, %p43
    %p46 = scmp.ne.s32.totalorder %s29, %s45
    %p47 = scmp.eq.s32.totalorder %s21, 0
    %p48 = por %p46, %p47
    %s49 = ssub.s32 %s15, %s22
    %p50 = scmp.eq.s32.totalorder %s49, 0
    %s52 = sadd.s32 %s51, 1
    %s53 = scalar_select %p50, %s51, %s52
    %p56 = pneg %p50
    %p57 = scmp.eq.s32.totalorder %s15, 1
    %p58 = por %p56, %p57
    %p59 = scmp.ne.s32.totalorder %s51, %s54
    %p60 = scmp.eq.s32.totalorder %s15, 0
    %p61 = por %p59, %p60
    %p62 = scmp.ne.s32.totalorder %s51, %s54
    %p63 = scmp.eq.s32.totalorder %s20, 1
    %p64 = por %p62, %p63
    %p65 = scmp.ne.s32.totalorder %s54, %s55
    %p66 = scmp.eq.s32.totalorder %s20, 0
    %p67 = por %p65, %p66
    %p68 = scmp.ne.s32.totalorder %s54, %s55
    %p69 = scmp.eq.s32.totalorder %s21, 1
    %p70 = por %p68, %p69
    %p72 = scmp.ne.s32.totalorder %s55, %s71
    %p73 = scmp.eq.s32.totalorder %s21, 0
    %p74 = por %p72, %p73
    %s76 = sadd.s32 %s75, 1
    %p79 = scmp.eq.s32.totalorder %s15, 1
    %p80 = scmp.ne.s32.totalorder %s75, %s77
    %p81 = scmp.eq.s32.totalorder %s15, 0
    %p82 = por %p80, %p81
    %p83 = scmp.ne.s32.totalorder %s75, %s77
    %p84 = scmp.eq.s32.totalorder %s20, 1
    %p85 = por %p83, %p84
    %p86 = scmp.ne.s32.totalorder %s77, %s78
    %p87 = scmp.eq.s32.totalorder %s20, 0
    %p88 = por %p86, %p87
    %p89 = scmp.ne.s32.totalorder %s77, %s78
    %p90 = scmp.eq.s32.totalorder %s21, 1
    %p91 = por %p89, %p90
    %p93 = scmp.ne.s32.totalorder %s78, %s92
    %p94 = scmp.eq.s32.totalorder %s21, 0
    %p95 = por %p93, %p94
    %s97 = sadd.s32 %s96, 1
    %p100 = scmp.eq.s32.totalorder %s15, 1
    %p101 = scmp.ne.s32.totalorder %s96, %s98
    %p102 = scmp.eq.s32.totalorder %s15, 0
    %p103 = por %p101, %p102
    %p104 = scmp.ne.s32.totalorder %s96, %s98
    %p105 = scmp.eq.s32.totalorder %s20, 1
    %p106 = por %p104, %p105
    %p107 = scmp.ne.s32.totalorder %s98, %s99
    %p108 = scmp.eq.s32.totalorder %s20, 0
    %p109 = por %p107, %p108
    %p110 = scmp.ne.s32.totalorder %s98, %s99
    %p111 = scmp.eq.s32.totalorder %s21, 1
    %p112 = por %p110, %p111
    %p114 = scmp.ne.s32.totalorder %s99, %s113
    %p115 = scmp.eq.s32.totalorder %s21, 0
    %p116 = por %p114, %p115
    %s118 = sadd.s32 %s117, 1
    %p121 = scmp.eq.s32.totalorder %s15, 1
    %p122 = scmp.ne.s32.totalorder %s117, %s119
    %p123 = scmp.eq.s32.totalorder %s15, 0
    %p124 = por %p122, %p123
    %p125 = scmp.ne.s32.totalorder %s117, %s119
    %p126 = scmp.eq.s32.totalorder %s20, 1
    %p127 = por %p125, %p126
    %p128 = scmp.ne.s32.totalorder %s119, %s120
    %p129 = scmp.eq.s32.totalorder %s20, 0
    %p130 = por %p128, %p129
    %p131 = scmp.ne.s32.totalorder %s119, %s120
    %p132 = scmp.eq.s32.totalorder %s21, 1
    %p133 = por %p131, %p132
    %p135 = scmp.ne.s32.totalorder %s120, %s134
    %p136 = scmp.eq.s32.totalorder %s21, 0
    %p137 = por %p135, %p136
    %s139 = sadd.s32 %s138, 1
    %p142 = scmp.eq.s32.totalorder %s15, 1
    %p143 = scmp.ne.s32.totalorder %s138, %s140
    %p144 = scmp.eq.s32.totalorder %s15, 0
    %p145 = por %p143, %p144
    %p146 = scmp.ne.s32.totalorder %s138, %s140
    %p147 = scmp.eq.s32.totalorder %s20, 1
    %p148 = por %p146, %p147
    %p149 = scmp.ne.s32.totalorder %s140, %s141
    %p150 = scmp.eq.s32.totalorder %s20, 0
    %p151 = por %p149, %p150
    %p152 = scmp.ne.s32.totalorder %s140, %s141
    %p153 = scmp.eq.s32.totalorder %s21, 1
    %p154 = por %p152, %p153
    %p156 = scmp.ne.s32.totalorder %s141, %s155
    %p157 = scmp.eq.s32.totalorder %s21, 0
    %p158 = por %p156, %p157
    %s160 = sadd.s32 %s159, 1
    %p163 = scmp.eq.s32.totalorder %s15, 1
    %p164 = scmp.ne.s32.totalorder %s159, %s161
    %p165 = scmp.eq.s32.totalorder %s15, 0
    %p166 = por %p164, %p165
    %p167 = scmp.ne.s32.totalorder %s159, %s161
    %p168 = scmp.eq.s32.totalorder %s20, 1
    %p169 = por %p167, %p168
    %p170 = scmp.ne.s32.totalorder %s161, %s162
    %p171 = scmp.eq.s32.totalorder %s20, 0
    %p172 = por %p170, %p171
    %p173 = scmp.ne.s32.totalorder %s161, %s162
    %p174 = scmp.eq.s32.totalorder %s21, 1
    %p175 = por %p173, %p174
    %p177 = scmp.ne.s32.totalorder %s162, %s176
    %p178 = scmp.eq.s32.totalorder %s21, 0
    %p179 = por %p177, %p178
    %s181 = sadd.s32 %s180, 1
    %p184 = scmp.eq.s32.totalorder %s15, 1
    %p185 = scmp.ne.s32.totalorder %s180, %s182
    %p186 = scmp.eq.s32.totalorder %s15, 0
    %p187 = por %p185, %p186
    %p188 = scmp.ne.s32.totalorder %s180, %s182
    %p189 = scmp.eq.s32.totalorder %s20, 1
    %p190 = por %p188, %p189
    %p191 = scmp.ne.s32.totalorder %s182, %s183
    %p192 = scmp.eq.s32.totalorder %s20, 0
    %p193 = por %p191, %p192
    %p194 = scmp.ne.s32.totalorder %s182, %s183
    %p195 = scmp.eq.s32.totalorder %s21, 1
    %p196 = por %p194, %p195
    %p198 = scmp.ne.s32.totalorder %s183, %s197
    %p199 = scmp.eq.s32.totalorder %s21, 0
    %p200 = por %p198, %p199
    %s202 = sadd.s32 %s201, 1
    %p205 = scmp.eq.s32.totalorder %s15, 1
    %p206 = scmp.ne.s32.totalorder %s201, %s203
    %p207 = scmp.eq.s32.totalorder %s15, 0
    %p208 = por %p206, %p207
    %p209 = scmp.ne.s32.totalorder %s201, %s203
    %p210 = scmp.eq.s32.totalorder %s20, 1
    %p211 = por %p209, %p210
    %p212 = scmp.ne.s32.totalorder %s203, %s204
    %p213 = scmp.eq.s32.totalorder %s20, 0
    %p214 = por %p212, %p213
    %p215 = scmp.ne.s32.totalorder %s203, %s204
    %p216 = scmp.eq.s32.totalorder %s21, 1
    %p217 = por %p215, %p216
    %p219 = scmp.ne.s32.totalorder %s204, %s218
    %p220 = scmp.eq.s32.totalorder %s21, 0
    %p221 = por %p219, %p220
    %s222 = ssub.s32 %s15, %s22
    %p223 = scmp.eq.s32.totalorder %s222, 0
    %s225 = sadd.s32 %s224, 1
    %s226 = scalar_select %p223, %s224, %s225
    %p229 = pneg %p223
    %p230 = scmp.eq.s32.totalorder %s15, 1
    %p231 = por %p229, %p230
    %p232 = scmp.ne.s32.totalorder %s224, %s227
    %p233 = scmp.eq.s32.totalorder %s15, 0
    %p234 = por %p232, %p233
    %p235 = scmp.ne.s32.totalorder %s224, %s227
    %p236 = scmp.eq.s32.totalorder %s20, 1
    %p237 = por %p235, %p236
    %p238 = scmp.ne.s32.totalorder %s227, %s228
    %p239 = scmp.eq.s32.totalorder %s20, 0
    %p240 = por %p238, %p239
    %p241 = scmp.ne.s32.totalorder %s227, %s228
    %p242 = scmp.eq.s32.totalorder %s21, 1
    %p243 = por %p241, %p242
    %p245 = scmp.ne.s32.totalorder %s228, %s244
    %p246 = scmp.eq.s32.totalorder %s21, 0
    %p247 = por %p245, %p246
    %p248 = scmp.le.s32.totalorder 1, %s15
    %p249 = scmp.lt.s32.totalorder %s15, 3
    %p250 = pnand %p248, %p249
    %p251 = pneg %p250
    // Predicated region
    $region9: #{tpu_custom_call.1} parent=5 // pred_check
      _
    $region10: #{tpu_custom_call.1} parent=5 // pred_check_branch
      %253 = sbr.rel (%p250) target = $region12
    $region11: #{tpu_custom_call.1} parent=5 // pred_region
      %s254 = ssub.s32 %s15, 1
      // Predicated region
      $region13: #{tpu_custom_call.1} parent=11 // pred_check
        %p255 = pneg %p88
      $region14: #{tpu_custom_call.1} parent=11 // pred_check_branch
        %257 = sbr.rel (%p255) target = $region16
      $region15: #{tpu_custom_call.1} parent=11 // pred_region
        _
      $region16: #{tpu_custom_call.1} parent=11 // pred_fallthru
        _
      // Predicated region
      $region17: #{tpu_custom_call.1} parent=11 // pred_check
        %p258 = pneg %p109
      $region18: #{tpu_custom_call.1} parent=11 // pred_check_branch
        %260 = sbr.rel (%p258) target = $region20
      $region19: #{tpu_custom_call.1} parent=11 // pred_region
        _
      $region20: #{tpu_custom_call.1} parent=11 // pred_fallthru
        _
      // Predicated region
      $region21: #{tpu_custom_call.1} parent=11 // pred_check
        %p261 = pneg %p130
      $region22: #{tpu_custom_call.1} parent=11 // pred_check_branch
        %263 = sbr.rel (%p261) target = $region24
      $region23: #{tpu_custom_call.1} parent=11 // pred_region
        _
      $region24: #{tpu_custom_call.1} parent=11 // pred_fallthru
        _
      // Predicated region
      $region25: #{tpu_custom_call.1} parent=11 // pred_check
        %p264 = pneg %p151
      $region26: #{tpu_custom_call.1} parent=11 // pred_check_branch
        %266 = sbr.rel (%p264) target = $region28
      $region27: #{tpu_custom_call.1} parent=11 // pred_region
        _
      $region28: #{tpu_custom_call.1} parent=11 // pred_fallthru
        _
      // Predicated region
      $region29: #{tpu_custom_call.1} parent=11 // pred_check
        %p267 = pneg %p172
      $region30: #{tpu_custom_call.1} parent=11 // pred_check_branch
        %269 = sbr.rel (%p267) target = $region32
      $region31: #{tpu_custom_call.1} parent=11 // pred_region
        _
      $region32: #{tpu_custom_call.1} parent=11 // pred_fallthru
        _
      // Predicated region
      $region33: #{tpu_custom_call.1} parent=11 // pred_check
        %p270 = pneg %p193
      $region34: #{tpu_custom_call.1} parent=11 // pred_check_branch
        %272 = sbr.rel (%p270) target = $region36
      $region35: #{tpu_custom_call.1} parent=11 // pred_region
        _
      $region36: #{tpu_custom_call.1} parent=11 // pred_fallthru
        _
      // Predicated region
      $region37: #{tpu_custom_call.1} parent=11 // pred_check
        %p273 = pneg %p214
      $region38: #{tpu_custom_call.1} parent=11 // pred_check_branch
        %275 = sbr.rel (%p273) target = $region40
      $region39: #{tpu_custom_call.1} parent=11 // pred_region
        _
      $region40: #{tpu_custom_call.1} parent=11 // pred_fallthru
        _
    $region12: #{tpu_custom_call.1} parent=5 // pred_fallthru
      _
    %p276 = scmp.lt.s32.totalorder %s15, 2
    // Predicated region
    $region41: #{tpu_custom_call.1} parent=5 // pred_check
      %p277 = pneg %p276
    $region42: #{tpu_custom_call.1} parent=5 // pred_check_branch
      %279 = sbr.rel (%p277) target = $region44
    $region43: #{tpu_custom_call.1} parent=5 // pred_region
      // Predicated region
      $region45: #{tpu_custom_call.1} parent=43 // pred_check
        %p280 = pneg %p35
      $region46: #{tpu_custom_call.1} parent=43 // pred_check_branch
        %282 = sbr.rel (%p280) target = $region48
      $region47: #{tpu_custom_call.1} parent=43 // pred_region
        %s283 = smul.u32 128, %s15
        %p284 = scmp.lt.s32.totalorder %s283, 255
        %s285 = scalar_select %p284, %s283, 255
        %s286 = smul.addr %s285, 8
        %s287 = scalar_lea.vmem %s0, %s286
        %s288 = smul.u32 128, %s15
      $region48: #{tpu_custom_call.1} parent=43 // pred_fallthru
        _
      // Predicated region
      $region49: #{tpu_custom_call.1} parent=43 // pred_check
        %p289 = pneg %p61
      $region50: #{tpu_custom_call.1} parent=43 // pred_check_branch
        %291 = sbr.rel (%p289) target = $region52
      $region51: #{tpu_custom_call.1} parent=43 // pred_region
        %s292 = smul.u32 128, %s15
        %p293 = scmp.lt.s32.totalorder %s292, 255
        %s294 = scalar_select %p293, %s292, 255
        %s295 = smul.addr %s294, 8
        %s296 = scalar_lea.vmem %s1, %s295
        %s297 = smul.u32 128, %s15
      $region52: #{tpu_custom_call.1} parent=43 // pred_fallthru
        _
    $region44: #{tpu_custom_call.1} parent=5 // pred_fallthru
      _
    %p298 = scmp.le.s32.totalorder 1, %s15
    %p299 = scmp.lt.s32.totalorder %s15, 3
    %p300 = pnand %p298, %p299
    %p301 = pneg %p300
    // Predicated region
    $region53: #{tpu_custom_call.1} parent=5 // pred_check
      _
    $region54: #{tpu_custom_call.1} parent=5 // pred_check_branch
      %303 = sbr.rel (%p300) target = $region56
    $region55: #{tpu_custom_call.1} parent=5 // pred_region
      %s304 = ssub.s32 %s15, 1
      %s305 = smul.u32 128, %s20
      %p306 = scmp.lt.s32.totalorder %s305, 255
      %s307 = scalar_select %p306, %s305, 255
      %s308 = smul.addr %s307, 8
      %s309 = scalar_lea.vmem %s0, %s308
      %p310 = pneg %p41
      %p311 = pneg %p38
      %s312 = smul.u32 128, %s20
      %p313 = scmp.lt.s32.totalorder %s312, 255
      %s314 = scalar_select %p313, %s312, 255
      %s315 = smul.addr %s314, 8
      %s316 = scalar_lea.vmem %s1, %s315
      %p317 = pneg %p67
      %p318 = pneg %p64
      %p319 = pneg %p88
      %p320 = pneg %p85
      %p321 = pneg %p109
      %p322 = pneg %p106
      %p323 = pneg %p130
      %p324 = pneg %p127
      %p325 = pneg %p151
      %p326 = pneg %p148
      %p327 = pneg %p172
      %p328 = pneg %p169
      %p329 = pneg %p193
      %p330 = pneg %p190
      %p331 = pneg %p214
      %p332 = pneg %p211
      %p333 = pneg %p240
      %p334 = pneg %p237
      %s335 = smul.u32 128, %s20
      %p336 = scmp.lt.s32.totalorder %s335, 255
      %s337 = scalar_select %p336, %s335, 255
      %s338 = smul.addr %s337, 8
      %s339 = scalar_lea.vmem %s9, %s338
      %s340 = smul.u32 128, %s20
      %p341 = scmp.lt.s32.totalorder %s340, 255
      %s342 = scalar_select %p341, %s340, 255
      %s343 = smul.addr %s342, 8
      %s344 = scalar_lea.vmem %s0, %s343
      %s345 = smul.u32 128, %s20
      %s346 = smul.u32 128, %s20
      %p347 = scmp.lt.s32.totalorder %s346, 255
      %s348 = scalar_select %p347, %s346, 255
      %s349 = smul.addr %s348, 8
      %s350 = scalar_lea.vmem %s1, %s349
      %s351 = smul.u32 128, %s20
      %s352 = smul.u32 128, %s20
      %p353 = scmp.lt.s32.totalorder %s352, 255
      %s354 = scalar_select %p353, %s352, 255
      %s355 = smul.addr %s354, 8
      %s356 = scalar_lea.vmem %s9, %s355
      %s357 = smul.u32 128, %s20
      %v358 = vld [vmem:[%s344] sm:$0xff]
      %v359 = vld [vmem:[%s344 + $0x8] sm:$0xff]
      %v360 = vld [vmem:[%s344 + $0x10] sm:$0xff]
      %v361 = vld [vmem:[%s344 + $0x18] sm:$0xff]
      %v362 = vld [vmem:[%s344 + $0x20] sm:$0xff]
      %v363 = vld [vmem:[%s344 + $0x28] sm:$0xff]
      %v364 = vld [vmem:[%s344 + $0x30] sm:$0xff]
      %v365 = vld [vmem:[%s344 + $0x38] sm:$0xff]
      %v366 = vld [vmem:[%s344 + $0x40] sm:$0xff]
      %v367 = vld [vmem:[%s344 + $0x48] sm:$0xff]
      %v368 = vld [vmem:[%s344 + $0x50] sm:$0xff]
      %v369 = vld [vmem:[%s344 + $0x58] sm:$0xff]
      %v370 = vld [vmem:[%s344 + $0x60] sm:$0xff]
      %v371 = vld [vmem:[%s344 + $0x68] sm:$0xff]
      %v372 = vld [vmem:[%s344 + $0x70] sm:$0xff]
      %v373 = vld [vmem:[%s344 + $0x78] sm:$0xff]
      %v374 = vld [vmem:[%s344 + $0x80] sm:$0xff]
      %v375 = vld [vmem:[%s344 + $0x88] sm:$0xff]
      %v376 = vld [vmem:[%s344 + $0x90] sm:$0xff]
      %v377 = vld [vmem:[%s344 + $0x98] sm:$0xff]
      %v378 = vld [vmem:[%s344 + $0xa0] sm:$0xff]
      %v379 = vld [vmem:[%s344 + $0xa8] sm:$0xff]
      %v380 = vld [vmem:[%s344 + $0xb0] sm:$0xff]
      %v381 = vld [vmem:[%s344 + $0xb8] sm:$0xff]
      %v382 = vld [vmem:[%s344 + $0xc0] sm:$0xff]
      %v383 = vld [vmem:[%s344 + $0xc8] sm:$0xff]
      %v384 = vld [vmem:[%s344 + $0xd0] sm:$0xff]
      %v385 = vld [vmem:[%s344 + $0xd8] sm:$0xff]
      %v386 = vld [vmem:[%s344 + $0xe0] sm:$0xff]
      %v387 = vld [vmem:[%s344 + $0xe8] sm:$0xff]
      %v388 = vld [vmem:[%s344 + $0xf0] sm:$0xff]
      %v389 = vld [vmem:[%s344 + $0xf8] sm:$0xff]
      %v390 = vld [vmem:[%s344 + $0x100] sm:$0xff]
      %v391 = vld [vmem:[%s344 + $0x108] sm:$0xff]
      %v392 = vld [vmem:[%s344 + $0x110] sm:$0xff]
      %v393 = vld [vmem:[%s344 + $0x118] sm:$0xff]
      %v394 = vld [vmem:[%s344 + $0x120] sm:$0xff]
      %v395 = vld [vmem:[%s344 + $0x128] sm:$0xff]
      %v396 = vld [vmem:[%s344 + $0x130] sm:$0xff]
      %v397 = vld [vmem:[%s344 + $0x138] sm:$0xff]
      %v398 = vld [vmem:[%s344 + $0x140] sm:$0xff]
      %v399 = vld [vmem:[%s344 + $0x148] sm:$0xff]
      %v400 = vld [vmem:[%s344 + $0x150] sm:$0xff]
      %v401 = vld [vmem:[%s344 + $0x158] sm:$0xff]
      %v402 = vld [vmem:[%s344 + $0x160] sm:$0xff]
      %v403 = vld [vmem:[%s344 + $0x168] sm:$0xff]
      %v404 = vld [vmem:[%s344 + $0x170] sm:$0xff]
      %v405 = vld [vmem:[%s344 + $0x178] sm:$0xff]
      %v406 = vld [vmem:[%s344 + $0x180] sm:$0xff]
      %v407 = vld [vmem:[%s344 + $0x188] sm:$0xff]
      %v408 = vld [vmem:[%s344 + $0x190] sm:$0xff]
      %v409 = vld [vmem:[%s344 + $0x198] sm:$0xff]
      %v410 = vld [vmem:[%s344 + $0x1a0] sm:$0xff]
      %v411 = vld [vmem:[%s344 + $0x1a8] sm:$0xff]
      %v412 = vld [vmem:[%s344 + $0x1b0] sm:$0xff]
      %v413 = vld [vmem:[%s344 + $0x1b8] sm:$0xff]
      %v414 = vld [vmem:[%s344 + $0x1c0] sm:$0xff]
      %v415 = vld [vmem:[%s344 + $0x1c8] sm:$0xff]
      %v416 = vld [vmem:[%s344 + $0x1d0] sm:$0xff]
      %v417 = vld [vmem:[%s344 + $0x1d8] sm:$0xff]
      %v418 = vld [vmem:[%s344 + $0x1e0] sm:$0xff]
      %v419 = vld [vmem:[%s344 + $0x1e8] sm:$0xff]
      %v420 = vld [vmem:[%s344 + $0x1f0] sm:$0xff]
      %v421 = vld [vmem:[%s344 + $0x1f8] sm:$0xff]
      %v422 = vld [vmem:[%s344 + $0x200] sm:$0xff]
      %v423 = vld [vmem:[%s344 + $0x208] sm:$0xff]
      %v424 = vld [vmem:[%s344 + $0x210] sm:$0xff]
      %v425 = vld [vmem:[%s344 + $0x218] sm:$0xff]
      %v426 = vld [vmem:[%s344 + $0x220] sm:$0xff]
      %v427 = vld [vmem:[%s344 + $0x228] sm:$0xff]
      %v428 = vld [vmem:[%s344 + $0x230] sm:$0xff]
      %v429 = vld [vmem:[%s344 + $0x238] sm:$0xff]
      %v430 = vld [vmem:[%s344 + $0x240] sm:$0xff]
      %v431 = vld [vmem:[%s344 + $0x248] sm:$0xff]
      %v432 = vld [vmem:[%s344 + $0x250] sm:$0xff]
      %v433 = vld [vmem:[%s344 + $0x258] sm:$0xff]
      %v434 = vld [vmem:[%s344 + $0x260] sm:$0xff]
      %v435 = vld [vmem:[%s344 + $0x268] sm:$0xff]
      %v436 = vld [vmem:[%s344 + $0x270] sm:$0xff]
      %v437 = vld [vmem:[%s344 + $0x278] sm:$0xff]
      %v438 = vld [vmem:[%s344 + $0x280] sm:$0xff]
      %v439 = vld [vmem:[%s344 + $0x288] sm:$0xff]
      %v440 = vld [vmem:[%s344 + $0x290] sm:$0xff]
      %v441 = vld [vmem:[%s344 + $0x298] sm:$0xff]
      %v442 = vld [vmem:[%s344 + $0x2a0] sm:$0xff]
      %v443 = vld [vmem:[%s344 + $0x2a8] sm:$0xff]
      %v444 = vld [vmem:[%s344 + $0x2b0] sm:$0xff]
      %v445 = vld [vmem:[%s344 + $0x2b8] sm:$0xff]
      %v446 = vld [vmem:[%s344 + $0x2c0] sm:$0xff]
      %v447 = vld [vmem:[%s344 + $0x2c8] sm:$0xff]
      %v448 = vld [vmem:[%s344 + $0x2d0] sm:$0xff]
      %v449 = vld [vmem:[%s344 + $0x2d8] sm:$0xff]
      %v450 = vld [vmem:[%s344 + $0x2e0] sm:$0xff]
      %v451 = vld [vmem:[%s344 + $0x2e8] sm:$0xff]
      %v452 = vld [vmem:[%s344 + $0x2f0] sm:$0xff]
      %v453 = vld [vmem:[%s344 + $0x2f8] sm:$0xff]
      %v454 = vld [vmem:[%s344 + $0x300] sm:$0xff]
      %v455 = vld [vmem:[%s344 + $0x308] sm:$0xff]
      %v456 = vld [vmem:[%s344 + $0x310] sm:$0xff]
      %v457 = vld [vmem:[%s344 + $0x318] sm:$0xff]
      %v458 = vld [vmem:[%s344 + $0x320] sm:$0xff]
      %v459 = vld [vmem:[%s344 + $0x328] sm:$0xff]
      %v460 = vld [vmem:[%s344 + $0x330] sm:$0xff]
      %v461 = vld [vmem:[%s344 + $0x338] sm:$0xff]
      %v462 = vld [vmem:[%s344 + $0x340] sm:$0xff]
      %v463 = vld [vmem:[%s344 + $0x348] sm:$0xff]
      %v464 = vld [vmem:[%s344 + $0x350] sm:$0xff]
      %v465 = vld [vmem:[%s344 + $0x358] sm:$0xff]
      %v466 = vld [vmem:[%s344 + $0x360] sm:$0xff]
      %v467 = vld [vmem:[%s344 + $0x368] sm:$0xff]
      %v468 = vld [vmem:[%s344 + $0x370] sm:$0xff]
      %v469 = vld [vmem:[%s344 + $0x378] sm:$0xff]
      %v470 = vld [vmem:[%s344 + $0x380] sm:$0xff]
      %v471 = vld [vmem:[%s344 + $0x388] sm:$0xff]
      %v472 = vld [vmem:[%s344 + $0x390] sm:$0xff]
      %v473 = vld [vmem:[%s344 + $0x398] sm:$0xff]
      %v474 = vld [vmem:[%s344 + $0x3a0] sm:$0xff]
      %v475 = vld [vmem:[%s344 + $0x3a8] sm:$0xff]
      %v476 = vld [vmem:[%s344 + $0x3b0] sm:$0xff]
      %v477 = vld [vmem:[%s344 + $0x3b8] sm:$0xff]
      %v478 = vld [vmem:[%s344 + $0x3c0] sm:$0xff]
      %v479 = vld [vmem:[%s344 + $0x3c8] sm:$0xff]
      %v480 = vld [vmem:[%s344 + $0x3d0] sm:$0xff]
      %v481 = vld [vmem:[%s344 + $0x3d8] sm:$0xff]
      %v482 = vld [vmem:[%s344 + $0x3e0] sm:$0xff]
      %v483 = vld [vmem:[%s344 + $0x3e8] sm:$0xff]
      %v484 = vld [vmem:[%s344 + $0x3f0] sm:$0xff]
      %v485 = vld [vmem:[%s344 + $0x3f8] sm:$0xff]
      %v486 = vld [vmem:[%s350] sm:$0xff]
      %v487 = vld [vmem:[%s350 + $0x8] sm:$0xff]
      %v488 = vld [vmem:[%s350 + $0x10] sm:$0xff]
      %v489 = vld [vmem:[%s350 + $0x18] sm:$0xff]
      %v490 = vld [vmem:[%s350 + $0x20] sm:$0xff]
      %v491 = vld [vmem:[%s350 + $0x28] sm:$0xff]
      %v492 = vld [vmem:[%s350 + $0x30] sm:$0xff]
      %v493 = vld [vmem:[%s350 + $0x38] sm:$0xff]
      %v494 = vld [vmem:[%s350 + $0x40] sm:$0xff]
      %v495 = vld [vmem:[%s350 + $0x48] sm:$0xff]
      %v496 = vld [vmem:[%s350 + $0x50] sm:$0xff]
      %v497 = vld [vmem:[%s350 + $0x58] sm:$0xff]
      %v498 = vld [vmem:[%s350 + $0x60] sm:$0xff]
      %v499 = vld [vmem:[%s350 + $0x68] sm:$0xff]
      %v500 = vld [vmem:[%s350 + $0x70] sm:$0xff]
      %v501 = vld [vmem:[%s350 + $0x78] sm:$0xff]
      %v502 = vld [vmem:[%s350 + $0x80] sm:$0xff]
      %v503 = vld [vmem:[%s350 + $0x88] sm:$0xff]
      %v504 = vld [vmem:[%s350 + $0x90] sm:$0xff]
      %v505 = vld [vmem:[%s350 + $0x98] sm:$0xff]
      %v506 = vld [vmem:[%s350 + $0xa0] sm:$0xff]
      %v507 = vld [vmem:[%s350 + $0xa8] sm:$0xff]
      %v508 = vld [vmem:[%s350 + $0xb0] sm:$0xff]
      %v509 = vld [vmem:[%s350 + $0xb8] sm:$0xff]
      %v510 = vld [vmem:[%s350 + $0xc0] sm:$0xff]
      %v511 = vld [vmem:[%s350 + $0xc8] sm:$0xff]
      %v512 = vld [vmem:[%s350 + $0xd0] sm:$0xff]
      %v513 = vld [vmem:[%s350 + $0xd8] sm:$0xff]
      %v514 = vld [vmem:[%s350 + $0xe0] sm:$0xff]
      %v515 = vld [vmem:[%s350 + $0xe8] sm:$0xff]
      %v516 = vld [vmem:[%s350 + $0xf0] sm:$0xff]
      %v517 = vld [vmem:[%s350 + $0xf8] sm:$0xff]
      %v518 = vld [vmem:[%s350 + $0x100] sm:$0xff]
      %v519 = vld [vmem:[%s350 + $0x108] sm:$0xff]
      %v520 = vld [vmem:[%s350 + $0x110] sm:$0xff]
      %v521 = vld [vmem:[%s350 + $0x118] sm:$0xff]
      %v522 = vld [vmem:[%s350 + $0x120] sm:$0xff]
      %v523 = vld [vmem:[%s350 + $0x128] sm:$0xff]
      %v524 = vld [vmem:[%s350 + $0x130] sm:$0xff]
      %v525 = vld [vmem:[%s350 + $0x138] sm:$0xff]
      %v526 = vld [vmem:[%s350 + $0x140] sm:$0xff]
      %v527 = vld [vmem:[%s350 + $0x148] sm:$0xff]
      %v528 = vld [vmem:[%s350 + $0x150] sm:$0xff]
      %v529 = vld [vmem:[%s350 + $0x158] sm:$0xff]
      %v530 = vld [vmem:[%s350 + $0x160] sm:$0xff]
      %v531 = vld [vmem:[%s350 + $0x168] sm:$0xff]
      %v532 = vld [vmem:[%s350 + $0x170] sm:$0xff]
      %v533 = vld [vmem:[%s350 + $0x178] sm:$0xff]
      %v534 = vld [vmem:[%s350 + $0x180] sm:$0xff]
      %v535 = vld [vmem:[%s350 + $0x188] sm:$0xff]
      %v536 = vld [vmem:[%s350 + $0x190] sm:$0xff]
      %v537 = vld [vmem:[%s350 + $0x198] sm:$0xff]
      %v538 = vld [vmem:[%s350 + $0x1a0] sm:$0xff]
      %v539 = vld [vmem:[%s350 + $0x1a8] sm:$0xff]
      %v540 = vld [vmem:[%s350 + $0x1b0] sm:$0xff]
      %v541 = vld [vmem:[%s350 + $0x1b8] sm:$0xff]
      %v542 = vld [vmem:[%s350 + $0x1c0] sm:$0xff]
      %v543 = vld [vmem:[%s350 + $0x1c8] sm:$0xff]
      %v544 = vld [vmem:[%s350 + $0x1d0] sm:$0xff]
      %v545 = vld [vmem:[%s350 + $0x1d8] sm:$0xff]
      %v546 = vld [vmem:[%s350 + $0x1e0] sm:$0xff]
      %v547 = vld [vmem:[%s350 + $0x1e8] sm:$0xff]
      %v548 = vld [vmem:[%s350 + $0x1f0] sm:$0xff]
      %v549 = vld [vmem:[%s350 + $0x1f8] sm:$0xff]
      %v550 = vld [vmem:[%s350 + $0x200] sm:$0xff]
      %v551 = vld [vmem:[%s350 + $0x208] sm:$0xff]
      %v552 = vld [vmem:[%s350 + $0x210] sm:$0xff]
      %v553 = vld [vmem:[%s350 + $0x218] sm:$0xff]
      %v554 = vld [vmem:[%s350 + $0x220] sm:$0xff]
      %v555 = vld [vmem:[%s350 + $0x228] sm:$0xff]
      %v556 = vld [vmem:[%s350 + $0x230] sm:$0xff]
      %v557 = vld [vmem:[%s350 + $0x238] sm:$0xff]
      %v558 = vld [vmem:[%s350 + $0x240] sm:$0xff]
      %v559 = vld [vmem:[%s350 + $0x248] sm:$0xff]
      %v560 = vld [vmem:[%s350 + $0x250] sm:$0xff]
      %v561 = vld [vmem:[%s350 + $0x258] sm:$0xff]
      %v562 = vld [vmem:[%s350 + $0x260] sm:$0xff]
      %v563 = vld [vmem:[%s350 + $0x268] sm:$0xff]
      %v564 = vld [vmem:[%s350 + $0x270] sm:$0xff]
      %v565 = vld [vmem:[%s350 + $0x278] sm:$0xff]
      %v566 = vld [vmem:[%s350 + $0x280] sm:$0xff]
      %v567 = vld [vmem:[%s350 + $0x288] sm:$0xff]
      %v568 = vld [vmem:[%s350 + $0x290] sm:$0xff]
      %v569 = vld [vmem:[%s350 + $0x298] sm:$0xff]
      %v570 = vld [vmem:[%s350 + $0x2a0] sm:$0xff]
      %v571 = vld [vmem:[%s350 + $0x2a8] sm:$0xff]
      %v572 = vld [vmem:[%s350 + $0x2b0] sm:$0xff]
      %v573 = vld [vmem:[%s350 + $0x2b8] sm:$0xff]
      %v574 = vld [vmem:[%s350 + $0x2c0] sm:$0xff]
      %v575 = vld [vmem:[%s350 + $0x2c8] sm:$0xff]
      %v576 = vld [vmem:[%s350 + $0x2d0] sm:$0xff]
      %v577 = vld [vmem:[%s350 + $0x2d8] sm:$0xff]
      %v578 = vld [vmem:[%s350 + $0x2e0] sm:$0xff]
      %v579 = vld [vmem:[%s350 + $0x2e8] sm:$0xff]
      %v580 = vld [vmem:[%s350 + $0x2f0] sm:$0xff]
      %v581 = vld [vmem:[%s350 + $0x2f8] sm:$0xff]
      %v582 = vld [vmem:[%s350 + $0x300] sm:$0xff]
      %v583 = vld [vmem:[%s350 + $0x308] sm:$0xff]
      %v584 = vld [vmem:[%s350 + $0x310] sm:$0xff]
      %v585 = vld [vmem:[%s350 + $0x318] sm:$0xff]
      %v586 = vld [vmem:[%s350 + $0x320] sm:$0xff]
      %v587 = vld [vmem:[%s350 + $0x328] sm:$0xff]
      %v588 = vld [vmem:[%s350 + $0x330] sm:$0xff]
      %v589 = vld [vmem:[%s350 + $0x338] sm:$0xff]
      %v590 = vld [vmem:[%s350 + $0x340] sm:$0xff]
      %v591 = vld [vmem:[%s350 + $0x348] sm:$0xff]
      %v592 = vld [vmem:[%s350 + $0x350] sm:$0xff]
      %v593 = vld [vmem:[%s350 + $0x358] sm:$0xff]
      %v594 = vld [vmem:[%s350 + $0x360] sm:$0xff]
      %v595 = vld [vmem:[%s350 + $0x368] sm:$0xff]
      %v596 = vld [vmem:[%s350 + $0x370] sm:$0xff]
      %v597 = vld [vmem:[%s350 + $0x378] sm:$0xff]
      %v598 = vld [vmem:[%s350 + $0x380] sm:$0xff]
      %v599 = vld [vmem:[%s350 + $0x388] sm:$0xff]
      %v600 = vld [vmem:[%s350 + $0x390] sm:$0xff]
      %v601 = vld [vmem:[%s350 + $0x398] sm:$0xff]
      %v602 = vld [vmem:[%s350 + $0x3a0] sm:$0xff]
      %v603 = vld [vmem:[%s350 + $0x3a8] sm:$0xff]
      %v604 = vld [vmem:[%s350 + $0x3b0] sm:$0xff]
      %v605 = vld [vmem:[%s350 + $0x3b8] sm:$0xff]
      %v606 = vld [vmem:[%s350 + $0x3c0] sm:$0xff]
      %v607 = vld [vmem:[%s350 + $0x3c8] sm:$0xff]
      %v608 = vld [vmem:[%s350 + $0x3d0] sm:$0xff]
      %v609 = vld [vmem:[%s350 + $0x3d8] sm:$0xff]
      %v610 = vld [vmem:[%s350 + $0x3e0] sm:$0xff]
      %v611 = vld [vmem:[%s350 + $0x3e8] sm:$0xff]
      %v612 = vld [vmem:[%s350 + $0x3f0] sm:$0xff]
      %v613 = vld [vmem:[%s350 + $0x3f8] sm:$0xff]
      %v614 = vld [vmem:[%s2] sm:$0xff]
      %v615 = vld [vmem:[%s2 + $0x8] sm:$0xff]
      %v616 = vld [vmem:[%s2 + $0x10] sm:$0xff]
      %v617 = vld [vmem:[%s2 + $0x18] sm:$0xff]
      %v618 = vld [vmem:[%s2 + $0x20] sm:$0xff]
      %v619 = vld [vmem:[%s2 + $0x28] sm:$0xff]
      %v620 = vld [vmem:[%s2 + $0x30] sm:$0xff]
      %v621 = vld [vmem:[%s2 + $0x38] sm:$0xff]
      %v622 = vld [vmem:[%s2 + $0x40] sm:$0xff]
      %v623 = vld [vmem:[%s2 + $0x48] sm:$0xff]
      %v624 = vld [vmem:[%s2 + $0x50] sm:$0xff]
      %v625 = vld [vmem:[%s2 + $0x58] sm:$0xff]
      %v626 = vld [vmem:[%s2 + $0x60] sm:$0xff]
      %v627 = vld [vmem:[%s2 + $0x68] sm:$0xff]
      %v628 = vld [vmem:[%s2 + $0x70] sm:$0xf]
      %v629 = vld [vmem:[%s2 + $0x78] sm:$0xf]
      %v630 = vld [vmem:[%s3] sm:$0x3]
      %v632 = vperm.slane %v630, 0
      %v633 = vperm.slane %v630, 1
      %vm636 = vcmask 490496
      %v638 = vsel %vm636, %v358, 0
      %v641 = vsel %vm636, %v359, 0
      %v644 = vsel %vm636, %v360, 0
      %v647 = vsel %vm636, %v361, 0
      %v650 = vsel %vm636, %v362, 0
      %v653 = vsel %vm636, %v363, 0
      %v656 = vsel %vm636, %v364, 0
      %v659 = vsel %vm636, %v365, 0
      %v662 = vsel %vm636, %v366, 0
      %v665 = vsel %vm636, %v367, 0
      %v668 = vsel %vm636, %v368, 0
      %v671 = vsel %vm636, %v369, 0
      %v674 = vsel %vm636, %v370, 0
      %v677 = vsel %vm636, %v371, 0
      %v680 = vsel %vm636, %v372, 0
      %v683 = vsel %vm636, %v373, 0
      %v686 = vsel %vm636, %v374, 0
      %v689 = vsel %vm636, %v375, 0
      %v692 = vsel %vm636, %v376, 0
      %v695 = vsel %vm636, %v377, 0
      %v698 = vsel %vm636, %v378, 0
      %v701 = vsel %vm636, %v379, 0
      %v704 = vsel %vm636, %v380, 0
      %v707 = vsel %vm636, %v381, 0
      %v710 = vsel %vm636, %v382, 0
      %v713 = vsel %vm636, %v383, 0
      %v716 = vsel %vm636, %v384, 0
      %v719 = vsel %vm636, %v385, 0
      %v722 = vsel %vm636, %v386, 0
      %v725 = vsel %vm636, %v387, 0
      %v728 = vsel %vm636, %v388, 0
      %v731 = vsel %vm636, %v389, 0
      %v734 = vsel %vm636, %v390, 0
      %v737 = vsel %vm636, %v391, 0
      %v740 = vsel %vm636, %v392, 0
      %v743 = vsel %vm636, %v393, 0
      %v746 = vsel %vm636, %v394, 0
      %v749 = vsel %vm636, %v395, 0
      %v752 = vsel %vm636, %v396, 0
      %v755 = vsel %vm636, %v397, 0
      %v758 = vsel %vm636, %v398, 0
      %v761 = vsel %vm636, %v399, 0
      %v764 = vsel %vm636, %v400, 0
      %v767 = vsel %vm636, %v401, 0
      %v770 = vsel %vm636, %v402, 0
      %v773 = vsel %vm636, %v403, 0
      %v776 = vsel %vm636, %v404, 0
      %v779 = vsel %vm636, %v405, 0
      %v782 = vsel %vm636, %v406, 0
      %v785 = vsel %vm636, %v407, 0
      %v788 = vsel %vm636, %v408, 0
      %v791 = vsel %vm636, %v409, 0
      %v794 = vsel %vm636, %v410, 0
      %v797 = vsel %vm636, %v411, 0
      %v800 = vsel %vm636, %v412, 0
      %v803 = vsel %vm636, %v413, 0
      %v806 = vsel %vm636, %v414, 0
      %v809 = vsel %vm636, %v415, 0
      %v812 = vsel %vm636, %v416, 0
      %v815 = vsel %vm636, %v417, 0
      %v818 = vsel %vm636, %v418, 0
      %v821 = vsel %vm636, %v419, 0
      %v824 = vsel %vm636, %v420, 0
      %v827 = vsel %vm636, %v421, 0
      %v830 = vsel %vm636, %v422, 0
      %v833 = vsel %vm636, %v423, 0
      %v836 = vsel %vm636, %v424, 0
      %v839 = vsel %vm636, %v425, 0
      %v842 = vsel %vm636, %v426, 0
      %v845 = vsel %vm636, %v427, 0
      %v848 = vsel %vm636, %v428, 0
      %v851 = vsel %vm636, %v429, 0
      %v854 = vsel %vm636, %v430, 0
      %v857 = vsel %vm636, %v431, 0
      %v860 = vsel %vm636, %v432, 0
      %v863 = vsel %vm636, %v433, 0
      %v866 = vsel %vm636, %v434, 0
      %v869 = vsel %vm636, %v435, 0
      %v872 = vsel %vm636, %v436, 0
      %v875 = vsel %vm636, %v437, 0
      %v878 = vsel %vm636, %v438, 0
      %v881 = vsel %vm636, %v439, 0
      %v884 = vsel %vm636, %v440, 0
      %v887 = vsel %vm636, %v441, 0
      %v890 = vsel %vm636, %v442, 0
      %v893 = vsel %vm636, %v443, 0
      %v896 = vsel %vm636, %v444, 0
      %v899 = vsel %vm636, %v445, 0
      %v902 = vsel %vm636, %v446, 0
      %v905 = vsel %vm636, %v447, 0
      %v908 = vsel %vm636, %v448, 0
      %v911 = vsel %vm636, %v449, 0
      %v914 = vsel %vm636, %v450, 0
      %v917 = vsel %vm636, %v451, 0
      %v920 = vsel %vm636, %v452, 0
      %v923 = vsel %vm636, %v453, 0
      %v926 = vsel %vm636, %v454, 0
      %v929 = vsel %vm636, %v455, 0
      %v932 = vsel %vm636, %v456, 0
      %v935 = vsel %vm636, %v457, 0
      %v938 = vsel %vm636, %v458, 0
      %v941 = vsel %vm636, %v459, 0
      %v944 = vsel %vm636, %v460, 0
      %v947 = vsel %vm636, %v461, 0
      %v950 = vsel %vm636, %v462, 0
      %v953 = vsel %vm636, %v463, 0
      %v956 = vsel %vm636, %v464, 0
      %v959 = vsel %vm636, %v465, 0
      %v962 = vsel %vm636, %v466, 0
      %v965 = vsel %vm636, %v467, 0
      %v968 = vsel %vm636, %v468, 0
      %v971 = vsel %vm636, %v469, 0
      %v974 = vsel %vm636, %v470, 0
      %v977 = vsel %vm636, %v471, 0
      %v980 = vsel %vm636, %v472, 0
      %v983 = vsel %vm636, %v473, 0
      %v986 = vsel %vm636, %v474, 0
      %v989 = vsel %vm636, %v475, 0
      %v992 = vsel %vm636, %v476, 0
      %v995 = vsel %vm636, %v477, 0
      %v998 = vsel %vm636, %v478, 0
      %v1001 = vsel %vm636, %v479, 0
      %v1004 = vsel %vm636, %v480, 0
      %v1007 = vsel %vm636, %v481, 0
      %v1010 = vsel %vm636, %v482, 0
      %v1013 = vsel %vm636, %v483, 0
      %v1016 = vsel %vm636, %v484, 0
      %v1019 = vsel %vm636, %v485, 0
      %vm1021 = vcmask 1043456
      %v1023 = vsel %vm1021, %v628, 0
      %v1026 = vsel %vm1021, %v629, 0
      %1028 = vmatpush.msra.mxu0 0.0
      %1029 = vmatpush.msra.mxu0 0.0
      %1030 = vmatpush.msra.mxu0 0.0
      %1031 = vmatpush.msra.mxu0 0.0
      %1032 = vmatpush.msra.mxu0 0.0
      %1033 = vmatpush.msra.mxu0 0.0
      %1034 = vmatpush.msra.mxu0 0.0
      %1035 = vmatpush.msra.mxu0 0.0
      %1036 = vmatpush.msra.mxu0 %v1023
      %1037 = vmatpush.msra.mxu0 %v626
      %1038 = vmatpush.msra.mxu0 %v624
      %1039 = vmatpush.msra.mxu0 %v622
      %1040 = vmatpush.msra.mxu0 %v620
      %1041 = vmatpush.msra.mxu0 %v618
      %1042 = vmatpush.msra.mxu0 %v616
      %1043 = vmatpush.msra.mxu0 %v614
      %1044 = vmatmul.f32.gmra.mxu0 %v638
      %v1045 = vpop.f32.mrf.mxu0
      %v1046 = vadd.f32 %v632, %v1045
      %1047 = vmatmul.f32.gmra.mxu0 %v641
      %v1048 = vpop.f32.mrf.mxu0
      %v1049 = vadd.f32 %v632, %v1048
      %1050 = vmatmul.f32.gmra.mxu0 %v644
      %v1051 = vpop.f32.mrf.mxu0
      %v1052 = vadd.f32 %v632, %v1051
      %1053 = vmatmul.f32.gmra.mxu0 %v647
      %v1054 = vpop.f32.mrf.mxu0
      %v1055 = vadd.f32 %v632, %v1054
      %1056 = vmatmul.f32.gmra.mxu0 %v650
      %v1057 = vpop.f32.mrf.mxu0
      %v1058 = vadd.f32 %v632, %v1057
      %1059 = vmatmul.f32.gmra.mxu0 %v653
      %v1060 = vpop.f32.mrf.mxu0
      %v1061 = vadd.f32 %v632, %v1060
      %1062 = vmatmul.f32.gmra.mxu0 %v656
      %v1063 = vpop.f32.mrf.mxu0
      %v1064 = vadd.f32 %v632, %v1063
      %1065 = vmatmul.f32.gmra.mxu0 %v659
      %v1066 = vpop.f32.mrf.mxu0
      %v1067 = vadd.f32 %v632, %v1066
      %1068 = vmatmul.f32.gmra.mxu0 %v662
      %v1069 = vpop.f32.mrf.mxu0
      %v1070 = vadd.f32 %v632, %v1069
      %1071 = vmatmul.f32.gmra.mxu0 %v665
      %v1072 = vpop.f32.mrf.mxu0
      %v1073 = vadd.f32 %v632, %v1072
      %1074 = vmatmul.f32.gmra.mxu0 %v668
      %v1075 = vpop.f32.mrf.mxu0
      %v1076 = vadd.f32 %v632, %v1075
      %1077 = vmatmul.f32.gmra.mxu0 %v671
      %v1078 = vpop.f32.mrf.mxu0
      %v1079 = vadd.f32 %v632, %v1078
      %1080 = vmatmul.f32.gmra.mxu0 %v674
      %v1081 = vpop.f32.mrf.mxu0
      %v1082 = vadd.f32 %v632, %v1081
      %1083 = vmatmul.f32.gmra.mxu0 %v677
      %v1084 = vpop.f32.mrf.mxu0
      %v1085 = vadd.f32 %v632, %v1084
      %1086 = vmatmul.f32.gmra.mxu0 %v680
      %v1087 = vpop.f32.mrf.mxu0
      %v1088 = vadd.f32 %v632, %v1087
      %1089 = vmatmul.f32.gmra.mxu0 %v683
      %v1090 = vpop.f32.mrf.mxu0
      %v1091 = vadd.f32 %v632, %v1090
      %1092 = vmatmul.f32.gmra.mxu0 %v686
      %v1093 = vpop.f32.mrf.mxu0
      %v1094 = vadd.f32 %v632, %v1093
      %1095 = vmatmul.f32.gmra.mxu0 %v689
      %v1096 = vpop.f32.mrf.mxu0
      %v1097 = vadd.f32 %v632, %v1096
      %1098 = vmatmul.f32.gmra.mxu0 %v692
      %v1099 = vpop.f32.mrf.mxu0
      %v1100 = vadd.f32 %v632, %v1099
      %1101 = vmatmul.f32.gmra.mxu0 %v695
      %v1102 = vpop.f32.mrf.mxu0
      %v1103 = vadd.f32 %v632, %v1102
      %1104 = vmatmul.f32.gmra.mxu0 %v698
      %v1105 = vpop.f32.mrf.mxu0
      %v1106 = vadd.f32 %v632, %v1105
      %1107 = vmatmul.f32.gmra.mxu0 %v701
      %v1108 = vpop.f32.mrf.mxu0
      %v1109 = vadd.f32 %v632, %v1108
      %1110 = vmatmul.f32.gmra.mxu0 %v704
      %v1111 = vpop.f32.mrf.mxu0
      %v1112 = vadd.f32 %v632, %v1111
      %1113 = vmatmul.f32.gmra.mxu0 %v707
      %v1114 = vpop.f32.mrf.mxu0
      %v1115 = vadd.f32 %v632, %v1114
      %1116 = vmatmul.f32.gmra.mxu0 %v710
      %v1117 = vpop.f32.mrf.mxu0
      %v1118 = vadd.f32 %v632, %v1117
      %1119 = vmatmul.f32.gmra.mxu0 %v713
      %v1120 = vpop.f32.mrf.mxu0
      %v1121 = vadd.f32 %v632, %v1120
      %1122 = vmatmul.f32.gmra.mxu0 %v716
      %v1123 = vpop.f32.mrf.mxu0
      %v1124 = vadd.f32 %v632, %v1123
      %1125 = vmatmul.f32.gmra.mxu0 %v719
      %v1126 = vpop.f32.mrf.mxu0
      %v1127 = vadd.f32 %v632, %v1126
      %1128 = vmatmul.f32.gmra.mxu0 %v722
      %v1129 = vpop.f32.mrf.mxu0
      %v1130 = vadd.f32 %v632, %v1129
      %1131 = vmatmul.f32.gmra.mxu0 %v725
      %v1132 = vpop.f32.mrf.mxu0
      %v1133 = vadd.f32 %v632, %v1132
      %1134 = vmatmul.f32.gmra.mxu0 %v728
      %v1135 = vpop.f32.mrf.mxu0
      %v1136 = vadd.f32 %v632, %v1135
      %1137 = vmatmul.f32.gmra.mxu0 %v731
      %v1138 = vpop.f32.mrf.mxu0
      %v1139 = vadd.f32 %v632, %v1138
      %1140 = vmatmul.f32.gmra.mxu0 %v734
      %v1141 = vpop.f32.mrf.mxu0
      %v1142 = vadd.f32 %v632, %v1141
      %1143 = vmatmul.f32.gmra.mxu0 %v737
      %v1144 = vpop.f32.mrf.mxu0
      %v1145 = vadd.f32 %v632, %v1144
      %1146 = vmatmul.f32.gmra.mxu0 %v740
      %v1147 = vpop.f32.mrf.mxu0
      %v1148 = vadd.f32 %v632, %v1147
      %1149 = vmatmul.f32.gmra.mxu0 %v743
      %v1150 = vpop.f32.mrf.mxu0
      %v1151 = vadd.f32 %v632, %v1150
      %1152 = vmatmul.f32.gmra.mxu0 %v746
      %v1153 = vpop.f32.mrf.mxu0
      %v1154 = vadd.f32 %v632, %v1153
      %1155 = vmatmul.f32.gmra.mxu0 %v749
      %v1156 = vpop.f32.mrf.mxu0
      %v1157 = vadd.f32 %v632, %v1156
      %1158 = vmatmul.f32.gmra.mxu0 %v752
      %v1159 = vpop.f32.mrf.mxu0
      %v1160 = vadd.f32 %v632, %v1159
      %1161 = vmatmul.f32.gmra.mxu0 %v755
      %v1162 = vpop.f32.mrf.mxu0
      %v1163 = vadd.f32 %v632, %v1162
      %1164 = vmatmul.f32.gmra.mxu0 %v758
      %v1165 = vpop.f32.mrf.mxu0
      %v1166 = vadd.f32 %v632, %v1165
      %1167 = vmatmul.f32.gmra.mxu0 %v761
      %v1168 = vpop.f32.mrf.mxu0
      %v1169 = vadd.f32 %v632, %v1168
      %1170 = vmatmul.f32.gmra.mxu0 %v764
      %v1171 = vpop.f32.mrf.mxu0
      %v1172 = vadd.f32 %v632, %v1171
      %1173 = vmatmul.f32.gmra.mxu0 %v767
      %v1174 = vpop.f32.mrf.mxu0
      %v1175 = vadd.f32 %v632, %v1174
      %1176 = vmatmul.f32.gmra.mxu0 %v770
      %v1177 = vpop.f32.mrf.mxu0
      %v1178 = vadd.f32 %v632, %v1177
      %1179 = vmatmul.f32.gmra.mxu0 %v773
      %v1180 = vpop.f32.mrf.mxu0
      %v1181 = vadd.f32 %v632, %v1180
      %1182 = vmatmul.f32.gmra.mxu0 %v776
      %v1183 = vpop.f32.mrf.mxu0
      %v1184 = vadd.f32 %v632, %v1183
      %1185 = vmatmul.f32.gmra.mxu0 %v779
      %v1186 = vpop.f32.mrf.mxu0
      %v1187 = vadd.f32 %v632, %v1186
      %1188 = vmatmul.f32.gmra.mxu0 %v782
      %v1189 = vpop.f32.mrf.mxu0
      %v1190 = vadd.f32 %v632, %v1189
      %1191 = vmatmul.f32.gmra.mxu0 %v785
      %v1192 = vpop.f32.mrf.mxu0
      %v1193 = vadd.f32 %v632, %v1192
      %1194 = vmatmul.f32.gmra.mxu0 %v788
      %v1195 = vpop.f32.mrf.mxu0
      %v1196 = vadd.f32 %v632, %v1195
      %1197 = vmatmul.f32.gmra.mxu0 %v791
      %v1198 = vpop.f32.mrf.mxu0
      %v1199 = vadd.f32 %v632, %v1198
      %1200 = vmatmul.f32.gmra.mxu0 %v794
      %v1201 = vpop.f32.mrf.mxu0
      %v1202 = vadd.f32 %v632, %v1201
      %1203 = vmatmul.f32.gmra.mxu0 %v797
      %v1204 = vpop.f32.mrf.mxu0
      %v1205 = vadd.f32 %v632, %v1204
      %1206 = vmatmul.f32.gmra.mxu0 %v800
      %v1207 = vpop.f32.mrf.mxu0
      %v1208 = vadd.f32 %v632, %v1207
      %1209 = vmatmul.f32.gmra.mxu0 %v803
      %v1210 = vpop.f32.mrf.mxu0
      %v1211 = vadd.f32 %v632, %v1210
      %1212 = vmatmul.f32.gmra.mxu0 %v806
      %v1213 = vpop.f32.mrf.mxu0
      %v1214 = vadd.f32 %v632, %v1213
      %1215 = vmatmul.f32.gmra.mxu0 %v809
      %v1216 = vpop.f32.mrf.mxu0
      %v1217 = vadd.f32 %v632, %v1216
      %1218 = vmatmul.f32.gmra.mxu0 %v812
      %v1219 = vpop.f32.mrf.mxu0
      %v1220 = vadd.f32 %v632, %v1219
      %1221 = vmatmul.f32.gmra.mxu0 %v815
      %v1222 = vpop.f32.mrf.mxu0
      %v1223 = vadd.f32 %v632, %v1222
      %1224 = vmatmul.f32.gmra.mxu0 %v818
      %v1225 = vpop.f32.mrf.mxu0
      %v1226 = vadd.f32 %v632, %v1225
      %1227 = vmatmul.f32.gmra.mxu0 %v821
      %v1228 = vpop.f32.mrf.mxu0
      %v1229 = vadd.f32 %v632, %v1228
      %1230 = vmatmul.f32.gmra.mxu0 %v824
      %v1231 = vpop.f32.mrf.mxu0
      %v1232 = vadd.f32 %v632, %v1231
      %1233 = vmatmul.f32.gmra.mxu0 %v827
      %v1234 = vpop.f32.mrf.mxu0
      %v1235 = vadd.f32 %v632, %v1234
      %1236 = vmatmul.f32.gmra.mxu0 %v830
      %v1237 = vpop.f32.mrf.mxu0
      %v1238 = vadd.f32 %v632, %v1237
      %1239 = vmatmul.f32.gmra.mxu0 %v833
      %v1240 = vpop.f32.mrf.mxu0
      %v1241 = vadd.f32 %v632, %v1240
      %1242 = vmatmul.f32.gmra.mxu0 %v836
      %v1243 = vpop.f32.mrf.mxu0
      %v1244 = vadd.f32 %v632, %v1243
      %1245 = vmatmul.f32.gmra.mxu0 %v839
      %v1246 = vpop.f32.mrf.mxu0
      %v1247 = vadd.f32 %v632, %v1246
      %1248 = vmatmul.f32.gmra.mxu0 %v842
      %v1249 = vpop.f32.mrf.mxu0
      %v1250 = vadd.f32 %v632, %v1249
      %1251 = vmatmul.f32.gmra.mxu0 %v845
      %v1252 = vpop.f32.mrf.mxu0
      %v1253 = vadd.f32 %v632, %v1252
      %1254 = vmatmul.f32.gmra.mxu0 %v848
      %v1255 = vpop.f32.mrf.mxu0
      %v1256 = vadd.f32 %v632, %v1255
      %1257 = vmatmul.f32.gmra.mxu0 %v851
      %v1258 = vpop.f32.mrf.mxu0
      %v1259 = vadd.f32 %v632, %v1258
      %1260 = vmatmul.f32.gmra.mxu0 %v854
      %v1261 = vpop.f32.mrf.mxu0
      %v1262 = vadd.f32 %v632, %v1261
      %1263 = vmatmul.f32.gmra.mxu0 %v857
      %v1264 = vpop.f32.mrf.mxu0
      %v1265 = vadd.f32 %v632, %v1264
      %1266 = vmatmul.f32.gmra.mxu0 %v860
      %v1267 = vpop.f32.mrf.mxu0
      %v1268 = vadd.f32 %v632, %v1267
      %1269 = vmatmul.f32.gmra.mxu0 %v863
      %v1270 = vpop.f32.mrf.mxu0
      %v1271 = vadd.f32 %v632, %v1270
      %1272 = vmatmul.f32.gmra.mxu0 %v866
      %v1273 = vpop.f32.mrf.mxu0
      %v1274 = vadd.f32 %v632, %v1273
      %1275 = vmatmul.f32.gmra.mxu0 %v869
      %v1276 = vpop.f32.mrf.mxu0
      %v1277 = vadd.f32 %v632, %v1276
      %1278 = vmatmul.f32.gmra.mxu0 %v872
      %v1279 = vpop.f32.mrf.mxu0
      %v1280 = vadd.f32 %v632, %v1279
      %1281 = vmatmul.f32.gmra.mxu0 %v875
      %v1282 = vpop.f32.mrf.mxu0
      %v1283 = vadd.f32 %v632, %v1282
      %1284 = vmatmul.f32.gmra.mxu0 %v878
      %v1285 = vpop.f32.mrf.mxu0
      %v1286 = vadd.f32 %v632, %v1285
      %1287 = vmatmul.f32.gmra.mxu0 %v881
      %v1288 = vpop.f32.mrf.mxu0
      %v1289 = vadd.f32 %v632, %v1288
      %1290 = vmatmul.f32.gmra.mxu0 %v884
      %v1291 = vpop.f32.mrf.mxu0
      %v1292 = vadd.f32 %v632, %v1291
      %1293 = vmatmul.f32.gmra.mxu0 %v887
      %v1294 = vpop.f32.mrf.mxu0
      %v1295 = vadd.f32 %v632, %v1294
      %1296 = vmatmul.f32.gmra.mxu0 %v890
      %v1297 = vpop.f32.mrf.mxu0
      %v1298 = vadd.f32 %v632, %v1297
      %1299 = vmatmul.f32.gmra.mxu0 %v893
      %v1300 = vpop.f32.mrf.mxu0
      %v1301 = vadd.f32 %v632, %v1300
      %1302 = vmatmul.f32.gmra.mxu0 %v896
      %v1303 = vpop.f32.mrf.mxu0
      %v1304 = vadd.f32 %v632, %v1303
      %1305 = vmatmul.f32.gmra.mxu0 %v899
      %v1306 = vpop.f32.mrf.mxu0
      %v1307 = vadd.f32 %v632, %v1306
      %1308 = vmatmul.f32.gmra.mxu0 %v902
      %v1309 = vpop.f32.mrf.mxu0
      %v1310 = vadd.f32 %v632, %v1309
      %1311 = vmatmul.f32.gmra.mxu0 %v905
      %v1312 = vpop.f32.mrf.mxu0
      %v1313 = vadd.f32 %v632, %v1312
      %1314 = vmatmul.f32.gmra.mxu0 %v908
      %v1315 = vpop.f32.mrf.mxu0
      %v1316 = vadd.f32 %v632, %v1315
      %1317 = vmatmul.f32.gmra.mxu0 %v911
      %v1318 = vpop.f32.mrf.mxu0
      %v1319 = vadd.f32 %v632, %v1318
      %1320 = vmatmul.f32.gmra.mxu0 %v914
      %v1321 = vpop.f32.mrf.mxu0
      %v1322 = vadd.f32 %v632, %v1321
      %1323 = vmatmul.f32.gmra.mxu0 %v917
      %v1324 = vpop.f32.mrf.mxu0
      %v1325 = vadd.f32 %v632, %v1324
      %1326 = vmatmul.f32.gmra.mxu0 %v920
      %v1327 = vpop.f32.mrf.mxu0
      %v1328 = vadd.f32 %v632, %v1327
      %1329 = vmatmul.f32.gmra.mxu0 %v923
      %v1330 = vpop.f32.mrf.mxu0
      %v1331 = vadd.f32 %v632, %v1330
      %1332 = vmatmul.f32.gmra.mxu0 %v926
      %v1333 = vpop.f32.mrf.mxu0
      %v1334 = vadd.f32 %v632, %v1333
      %1335 = vmatmul.f32.gmra.mxu0 %v929
      %v1336 = vpop.f32.mrf.mxu0
      %v1337 = vadd.f32 %v632, %v1336
      %1338 = vmatmul.f32.gmra.mxu0 %v932
      %v1339 = vpop.f32.mrf.mxu0
      %v1340 = vadd.f32 %v632, %v1339
      %1341 = vmatmul.f32.gmra.mxu0 %v935
      %v1342 = vpop.f32.mrf.mxu0
      %v1343 = vadd.f32 %v632, %v1342
      %1344 = vmatmul.f32.gmra.mxu0 %v938
      %v1345 = vpop.f32.mrf.mxu0
      %v1346 = vadd.f32 %v632, %v1345
      %1347 = vmatmul.f32.gmra.mxu0 %v941
      %v1348 = vpop.f32.mrf.mxu0
      %v1349 = vadd.f32 %v632, %v1348
      %1350 = vmatmul.f32.gmra.mxu0 %v944
      %v1351 = vpop.f32.mrf.mxu0
      %v1352 = vadd.f32 %v632, %v1351
      %1353 = vmatmul.f32.gmra.mxu0 %v947
      %v1354 = vpop.f32.mrf.mxu0
      %v1355 = vadd.f32 %v632, %v1354
      %1356 = vmatmul.f32.gmra.mxu0 %v950
      %v1357 = vpop.f32.mrf.mxu0
      %v1358 = vadd.f32 %v632, %v1357
      %1359 = vmatmul.f32.gmra.mxu0 %v953
      %v1360 = vpop.f32.mrf.mxu0
      %v1361 = vadd.f32 %v632, %v1360
      %1362 = vmatmul.f32.gmra.mxu0 %v956
      %v1363 = vpop.f32.mrf.mxu0
      %v1364 = vadd.f32 %v632, %v1363
      %1365 = vmatmul.f32.gmra.mxu0 %v959
      %v1366 = vpop.f32.mrf.mxu0
      %v1367 = vadd.f32 %v632, %v1366
      %1368 = vmatmul.f32.gmra.mxu0 %v962
      %v1369 = vpop.f32.mrf.mxu0
      %v1370 = vadd.f32 %v632, %v1369
      %1371 = vmatmul.f32.gmra.mxu0 %v965
      %v1372 = vpop.f32.mrf.mxu0
      %v1373 = vadd.f32 %v632, %v1372
      %1374 = vmatmul.f32.gmra.mxu0 %v968
      %v1375 = vpop.f32.mrf.mxu0
      %v1376 = vadd.f32 %v632, %v1375
      %1377 = vmatmul.f32.gmra.mxu0 %v971
      %v1378 = vpop.f32.mrf.mxu0
      %v1379 = vadd.f32 %v632, %v1378
      %1380 = vmatmul.f32.gmra.mxu0 %v974
      %v1381 = vpop.f32.mrf.mxu0
      %v1382 = vadd.f32 %v632, %v1381
      %1383 = vmatmul.f32.gmra.mxu0 %v977
      %v1384 = vpop.f32.mrf.mxu0
      %v1385 = vadd.f32 %v632, %v1384
      %1386 = vmatmul.f32.gmra.mxu0 %v980
      %v1387 = vpop.f32.mrf.mxu0
      %v1388 = vadd.f32 %v632, %v1387
      %1389 = vmatmul.f32.gmra.mxu0 %v983
      %v1390 = vpop.f32.mrf.mxu0
      %v1391 = vadd.f32 %v632, %v1390
      %1392 = vmatmul.f32.gmra.mxu0 %v986
      %v1393 = vpop.f32.mrf.mxu0
      %v1394 = vadd.f32 %v632, %v1393
      %1395 = vmatmul.f32.gmra.mxu0 %v989
      %v1396 = vpop.f32.mrf.mxu0
      %v1397 = vadd.f32 %v632, %v1396
      %1398 = vmatmul.f32.gmra.mxu0 %v992
      %v1399 = vpop.f32.mrf.mxu0
      %v1400 = vadd.f32 %v632, %v1399
      %1401 = vmatmul.f32.gmra.mxu0 %v995
      %v1402 = vpop.f32.mrf.mxu0
      %v1403 = vadd.f32 %v632, %v1402
      %1404 = vmatmul.f32.gmra.mxu0 %v998
      %v1405 = vpop.f32.mrf.mxu0
      %v1406 = vadd.f32 %v632, %v1405
      %1407 = vmatmul.f32.gmra.mxu0 %v1001
      %v1408 = vpop.f32.mrf.mxu0
      %v1409 = vadd.f32 %v632, %v1408
      %1410 = vmatmul.f32.gmra.mxu0 %v1004
      %v1411 = vpop.f32.mrf.mxu0
      %v1412 = vadd.f32 %v632, %v1411
      %1413 = vmatmul.f32.gmra.mxu0 %v1007
      %v1414 = vpop.f32.mrf.mxu0
      %v1415 = vadd.f32 %v632, %v1414
      %1416 = vmatmul.f32.gmra.mxu0 %v1010
      %v1417 = vpop.f32.mrf.mxu0
      %v1418 = vadd.f32 %v632, %v1417
      %1419 = vmatmul.f32.gmra.mxu0 %v1013
      %v1420 = vpop.f32.mrf.mxu0
      %v1421 = vadd.f32 %v632, %v1420
      %1422 = vmatmul.f32.gmra.mxu0 %v1016
      %v1423 = vpop.f32.mrf.mxu0
      %v1424 = vadd.f32 %v632, %v1423
      %1425 = vmatmul.f32.gmra.mxu0 %v1019
      %v1426 = vpop.f32.mrf.mxu0
      %v1427 = vadd.f32 %v632, %v1426
      %1428 = vdwg.mxu0
      %1429 = vmatpush.msra.mxu0 0.0
      %1430 = vmatpush.msra.mxu0 0.0
      %1431 = vmatpush.msra.mxu0 0.0
      %1432 = vmatpush.msra.mxu0 0.0
      %1433 = vmatpush.msra.mxu0 0.0
      %1434 = vmatpush.msra.mxu0 0.0
      %1435 = vmatpush.msra.mxu0 0.0
      %1436 = vmatpush.msra.mxu0 0.0
      %1437 = vmatpush.msra.mxu0 %v1026
      %1438 = vmatpush.msra.mxu0 %v627
      %1439 = vmatpush.msra.mxu0 %v625
      %1440 = vmatpush.msra.mxu0 %v623
      %1441 = vmatpush.msra.mxu0 %v621
      %1442 = vmatpush.msra.mxu0 %v619
      %1443 = vmatpush.msra.mxu0 %v617
      %1444 = vmatpush.msra.mxu0 %v615
      %1445 = vmatmul.f32.gmra.mxu0 %v638
      %v1446 = vpop.f32.mrf.mxu0
      %v1447 = vadd.f32 %v633, %v1446
      %1448 = vmatmul.f32.gmra.mxu0 %v641
      %v1449 = vpop.f32.mrf.mxu0
      %v1450 = vadd.f32 %v633, %v1449
      %1451 = vmatmul.f32.gmra.mxu0 %v644
      %v1452 = vpop.f32.mrf.mxu0
      %v1453 = vadd.f32 %v633, %v1452
      %1454 = vmatmul.f32.gmra.mxu0 %v647
      %v1455 = vpop.f32.mrf.mxu0
      %v1456 = vadd.f32 %v633, %v1455
      %1457 = vmatmul.f32.gmra.mxu0 %v650
      %v1458 = vpop.f32.mrf.mxu0
      %v1459 = vadd.f32 %v633, %v1458
      %1460 = vmatmul.f32.gmra.mxu0 %v653
      %v1461 = vpop.f32.mrf.mxu0
      %v1462 = vadd.f32 %v633, %v1461
      %1463 = vmatmul.f32.gmra.mxu0 %v656
      %v1464 = vpop.f32.mrf.mxu0
      %v1465 = vadd.f32 %v633, %v1464
      %1466 = vmatmul.f32.gmra.mxu0 %v659
      %v1467 = vpop.f32.mrf.mxu0
      %v1468 = vadd.f32 %v633, %v1467
      %1469 = vmatmul.f32.gmra.mxu0 %v662
      %v1470 = vpop.f32.mrf.mxu0
      %v1471 = vadd.f32 %v633, %v1470
      %1472 = vmatmul.f32.gmra.mxu0 %v665
      %v1473 = vpop.f32.mrf.mxu0
      %v1474 = vadd.f32 %v633, %v1473
      %1475 = vmatmul.f32.gmra.mxu0 %v668
      %v1476 = vpop.f32.mrf.mxu0
      %v1477 = vadd.f32 %v633, %v1476
      %1478 = vmatmul.f32.gmra.mxu0 %v671
      %v1479 = vpop.f32.mrf.mxu0
      %v1480 = vadd.f32 %v633, %v1479
      %1481 = vmatmul.f32.gmra.mxu0 %v674
      %v1482 = vpop.f32.mrf.mxu0
      %v1483 = vadd.f32 %v633, %v1482
      %1484 = vmatmul.f32.gmra.mxu0 %v677
      %v1485 = vpop.f32.mrf.mxu0
      %v1486 = vadd.f32 %v633, %v1485
      %1487 = vmatmul.f32.gmra.mxu0 %v680
      %v1488 = vpop.f32.mrf.mxu0
      %v1489 = vadd.f32 %v633, %v1488
      %1490 = vmatmul.f32.gmra.mxu0 %v683
      %v1491 = vpop.f32.mrf.mxu0
      %v1492 = vadd.f32 %v633, %v1491
      %1493 = vmatmul.f32.gmra.mxu0 %v686
      %v1494 = vpop.f32.mrf.mxu0
      %v1495 = vadd.f32 %v633, %v1494
      %1496 = vmatmul.f32.gmra.mxu0 %v689
      %v1497 = vpop.f32.mrf.mxu0
      %v1498 = vadd.f32 %v633, %v1497
      %1499 = vmatmul.f32.gmra.mxu0 %v692
      %v1500 = vpop.f32.mrf.mxu0
      %v1501 = vadd.f32 %v633, %v1500
      %1502 = vmatmul.f32.gmra.mxu0 %v695
      %v1503 = vpop.f32.mrf.mxu0
      %v1504 = vadd.f32 %v633, %v1503
      %1505 = vmatmul.f32.gmra.mxu0 %v698
      %v1506 = vpop.f32.mrf.mxu0
      %v1507 = vadd.f32 %v633, %v1506
      %1508 = vmatmul.f32.gmra.mxu0 %v701
      %v1509 = vpop.f32.mrf.mxu0
      %v1510 = vadd.f32 %v633, %v1509
      %1511 = vmatmul.f32.gmra.mxu0 %v704
      %v1512 = vpop.f32.mrf.mxu0
      %v1513 = vadd.f32 %v633, %v1512
      %1514 = vmatmul.f32.gmra.mxu0 %v707
      %v1515 = vpop.f32.mrf.mxu0
      %v1516 = vadd.f32 %v633, %v1515
      %1517 = vmatmul.f32.gmra.mxu0 %v710
      %v1518 = vpop.f32.mrf.mxu0
      %v1519 = vadd.f32 %v633, %v1518
      %1520 = vmatmul.f32.gmra.mxu0 %v713
      %v1521 = vpop.f32.mrf.mxu0
      %v1522 = vadd.f32 %v633, %v1521
      %1523 = vmatmul.f32.gmra.mxu0 %v716
      %v1524 = vpop.f32.mrf.mxu0
      %v1525 = vadd.f32 %v633, %v1524
      %1526 = vmatmul.f32.gmra.mxu0 %v719
      %v1527 = vpop.f32.mrf.mxu0
      %v1528 = vadd.f32 %v633, %v1527
      %1529 = vmatmul.f32.gmra.mxu0 %v722
      %v1530 = vpop.f32.mrf.mxu0
      %v1531 = vadd.f32 %v633, %v1530
      %1532 = vmatmul.f32.gmra.mxu0 %v725
      %v1533 = vpop.f32.mrf.mxu0
      %v1534 = vadd.f32 %v633, %v1533
      %1535 = vmatmul.f32.gmra.mxu0 %v728
      %v1536 = vpop.f32.mrf.mxu0
      %v1537 = vadd.f32 %v633, %v1536
      %1538 = vmatmul.f32.gmra.mxu0 %v731
      %v1539 = vpop.f32.mrf.mxu0
      %v1540 = vadd.f32 %v633, %v1539
      %1541 = vmatmul.f32.gmra.mxu0 %v734
      %v1542 = vpop.f32.mrf.mxu0
      %v1543 = vadd.f32 %v633, %v1542
      %1544 = vmatmul.f32.gmra.mxu0 %v737
      %v1545 = vpop.f32.mrf.mxu0
      %v1546 = vadd.f32 %v633, %v1545
      %1547 = vmatmul.f32.gmra.mxu0 %v740
      %v1548 = vpop.f32.mrf.mxu0
      %v1549 = vadd.f32 %v633, %v1548
      %1550 = vmatmul.f32.gmra.mxu0 %v743
      %v1551 = vpop.f32.mrf.mxu0
      %v1552 = vadd.f32 %v633, %v1551
      %1553 = vmatmul.f32.gmra.mxu0 %v746
      %v1554 = vpop.f32.mrf.mxu0
      %v1555 = vadd.f32 %v633, %v1554
      %1556 = vmatmul.f32.gmra.mxu0 %v749
      %v1557 = vpop.f32.mrf.mxu0
      %v1558 = vadd.f32 %v633, %v1557
      %1559 = vmatmul.f32.gmra.mxu0 %v752
      %v1560 = vpop.f32.mrf.mxu0
      %v1561 = vadd.f32 %v633, %v1560
      %1562 = vmatmul.f32.gmra.mxu0 %v755
      %v1563 = vpop.f32.mrf.mxu0
      %v1564 = vadd.f32 %v633, %v1563
      %1565 = vmatmul.f32.gmra.mxu0 %v758
      %v1566 = vpop.f32.mrf.mxu0
      %v1567 = vadd.f32 %v633, %v1566
      %1568 = vmatmul.f32.gmra.mxu0 %v761
      %v1569 = vpop.f32.mrf.mxu0
      %v1570 = vadd.f32 %v633, %v1569
      %1571 = vmatmul.f32.gmra.mxu0 %v764
      %v1572 = vpop.f32.mrf.mxu0
      %v1573 = vadd.f32 %v633, %v1572
      %1574 = vmatmul.f32.gmra.mxu0 %v767
      %v1575 = vpop.f32.mrf.mxu0
      %v1576 = vadd.f32 %v633, %v1575
      %1577 = vmatmul.f32.gmra.mxu0 %v770
      %v1578 = vpop.f32.mrf.mxu0
      %v1579 = vadd.f32 %v633, %v1578
      %1580 = vmatmul.f32.gmra.mxu0 %v773
      %v1581 = vpop.f32.mrf.mxu0
      %v1582 = vadd.f32 %v633, %v1581
      %1583 = vmatmul.f32.gmra.mxu0 %v776
      %v1584 = vpop.f32.mrf.mxu0
      %v1585 = vadd.f32 %v633, %v1584
      %1586 = vmatmul.f32.gmra.mxu0 %v779
      %v1587 = vpop.f32.mrf.mxu0
      %v1588 = vadd.f32 %v633, %v1587
      %1589 = vmatmul.f32.gmra.mxu0 %v782
      %v1590 = vpop.f32.mrf.mxu0
      %v1591 = vadd.f32 %v633, %v1590
      %1592 = vmatmul.f32.gmra.mxu0 %v785
      %v1593 = vpop.f32.mrf.mxu0
      %v1594 = vadd.f32 %v633, %v1593
      %1595 = vmatmul.f32.gmra.mxu0 %v788
      %v1596 = vpop.f32.mrf.mxu0
      %v1597 = vadd.f32 %v633, %v1596
      %1598 = vmatmul.f32.gmra.mxu0 %v791
      %v1599 = vpop.f32.mrf.mxu0
      %v1600 = vadd.f32 %v633, %v1599
      %1601 = vmatmul.f32.gmra.mxu0 %v794
      %v1602 = vpop.f32.mrf.mxu0
      %v1603 = vadd.f32 %v633, %v1602
      %1604 = vmatmul.f32.gmra.mxu0 %v797
      %v1605 = vpop.f32.mrf.mxu0
      %v1606 = vadd.f32 %v633, %v1605
      %1607 = vmatmul.f32.gmra.mxu0 %v800
      %v1608 = vpop.f32.mrf.mxu0
      %v1609 = vadd.f32 %v633, %v1608
      %1610 = vmatmul.f32.gmra.mxu0 %v803
      %v1611 = vpop.f32.mrf.mxu0
      %v1612 = vadd.f32 %v633, %v1611
      %1613 = vmatmul.f32.gmra.mxu0 %v806
      %v1614 = vpop.f32.mrf.mxu0
      %v1615 = vadd.f32 %v633, %v1614
      %1616 = vmatmul.f32.gmra.mxu0 %v809
      %v1617 = vpop.f32.mrf.mxu0
      %v1618 = vadd.f32 %v633, %v1617
      %1619 = vmatmul.f32.gmra.mxu0 %v812
      %v1620 = vpop.f32.mrf.mxu0
      %v1621 = vadd.f32 %v633, %v1620
      %1622 = vmatmul.f32.gmra.mxu0 %v815
      %v1623 = vpop.f32.mrf.mxu0
      %v1624 = vadd.f32 %v633, %v1623
      %1625 = vmatmul.f32.gmra.mxu0 %v818
      %v1626 = vpop.f32.mrf.mxu0
      %v1627 = vadd.f32 %v633, %v1626
      %1628 = vmatmul.f32.gmra.mxu0 %v821
      %v1629 = vpop.f32.mrf.mxu0
      %v1630 = vadd.f32 %v633, %v1629
      %1631 = vmatmul.f32.gmra.mxu0 %v824
      %v1632 = vpop.f32.mrf.mxu0
      %v1633 = vadd.f32 %v633, %v1632
      %1634 = vmatmul.f32.gmra.mxu0 %v827
      %v1635 = vpop.f32.mrf.mxu0
      %v1636 = vadd.f32 %v633, %v1635
      %1637 = vmatmul.f32.gmra.mxu0 %v830
      %v1638 = vpop.f32.mrf.mxu0
      %v1639 = vadd.f32 %v633, %v1638
      %1640 = vmatmul.f32.gmra.mxu0 %v833
      %v1641 = vpop.f32.mrf.mxu0
      %v1642 = vadd.f32 %v633, %v1641
      %1643 = vmatmul.f32.gmra.mxu0 %v836
      %v1644 = vpop.f32.mrf.mxu0
      %v1645 = vadd.f32 %v633, %v1644
      %1646 = vmatmul.f32.gmra.mxu0 %v839
      %v1647 = vpop.f32.mrf.mxu0
      %v1648 = vadd.f32 %v633, %v1647
      %1649 = vmatmul.f32.gmra.mxu0 %v842
      %v1650 = vpop.f32.mrf.mxu0
      %v1651 = vadd.f32 %v633, %v1650
      %1652 = vmatmul.f32.gmra.mxu0 %v845
      %v1653 = vpop.f32.mrf.mxu0
      %v1654 = vadd.f32 %v633, %v1653
      %1655 = vmatmul.f32.gmra.mxu0 %v848
      %v1656 = vpop.f32.mrf.mxu0
      %v1657 = vadd.f32 %v633, %v1656
      %1658 = vmatmul.f32.gmra.mxu0 %v851
      %v1659 = vpop.f32.mrf.mxu0
      %v1660 = vadd.f32 %v633, %v1659
      %1661 = vmatmul.f32.gmra.mxu0 %v854
      %v1662 = vpop.f32.mrf.mxu0
      %v1663 = vadd.f32 %v633, %v1662
      %1664 = vmatmul.f32.gmra.mxu0 %v857
      %v1665 = vpop.f32.mrf.mxu0
      %v1666 = vadd.f32 %v633, %v1665
      %1667 = vmatmul.f32.gmra.mxu0 %v860
      %v1668 = vpop.f32.mrf.mxu0
      %v1669 = vadd.f32 %v633, %v1668
      %1670 = vmatmul.f32.gmra.mxu0 %v863
      %v1671 = vpop.f32.mrf.mxu0
      %v1672 = vadd.f32 %v633, %v1671
      %1673 = vmatmul.f32.gmra.mxu0 %v866
      %v1674 = vpop.f32.mrf.mxu0
      %v1675 = vadd.f32 %v633, %v1674
      %1676 = vmatmul.f32.gmra.mxu0 %v869
      %v1677 = vpop.f32.mrf.mxu0
      %v1678 = vadd.f32 %v633, %v1677
      %1679 = vmatmul.f32.gmra.mxu0 %v872
      %v1680 = vpop.f32.mrf.mxu0
      %v1681 = vadd.f32 %v633, %v1680
      %1682 = vmatmul.f32.gmra.mxu0 %v875
      %v1683 = vpop.f32.mrf.mxu0
      %v1684 = vadd.f32 %v633, %v1683
      %1685 = vmatmul.f32.gmra.mxu0 %v878
      %v1686 = vpop.f32.mrf.mxu0
      %v1687 = vadd.f32 %v633, %v1686
      %1688 = vmatmul.f32.gmra.mxu0 %v881
      %v1689 = vpop.f32.mrf.mxu0
      %v1690 = vadd.f32 %v633, %v1689
      %1691 = vmatmul.f32.gmra.mxu0 %v884
      %v1692 = vpop.f32.mrf.mxu0
      %v1693 = vadd.f32 %v633, %v1692
      %1694 = vmatmul.f32.gmra.mxu0 %v887
      %v1695 = vpop.f32.mrf.mxu0
      %v1696 = vadd.f32 %v633, %v1695
      %1697 = vmatmul.f32.gmra.mxu0 %v890
      %v1698 = vpop.f32.mrf.mxu0
      %v1699 = vadd.f32 %v633, %v1698
      %1700 = vmatmul.f32.gmra.mxu0 %v893
      %v1701 = vpop.f32.mrf.mxu0
      %v1702 = vadd.f32 %v633, %v1701
      %1703 = vmatmul.f32.gmra.mxu0 %v896
      %v1704 = vpop.f32.mrf.mxu0
      %v1705 = vadd.f32 %v633, %v1704
      %1706 = vmatmul.f32.gmra.mxu0 %v899
      %v1707 = vpop.f32.mrf.mxu0
      %v1708 = vadd.f32 %v633, %v1707
      %1709 = vmatmul.f32.gmra.mxu0 %v902
      %v1710 = vpop.f32.mrf.mxu0
      %v1711 = vadd.f32 %v633, %v1710
      %1712 = vmatmul.f32.gmra.mxu0 %v905
      %v1713 = vpop.f32.mrf.mxu0
      %v1714 = vadd.f32 %v633, %v1713
      %1715 = vmatmul.f32.gmra.mxu0 %v908
      %v1716 = vpop.f32.mrf.mxu0
      %v1717 = vadd.f32 %v633, %v1716
      %1718 = vmatmul.f32.gmra.mxu0 %v911
      %v1719 = vpop.f32.mrf.mxu0
      %v1720 = vadd.f32 %v633, %v1719
      %1721 = vmatmul.f32.gmra.mxu0 %v914
      %v1722 = vpop.f32.mrf.mxu0
      %v1723 = vadd.f32 %v633, %v1722
      %1724 = vmatmul.f32.gmra.mxu0 %v917
      %v1725 = vpop.f32.mrf.mxu0
      %v1726 = vadd.f32 %v633, %v1725
      %1727 = vmatmul.f32.gmra.mxu0 %v920
      %v1728 = vpop.f32.mrf.mxu0
      %v1729 = vadd.f32 %v633, %v1728
      %1730 = vmatmul.f32.gmra.mxu0 %v923
      %v1731 = vpop.f32.mrf.mxu0
      %v1732 = vadd.f32 %v633, %v1731
      %1733 = vmatmul.f32.gmra.mxu0 %v926
      %v1734 = vpop.f32.mrf.mxu0
      %v1735 = vadd.f32 %v633, %v1734
      %1736 = vmatmul.f32.gmra.mxu0 %v929
      %v1737 = vpop.f32.mrf.mxu0
      %v1738 = vadd.f32 %v633, %v1737
      %1739 = vmatmul.f32.gmra.mxu0 %v932
      %v1740 = vpop.f32.mrf.mxu0
      %v1741 = vadd.f32 %v633, %v1740
      %1742 = vmatmul.f32.gmra.mxu0 %v935
      %v1743 = vpop.f32.mrf.mxu0
      %v1744 = vadd.f32 %v633, %v1743
      %1745 = vmatmul.f32.gmra.mxu0 %v938
      %v1746 = vpop.f32.mrf.mxu0
      %v1747 = vadd.f32 %v633, %v1746
      %1748 = vmatmul.f32.gmra.mxu0 %v941
      %v1749 = vpop.f32.mrf.mxu0
      %v1750 = vadd.f32 %v633, %v1749
      %1751 = vmatmul.f32.gmra.mxu0 %v944
      %v1752 = vpop.f32.mrf.mxu0
      %v1753 = vadd.f32 %v633, %v1752
      %1754 = vmatmul.f32.gmra.mxu0 %v947
      %v1755 = vpop.f32.mrf.mxu0
      %v1756 = vadd.f32 %v633, %v1755
      %1757 = vmatmul.f32.gmra.mxu0 %v950
      %v1758 = vpop.f32.mrf.mxu0
      %v1759 = vadd.f32 %v633, %v1758
      %1760 = vmatmul.f32.gmra.mxu0 %v953
      %v1761 = vpop.f32.mrf.mxu0
      %v1762 = vadd.f32 %v633, %v1761
      %1763 = vmatmul.f32.gmra.mxu0 %v956
      %v1764 = vpop.f32.mrf.mxu0
      %v1765 = vadd.f32 %v633, %v1764
      %1766 = vmatmul.f32.gmra.mxu0 %v959
      %v1767 = vpop.f32.mrf.mxu0
      %v1768 = vadd.f32 %v633, %v1767
      %1769 = vmatmul.f32.gmra.mxu0 %v962
      %v1770 = vpop.f32.mrf.mxu0
      %v1771 = vadd.f32 %v633, %v1770
      %1772 = vmatmul.f32.gmra.mxu0 %v965
      %v1773 = vpop.f32.mrf.mxu0
      %v1774 = vadd.f32 %v633, %v1773
      %1775 = vmatmul.f32.gmra.mxu0 %v968
      %v1776 = vpop.f32.mrf.mxu0
      %v1777 = vadd.f32 %v633, %v1776
      %1778 = vmatmul.f32.gmra.mxu0 %v971
      %v1779 = vpop.f32.mrf.mxu0
      %v1780 = vadd.f32 %v633, %v1779
      %1781 = vmatmul.f32.gmra.mxu0 %v974
      %v1782 = vpop.f32.mrf.mxu0
      %v1783 = vadd.f32 %v633, %v1782
      %1784 = vmatmul.f32.gmra.mxu0 %v977
      %v1785 = vpop.f32.mrf.mxu0
      %v1786 = vadd.f32 %v633, %v1785
      %1787 = vmatmul.f32.gmra.mxu0 %v980
      %v1788 = vpop.f32.mrf.mxu0
      %v1789 = vadd.f32 %v633, %v1788
      %1790 = vmatmul.f32.gmra.mxu0 %v983
      %v1791 = vpop.f32.mrf.mxu0
      %v1792 = vadd.f32 %v633, %v1791
      %1793 = vmatmul.f32.gmra.mxu0 %v986
      %v1794 = vpop.f32.mrf.mxu0
      %v1795 = vadd.f32 %v633, %v1794
      %1796 = vmatmul.f32.gmra.mxu0 %v989
      %v1797 = vpop.f32.mrf.mxu0
      %v1798 = vadd.f32 %v633, %v1797
      %1799 = vmatmul.f32.gmra.mxu0 %v992
      %v1800 = vpop.f32.mrf.mxu0
      %v1801 = vadd.f32 %v633, %v1800
      %1802 = vmatmul.f32.gmra.mxu0 %v995
      %v1803 = vpop.f32.mrf.mxu0
      %v1804 = vadd.f32 %v633, %v1803
      %1805 = vmatmul.f32.gmra.mxu0 %v998
      %v1806 = vpop.f32.mrf.mxu0
      %v1807 = vadd.f32 %v633, %v1806
      %1808 = vmatmul.f32.gmra.mxu0 %v1001
      %v1809 = vpop.f32.mrf.mxu0
      %v1810 = vadd.f32 %v633, %v1809
      %1811 = vmatmul.f32.gmra.mxu0 %v1004
      %v1812 = vpop.f32.mrf.mxu0
      %v1813 = vadd.f32 %v633, %v1812
      %1814 = vmatmul.f32.gmra.mxu0 %v1007
      %v1815 = vpop.f32.mrf.mxu0
      %v1816 = vadd.f32 %v633, %v1815
      %1817 = vmatmul.f32.gmra.mxu0 %v1010
      %v1818 = vpop.f32.mrf.mxu0
      %v1819 = vadd.f32 %v633, %v1818
      %1820 = vmatmul.f32.gmra.mxu0 %v1013
      %v1821 = vpop.f32.mrf.mxu0
      %v1822 = vadd.f32 %v633, %v1821
      %1823 = vmatmul.f32.gmra.mxu0 %v1016
      %v1824 = vpop.f32.mrf.mxu0
      %v1825 = vadd.f32 %v633, %v1824
      %1826 = vmatmul.f32.gmra.mxu0 %v1019
      %v1827 = vpop.f32.mrf.mxu0
      %v1828 = vadd.f32 %v633, %v1827
      %1829 = vdwg.mxu0
      %v1830 = vmax.f32 %v1046, 0.0
      %v1831 = vmax.f32 %v1447, 0.0
      %v1832 = vmax.f32 %v1049, 0.0
      %v1833 = vmax.f32 %v1450, 0.0
      %v1834 = vmax.f32 %v1052, 0.0
      %v1835 = vmax.f32 %v1453, 0.0
      %v1836 = vmax.f32 %v1055, 0.0
      %v1837 = vmax.f32 %v1456, 0.0
      %v1838 = vmax.f32 %v1058, 0.0
      %v1839 = vmax.f32 %v1459, 0.0
      %v1840 = vmax.f32 %v1061, 0.0
      %v1841 = vmax.f32 %v1462, 0.0
      %v1842 = vmax.f32 %v1064, 0.0
      %v1843 = vmax.f32 %v1465, 0.0
      %v1844 = vmax.f32 %v1067, 0.0
      %v1845 = vmax.f32 %v1468, 0.0
      %v1846 = vmax.f32 %v1070, 0.0
      %v1847 = vmax.f32 %v1471, 0.0
      %v1848 = vmax.f32 %v1073, 0.0
      %v1849 = vmax.f32 %v1474, 0.0
      %v1850 = vmax.f32 %v1076, 0.0
      %v1851 = vmax.f32 %v1477, 0.0
      %v1852 = vmax.f32 %v1079, 0.0
      %v1853 = vmax.f32 %v1480, 0.0
      %v1854 = vmax.f32 %v1082, 0.0
      %v1855 = vmax.f32 %v1483, 0.0
      %v1856 = vmax.f32 %v1085, 0.0
      %v1857 = vmax.f32 %v1486, 0.0
      %v1858 = vmax.f32 %v1088, 0.0
      %v1859 = vmax.f32 %v1489, 0.0
      %v1860 = vmax.f32 %v1091, 0.0
      %v1861 = vmax.f32 %v1492, 0.0
      %v1862 = vmax.f32 %v1094, 0.0
      %v1863 = vmax.f32 %v1495, 0.0
      %v1864 = vmax.f32 %v1097, 0.0
      %v1865 = vmax.f32 %v1498, 0.0
      %v1866 = vmax.f32 %v1100, 0.0
      %v1867 = vmax.f32 %v1501, 0.0
      %v1868 = vmax.f32 %v1103, 0.0
      %v1869 = vmax.f32 %v1504, 0.0
      %v1870 = vmax.f32 %v1106, 0.0
      %v1871 = vmax.f32 %v1507, 0.0
      %v1872 = vmax.f32 %v1109, 0.0
      %v1873 = vmax.f32 %v1510, 0.0
      %v1874 = vmax.f32 %v1112, 0.0
      %v1875 = vmax.f32 %v1513, 0.0
      %v1876 = vmax.f32 %v1115, 0.0
      %v1877 = vmax.f32 %v1516, 0.0
      %v1878 = vmax.f32 %v1118, 0.0
      %v1879 = vmax.f32 %v1519, 0.0
      %v1880 = vmax.f32 %v1121, 0.0
      %v1881 = vmax.f32 %v1522, 0.0
      %v1882 = vmax.f32 %v1124, 0.0
      %v1883 = vmax.f32 %v1525, 0.0
      %v1884 = vmax.f32 %v1127, 0.0
      %v1885 = vmax.f32 %v1528, 0.0
      %v1886 = vmax.f32 %v1130, 0.0
      %v1887 = vmax.f32 %v1531, 0.0
      %v1888 = vmax.f32 %v1133, 0.0
      %v1889 = vmax.f32 %v1534, 0.0
      %v1890 = vmax.f32 %v1136, 0.0
      %v1891 = vmax.f32 %v1537, 0.0
      %v1892 = vmax.f32 %v1139, 0.0
      %v1893 = vmax.f32 %v1540, 0.0
      %v1894 = vmax.f32 %v1142, 0.0
      %v1895 = vmax.f32 %v1543, 0.0
      %v1896 = vmax.f32 %v1145, 0.0
      %v1897 = vmax.f32 %v1546, 0.0
      %v1898 = vmax.f32 %v1148, 0.0
      %v1899 = vmax.f32 %v1549, 0.0
      %v1900 = vmax.f32 %v1151, 0.0
      %v1901 = vmax.f32 %v1552, 0.0
      %v1902 = vmax.f32 %v1154, 0.0
      %v1903 = vmax.f32 %v1555, 0.0
      %v1904 = vmax.f32 %v1157, 0.0
      %v1905 = vmax.f32 %v1558, 0.0
      %v1906 = vmax.f32 %v1160, 0.0
      %v1907 = vmax.f32 %v1561, 0.0
      %v1908 = vmax.f32 %v1163, 0.0
      %v1909 = vmax.f32 %v1564, 0.0
      %v1910 = vmax.f32 %v1166, 0.0
      %v1911 = vmax.f32 %v1567, 0.0
      %v1912 = vmax.f32 %v1169, 0.0
      %v1913 = vmax.f32 %v1570, 0.0
      %v1914 = vmax.f32 %v1172, 0.0
      %v1915 = vmax.f32 %v1573, 0.0
      %v1916 = vmax.f32 %v1175, 0.0
      %v1917 = vmax.f32 %v1576, 0.0
      %v1918 = vmax.f32 %v1178, 0.0
      %v1919 = vmax.f32 %v1579, 0.0
      %v1920 = vmax.f32 %v1181, 0.0
      %v1921 = vmax.f32 %v1582, 0.0
      %v1922 = vmax.f32 %v1184, 0.0
      %v1923 = vmax.f32 %v1585, 0.0
      %v1924 = vmax.f32 %v1187, 0.0
      %v1925 = vmax.f32 %v1588, 0.0
      %v1926 = vmax.f32 %v1190, 0.0
      %v1927 = vmax.f32 %v1591, 0.0
      %v1928 = vmax.f32 %v1193, 0.0
      %v1929 = vmax.f32 %v1594, 0.0
      %v1930 = vmax.f32 %v1196, 0.0
      %v1931 = vmax.f32 %v1597, 0.0
      %v1932 = vmax.f32 %v1199, 0.0
      %v1933 = vmax.f32 %v1600, 0.0
      %v1934 = vmax.f32 %v1202, 0.0
      %v1935 = vmax.f32 %v1603, 0.0
      %v1936 = vmax.f32 %v1205, 0.0
      %v1937 = vmax.f32 %v1606, 0.0
      %v1938 = vmax.f32 %v1208, 0.0
      %v1939 = vmax.f32 %v1609, 0.0
      %v1940 = vmax.f32 %v1211, 0.0
      %v1941 = vmax.f32 %v1612, 0.0
      %v1942 = vmax.f32 %v1214, 0.0
      %v1943 = vmax.f32 %v1615, 0.0
      %v1944 = vmax.f32 %v1217, 0.0
      %v1945 = vmax.f32 %v1618, 0.0
      %v1946 = vmax.f32 %v1220, 0.0
      %v1947 = vmax.f32 %v1621, 0.0
      %v1948 = vmax.f32 %v1223, 0.0
      %v1949 = vmax.f32 %v1624, 0.0
      %v1950 = vmax.f32 %v1226, 0.0
      %v1951 = vmax.f32 %v1627, 0.0
      %v1952 = vmax.f32 %v1229, 0.0
      %v1953 = vmax.f32 %v1630, 0.0
      %v1954 = vmax.f32 %v1232, 0.0
      %v1955 = vmax.f32 %v1633, 0.0
      %v1956 = vmax.f32 %v1235, 0.0
      %v1957 = vmax.f32 %v1636, 0.0
      %v1958 = vmax.f32 %v1238, 0.0
      %v1959 = vmax.f32 %v1639, 0.0
      %v1960 = vmax.f32 %v1241, 0.0
      %v1961 = vmax.f32 %v1642, 0.0
      %v1962 = vmax.f32 %v1244, 0.0
      %v1963 = vmax.f32 %v1645, 0.0
      %v1964 = vmax.f32 %v1247, 0.0
      %v1965 = vmax.f32 %v1648, 0.0
      %v1966 = vmax.f32 %v1250, 0.0
      %v1967 = vmax.f32 %v1651, 0.0
      %v1968 = vmax.f32 %v1253, 0.0
      %v1969 = vmax.f32 %v1654, 0.0
      %v1970 = vmax.f32 %v1256, 0.0
      %v1971 = vmax.f32 %v1657, 0.0
      %v1972 = vmax.f32 %v1259, 0.0
      %v1973 = vmax.f32 %v1660, 0.0
      %v1974 = vmax.f32 %v1262, 0.0
      %v1975 = vmax.f32 %v1663, 0.0
      %v1976 = vmax.f32 %v1265, 0.0
      %v1977 = vmax.f32 %v1666, 0.0
      %v1978 = vmax.f32 %v1268, 0.0
      %v1979 = vmax.f32 %v1669, 0.0
      %v1980 = vmax.f32 %v1271, 0.0
      %v1981 = vmax.f32 %v1672, 0.0
      %v1982 = vmax.f32 %v1274, 0.0
      %v1983 = vmax.f32 %v1675, 0.0
      %v1984 = vmax.f32 %v1277, 0.0
      %v1985 = vmax.f32 %v1678, 0.0
      %v1986 = vmax.f32 %v1280, 0.0
      %v1987 = vmax.f32 %v1681, 0.0
      %v1988 = vmax.f32 %v1283, 0.0
      %v1989 = vmax.f32 %v1684, 0.0
      %v1990 = vmax.f32 %v1286, 0.0
      %v1991 = vmax.f32 %v1687, 0.0
      %v1992 = vmax.f32 %v1289, 0.0
      %v1993 = vmax.f32 %v1690, 0.0
      %v1994 = vmax.f32 %v1292, 0.0
      %v1995 = vmax.f32 %v1693, 0.0
      %v1996 = vmax.f32 %v1295, 0.0
      %v1997 = vmax.f32 %v1696, 0.0
      %v1998 = vmax.f32 %v1298, 0.0
      %v1999 = vmax.f32 %v1699, 0.0
      %v2000 = vmax.f32 %v1301, 0.0
      %v2001 = vmax.f32 %v1702, 0.0
      %v2002 = vmax.f32 %v1304, 0.0
      %v2003 = vmax.f32 %v1705, 0.0
      %v2004 = vmax.f32 %v1307, 0.0
      %v2005 = vmax.f32 %v1708, 0.0
      %v2006 = vmax.f32 %v1310, 0.0
      %v2007 = vmax.f32 %v1711, 0.0
      %v2008 = vmax.f32 %v1313, 0.0
      %v2009 = vmax.f32 %v1714, 0.0
      %v2010 = vmax.f32 %v1316, 0.0
      %v2011 = vmax.f32 %v1717, 0.0
      %v2012 = vmax.f32 %v1319, 0.0
      %v2013 = vmax.f32 %v1720, 0.0
      %v2014 = vmax.f32 %v1322, 0.0
      %v2015 = vmax.f32 %v1723, 0.0
      %v2016 = vmax.f32 %v1325, 0.0
      %v2017 = vmax.f32 %v1726, 0.0
      %v2018 = vmax.f32 %v1328, 0.0
      %v2019 = vmax.f32 %v1729, 0.0
      %v2020 = vmax.f32 %v1331, 0.0
      %v2021 = vmax.f32 %v1732, 0.0
      %v2022 = vmax.f32 %v1334, 0.0
      %v2023 = vmax.f32 %v1735, 0.0
      %v2024 = vmax.f32 %v1337, 0.0
      %v2025 = vmax.f32 %v1738, 0.0
      %v2026 = vmax.f32 %v1340, 0.0
      %v2027 = vmax.f32 %v1741, 0.0
      %v2028 = vmax.f32 %v1343, 0.0
      %v2029 = vmax.f32 %v1744, 0.0
      %v2030 = vmax.f32 %v1346, 0.0
      %v2031 = vmax.f32 %v1747, 0.0
      %v2032 = vmax.f32 %v1349, 0.0
      %v2033 = vmax.f32 %v1750, 0.0
      %v2034 = vmax.f32 %v1352, 0.0
      %v2035 = vmax.f32 %v1753, 0.0
      %v2036 = vmax.f32 %v1355, 0.0
      %v2037 = vmax.f32 %v1756, 0.0
      %v2038 = vmax.f32 %v1358, 0.0
      %v2039 = vmax.f32 %v1759, 0.0
      %v2040 = vmax.f32 %v1361, 0.0
      %v2041 = vmax.f32 %v1762, 0.0
      %v2042 = vmax.f32 %v1364, 0.0
      %v2043 = vmax.f32 %v1765, 0.0
      %v2044 = vmax.f32 %v1367, 0.0
      %v2045 = vmax.f32 %v1768, 0.0
      %v2046 = vmax.f32 %v1370, 0.0
      %v2047 = vmax.f32 %v1771, 0.0
      %v2048 = vmax.f32 %v1373, 0.0
      %v2049 = vmax.f32 %v1774, 0.0
      %v2050 = vmax.f32 %v1376, 0.0
      %v2051 = vmax.f32 %v1777, 0.0
      %v2052 = vmax.f32 %v1379, 0.0
      %v2053 = vmax.f32 %v1780, 0.0
      %v2054 = vmax.f32 %v1382, 0.0
      %v2055 = vmax.f32 %v1783, 0.0
      %v2056 = vmax.f32 %v1385, 0.0
      %v2057 = vmax.f32 %v1786, 0.0
      %v2058 = vmax.f32 %v1388, 0.0
      %v2059 = vmax.f32 %v1789, 0.0
      %v2060 = vmax.f32 %v1391, 0.0
      %v2061 = vmax.f32 %v1792, 0.0
      %v2062 = vmax.f32 %v1394, 0.0
      %v2063 = vmax.f32 %v1795, 0.0
      %v2064 = vmax.f32 %v1397, 0.0
      %v2065 = vmax.f32 %v1798, 0.0
      %v2066 = vmax.f32 %v1400, 0.0
      %v2067 = vmax.f32 %v1801, 0.0
      %v2068 = vmax.f32 %v1403, 0.0
      %v2069 = vmax.f32 %v1804, 0.0
      %v2070 = vmax.f32 %v1406, 0.0
      %v2071 = vmax.f32 %v1807, 0.0
      %v2072 = vmax.f32 %v1409, 0.0
      %v2073 = vmax.f32 %v1810, 0.0
      %v2074 = vmax.f32 %v1412, 0.0
      %v2075 = vmax.f32 %v1813, 0.0
      %v2076 = vmax.f32 %v1415, 0.0
      %v2077 = vmax.f32 %v1816, 0.0
      %v2078 = vmax.f32 %v1418, 0.0
      %v2079 = vmax.f32 %v1819, 0.0
      %v2080 = vmax.f32 %v1421, 0.0
      %v2081 = vmax.f32 %v1822, 0.0
      %v2082 = vmax.f32 %v1424, 0.0
      %v2083 = vmax.f32 %v1825, 0.0
      %v2084 = vmax.f32 %v1427, 0.0
      %v2085 = vmax.f32 %v1828, 0.0
      %v2086 = vld [vmem:[%s4] sm:$0xff]
      %v2087 = vld [vmem:[%s4 + $0x8] sm:$0xff]
      %v2088 = vld [vmem:[%s4 + $0x10] sm:$0xff]
      %v2089 = vld [vmem:[%s4 + $0x18] sm:$0xff]
      %v2090 = vld [vmem:[%s4 + $0x20] sm:$0xff]
      %v2091 = vld [vmem:[%s4 + $0x28] sm:$0xff]
      %v2092 = vld [vmem:[%s4 + $0x30] sm:$0xff]
      %v2093 = vld [vmem:[%s4 + $0x38] sm:$0xff]
      %v2094 = vld [vmem:[%s4 + $0x40] sm:$0xff]
      %v2095 = vld [vmem:[%s4 + $0x48] sm:$0xff]
      %v2096 = vld [vmem:[%s4 + $0x50] sm:$0xff]
      %v2097 = vld [vmem:[%s4 + $0x58] sm:$0xff]
      %v2098 = vld [vmem:[%s4 + $0x60] sm:$0xff]
      %v2099 = vld [vmem:[%s4 + $0x68] sm:$0xff]
      %v2100 = vld [vmem:[%s4 + $0x70] sm:$0xff]
      %v2101 = vld [vmem:[%s4 + $0x78] sm:$0xff]
      %v2102 = vld [vmem:[%s4 + $0x80] sm:$0xff]
      %v2103 = vld [vmem:[%s4 + $0x88] sm:$0xff]
      %v2104 = vld [vmem:[%s4 + $0x90] sm:$0xff]
      %v2105 = vld [vmem:[%s4 + $0x98] sm:$0xff]
      %v2106 = vld [vmem:[%s4 + $0xa0] sm:$0xff]
      %v2107 = vld [vmem:[%s4 + $0xa8] sm:$0xff]
      %v2108 = vld [vmem:[%s4 + $0xb0] sm:$0xff]
      %v2109 = vld [vmem:[%s4 + $0xb8] sm:$0xff]
      %v2110 = vld [vmem:[%s4 + $0xc0] sm:$0xff]
      %v2111 = vld [vmem:[%s4 + $0xc8] sm:$0xff]
      %v2112 = vld [vmem:[%s4 + $0xd0] sm:$0xff]
      %v2113 = vld [vmem:[%s4 + $0xd8] sm:$0xff]
      %v2114 = vld [vmem:[%s4 + $0xe0] sm:$0xff]
      %v2115 = vld [vmem:[%s4 + $0xe8] sm:$0xff]
      %v2116 = vld [vmem:[%s4 + $0xf0] sm:$0xff]
      %v2117 = vld [vmem:[%s4 + $0xf8] sm:$0xff]
      %v2118 = vld [vmem:[%s4 + $0x100] sm:$0xff]
      %v2119 = vld [vmem:[%s4 + $0x108] sm:$0xff]
      %v2120 = vld [vmem:[%s4 + $0x110] sm:$0xff]
      %v2121 = vld [vmem:[%s4 + $0x118] sm:$0xff]
      %v2122 = vld [vmem:[%s4 + $0x120] sm:$0xff]
      %v2123 = vld [vmem:[%s4 + $0x128] sm:$0xff]
      %v2124 = vld [vmem:[%s4 + $0x130] sm:$0xff]
      %v2125 = vld [vmem:[%s4 + $0x138] sm:$0xff]
      %v2126 = vld [vmem:[%s4 + $0x140] sm:$0xff]
      %v2127 = vld [vmem:[%s4 + $0x148] sm:$0xff]
      %v2128 = vld [vmem:[%s4 + $0x150] sm:$0xff]
      %v2129 = vld [vmem:[%s4 + $0x158] sm:$0xff]
      %v2130 = vld [vmem:[%s4 + $0x160] sm:$0xff]
      %v2131 = vld [vmem:[%s4 + $0x168] sm:$0xff]
      %v2132 = vld [vmem:[%s4 + $0x170] sm:$0xff]
      %v2133 = vld [vmem:[%s4 + $0x178] sm:$0xff]
      %v2134 = vld [vmem:[%s4 + $0x180] sm:$0xff]
      %v2135 = vld [vmem:[%s4 + $0x188] sm:$0xff]
      %v2136 = vld [vmem:[%s4 + $0x190] sm:$0xff]
      %v2137 = vld [vmem:[%s4 + $0x198] sm:$0xff]
      %v2138 = vld [vmem:[%s4 + $0x1a0] sm:$0xff]
      %v2139 = vld [vmem:[%s4 + $0x1a8] sm:$0xff]
      %v2140 = vld [vmem:[%s4 + $0x1b0] sm:$0xff]
      %v2141 = vld [vmem:[%s4 + $0x1b8] sm:$0xff]
      %v2142 = vld [vmem:[%s4 + $0x1c0] sm:$0xff]
      %v2143 = vld [vmem:[%s4 + $0x1c8] sm:$0xff]
      %v2144 = vld [vmem:[%s4 + $0x1d0] sm:$0xff]
      %v2145 = vld [vmem:[%s4 + $0x1d8] sm:$0xff]
      %v2146 = vld [vmem:[%s4 + $0x1e0] sm:$0xff]
      %v2147 = vld [vmem:[%s4 + $0x1e8] sm:$0xff]
      %v2148 = vld [vmem:[%s4 + $0x1f0] sm:$0xff]
      %v2149 = vld [vmem:[%s4 + $0x1f8] sm:$0xff]
      %2150 = vmatpush.msra.mxu0 %v2116
      %2151 = vmatpush.msra.mxu0 %v2114
      %2152 = vmatpush.msra.mxu0 %v2112
      %2153 = vmatpush.msra.mxu0 %v2110
      %2154 = vmatpush.msra.mxu0 %v2108
      %2155 = vmatpush.msra.mxu0 %v2106
      %2156 = vmatpush.msra.mxu0 %v2104
      %2157 = vmatpush.msra.mxu0 %v2102
      %2158 = vmatpush.msra.mxu0 %v2100
      %2159 = vmatpush.msra.mxu0 %v2098
      %2160 = vmatpush.msra.mxu0 %v2096
      %2161 = vmatpush.msra.mxu0 %v2094
      %2162 = vmatpush.msra.mxu0 %v2092
      %2163 = vmatpush.msra.mxu0 %v2090
      %2164 = vmatpush.msra.mxu0 %v2088
      %2165 = vmatpush.msra.mxu0 %v2086
      %2166 = vmatmul.f32.gmra.mxu0 %v1830
      %v2167 = vpop.f32.mrf.mxu0
      %v2168 = vadd.f32 0.0, %v2167
      %2169 = vmatmul.f32.gmra.mxu0 %v1832
      %v2170 = vpop.f32.mrf.mxu0
      %v2171 = vadd.f32 0.0, %v2170
      %2172 = vmatmul.f32.gmra.mxu0 %v1834
      %v2173 = vpop.f32.mrf.mxu0
      %v2174 = vadd.f32 0.0, %v2173
      %2175 = vmatmul.f32.gmra.mxu0 %v1836
      %v2176 = vpop.f32.mrf.mxu0
      %v2177 = vadd.f32 0.0, %v2176
      %2178 = vmatmul.f32.gmra.mxu0 %v1838
      %v2179 = vpop.f32.mrf.mxu0
      %v2180 = vadd.f32 0.0, %v2179
      %2181 = vmatmul.f32.gmra.mxu0 %v1840
      %v2182 = vpop.f32.mrf.mxu0
      %v2183 = vadd.f32 0.0, %v2182
      %2184 = vmatmul.f32.gmra.mxu0 %v1842
      %v2185 = vpop.f32.mrf.mxu0
      %v2186 = vadd.f32 0.0, %v2185
      %2187 = vmatmul.f32.gmra.mxu0 %v1844
      %v2188 = vpop.f32.mrf.mxu0
      %v2189 = vadd.f32 0.0, %v2188
      %2190 = vmatmul.f32.gmra.mxu0 %v1846
      %v2191 = vpop.f32.mrf.mxu0
      %v2192 = vadd.f32 0.0, %v2191
      %2193 = vmatmul.f32.gmra.mxu0 %v1848
      %v2194 = vpop.f32.mrf.mxu0
      %v2195 = vadd.f32 0.0, %v2194
      %2196 = vmatmul.f32.gmra.mxu0 %v1850
      %v2197 = vpop.f32.mrf.mxu0
      %v2198 = vadd.f32 0.0, %v2197
      %2199 = vmatmul.f32.gmra.mxu0 %v1852
      %v2200 = vpop.f32.mrf.mxu0
      %v2201 = vadd.f32 0.0, %v2200
      %2202 = vmatmul.f32.gmra.mxu0 %v1854
      %v2203 = vpop.f32.mrf.mxu0
      %v2204 = vadd.f32 0.0, %v2203
      %2205 = vmatmul.f32.gmra.mxu0 %v1856
      %v2206 = vpop.f32.mrf.mxu0
      %v2207 = vadd.f32 0.0, %v2206
      %2208 = vmatmul.f32.gmra.mxu0 %v1858
      %v2209 = vpop.f32.mrf.mxu0
      %v2210 = vadd.f32 0.0, %v2209
      %2211 = vmatmul.f32.gmra.mxu0 %v1860
      %v2212 = vpop.f32.mrf.mxu0
      %v2213 = vadd.f32 0.0, %v2212
      %2214 = vmatmul.f32.gmra.mxu0 %v1862
      %v2215 = vpop.f32.mrf.mxu0
      %v2216 = vadd.f32 0.0, %v2215
      %2217 = vmatmul.f32.gmra.mxu0 %v1864
      %v2218 = vpop.f32.mrf.mxu0
      %v2219 = vadd.f32 0.0, %v2218
      %2220 = vmatmul.f32.gmra.mxu0 %v1866
      %v2221 = vpop.f32.mrf.mxu0
      %v2222 = vadd.f32 0.0, %v2221
      %2223 = vmatmul.f32.gmra.mxu0 %v1868
      %v2224 = vpop.f32.mrf.mxu0
      %v2225 = vadd.f32 0.0, %v2224
      %2226 = vmatmul.f32.gmra.mxu0 %v1870
      %v2227 = vpop.f32.mrf.mxu0
      %v2228 = vadd.f32 0.0, %v2227
      %2229 = vmatmul.f32.gmra.mxu0 %v1872
      %v2230 = vpop.f32.mrf.mxu0
      %v2231 = vadd.f32 0.0, %v2230
      %2232 = vmatmul.f32.gmra.mxu0 %v1874
      %v2233 = vpop.f32.mrf.mxu0
      %v2234 = vadd.f32 0.0, %v2233
      %2235 = vmatmul.f32.gmra.mxu0 %v1876
      %v2236 = vpop.f32.mrf.mxu0
      %v2237 = vadd.f32 0.0, %v2236
      %2238 = vmatmul.f32.gmra.mxu0 %v1878
      %v2239 = vpop.f32.mrf.mxu0
      %v2240 = vadd.f32 0.0, %v2239
      %2241 = vmatmul.f32.gmra.mxu0 %v1880
      %v2242 = vpop.f32.mrf.mxu0
      %v2243 = vadd.f32 0.0, %v2242
      %2244 = vmatmul.f32.gmra.mxu0 %v1882
      %v2245 = vpop.f32.mrf.mxu0
      %v2246 = vadd.f32 0.0, %v2245
      %2247 = vmatmul.f32.gmra.mxu0 %v1884
      %v2248 = vpop.f32.mrf.mxu0
      %v2249 = vadd.f32 0.0, %v2248
      %2250 = vmatmul.f32.gmra.mxu0 %v1886
      %v2251 = vpop.f32.mrf.mxu0
      %v2252 = vadd.f32 0.0, %v2251
      %2253 = vmatmul.f32.gmra.mxu0 %v1888
      %v2254 = vpop.f32.mrf.mxu0
      %v2255 = vadd.f32 0.0, %v2254
      %2256 = vmatmul.f32.gmra.mxu0 %v1890
      %v2257 = vpop.f32.mrf.mxu0
      %v2258 = vadd.f32 0.0, %v2257
      %2259 = vmatmul.f32.gmra.mxu0 %v1892
      %v2260 = vpop.f32.mrf.mxu0
      %v2261 = vadd.f32 0.0, %v2260
      %2262 = vmatmul.f32.gmra.mxu0 %v1894
      %v2263 = vpop.f32.mrf.mxu0
      %v2264 = vadd.f32 0.0, %v2263
      %2265 = vmatmul.f32.gmra.mxu0 %v1896
      %v2266 = vpop.f32.mrf.mxu0
      %v2267 = vadd.f32 0.0, %v2266
      %2268 = vmatmul.f32.gmra.mxu0 %v1898
      %v2269 = vpop.f32.mrf.mxu0
      %v2270 = vadd.f32 0.0, %v2269
      %2271 = vmatmul.f32.gmra.mxu0 %v1900
      %v2272 = vpop.f32.mrf.mxu0
      %v2273 = vadd.f32 0.0, %v2272
      %2274 = vmatmul.f32.gmra.mxu0 %v1902
      %v2275 = vpop.f32.mrf.mxu0
      %v2276 = vadd.f32 0.0, %v2275
      %2277 = vmatmul.f32.gmra.mxu0 %v1904
      %v2278 = vpop.f32.mrf.mxu0
      %v2279 = vadd.f32 0.0, %v2278
      %2280 = vmatmul.f32.gmra.mxu0 %v1906
      %v2281 = vpop.f32.mrf.mxu0
      %v2282 = vadd.f32 0.0, %v2281
      %2283 = vmatmul.f32.gmra.mxu0 %v1908
      %v2284 = vpop.f32.mrf.mxu0
      %v2285 = vadd.f32 0.0, %v2284
      %2286 = vmatmul.f32.gmra.mxu0 %v1910
      %v2287 = vpop.f32.mrf.mxu0
      %v2288 = vadd.f32 0.0, %v2287
      %2289 = vmatmul.f32.gmra.mxu0 %v1912
      %v2290 = vpop.f32.mrf.mxu0
      %v2291 = vadd.f32 0.0, %v2290
      %2292 = vmatmul.f32.gmra.mxu0 %v1914
      %v2293 = vpop.f32.mrf.mxu0
      %v2294 = vadd.f32 0.0, %v2293
      %2295 = vmatmul.f32.gmra.mxu0 %v1916
      %v2296 = vpop.f32.mrf.mxu0
      %v2297 = vadd.f32 0.0, %v2296
      %2298 = vmatmul.f32.gmra.mxu0 %v1918
      %v2299 = vpop.f32.mrf.mxu0
      %v2300 = vadd.f32 0.0, %v2299
      %2301 = vmatmul.f32.gmra.mxu0 %v1920
      %v2302 = vpop.f32.mrf.mxu0
      %v2303 = vadd.f32 0.0, %v2302
      %2304 = vmatmul.f32.gmra.mxu0 %v1922
      %v2305 = vpop.f32.mrf.mxu0
      %v2306 = vadd.f32 0.0, %v2305
      %2307 = vmatmul.f32.gmra.mxu0 %v1924
      %v2308 = vpop.f32.mrf.mxu0
      %v2309 = vadd.f32 0.0, %v2308
      %2310 = vmatmul.f32.gmra.mxu0 %v1926
      %v2311 = vpop.f32.mrf.mxu0
      %v2312 = vadd.f32 0.0, %v2311
      %2313 = vmatmul.f32.gmra.mxu0 %v1928
      %v2314 = vpop.f32.mrf.mxu0
      %v2315 = vadd.f32 0.0, %v2314
      %2316 = vmatmul.f32.gmra.mxu0 %v1930
      %v2317 = vpop.f32.mrf.mxu0
      %v2318 = vadd.f32 0.0, %v2317
      %2319 = vmatmul.f32.gmra.mxu0 %v1932
      %v2320 = vpop.f32.mrf.mxu0
      %v2321 = vadd.f32 0.0, %v2320
      %2322 = vmatmul.f32.gmra.mxu0 %v1934
      %v2323 = vpop.f32.mrf.mxu0
      %v2324 = vadd.f32 0.0, %v2323
      %2325 = vmatmul.f32.gmra.mxu0 %v1936
      %v2326 = vpop.f32.mrf.mxu0
      %v2327 = vadd.f32 0.0, %v2326
      %2328 = vmatmul.f32.gmra.mxu0 %v1938
      %v2329 = vpop.f32.mrf.mxu0
      %v2330 = vadd.f32 0.0, %v2329
      %2331 = vmatmul.f32.gmra.mxu0 %v1940
      %v2332 = vpop.f32.mrf.mxu0
      %v2333 = vadd.f32 0.0, %v2332
      %2334 = vmatmul.f32.gmra.mxu0 %v1942
      %v2335 = vpop.f32.mrf.mxu0
      %v2336 = vadd.f32 0.0, %v2335
      %2337 = vmatmul.f32.gmra.mxu0 %v1944
      %v2338 = vpop.f32.mrf.mxu0
      %v2339 = vadd.f32 0.0, %v2338
      %2340 = vmatmul.f32.gmra.mxu0 %v1946
      %v2341 = vpop.f32.mrf.mxu0
      %v2342 = vadd.f32 0.0, %v2341
      %2343 = vmatmul.f32.gmra.mxu0 %v1948
      %v2344 = vpop.f32.mrf.mxu0
      %v2345 = vadd.f32 0.0, %v2344
      %2346 = vmatmul.f32.gmra.mxu0 %v1950
      %v2347 = vpop.f32.mrf.mxu0
      %v2348 = vadd.f32 0.0, %v2347
      %2349 = vmatmul.f32.gmra.mxu0 %v1952
      %v2350 = vpop.f32.mrf.mxu0
      %v2351 = vadd.f32 0.0, %v2350
      %2352 = vmatmul.f32.gmra.mxu0 %v1954
      %v2353 = vpop.f32.mrf.mxu0
      %v2354 = vadd.f32 0.0, %v2353
      %2355 = vmatmul.f32.gmra.mxu0 %v1956
      %v2356 = vpop.f32.mrf.mxu0
      %v2357 = vadd.f32 0.0, %v2356
      %2358 = vmatmul.f32.gmra.mxu0 %v1958
      %v2359 = vpop.f32.mrf.mxu0
      %v2360 = vadd.f32 0.0, %v2359
      %2361 = vmatmul.f32.gmra.mxu0 %v1960
      %v2362 = vpop.f32.mrf.mxu0
      %v2363 = vadd.f32 0.0, %v2362
      %2364 = vmatmul.f32.gmra.mxu0 %v1962
      %v2365 = vpop.f32.mrf.mxu0
      %v2366 = vadd.f32 0.0, %v2365
      %2367 = vmatmul.f32.gmra.mxu0 %v1964
      %v2368 = vpop.f32.mrf.mxu0
      %v2369 = vadd.f32 0.0, %v2368
      %2370 = vmatmul.f32.gmra.mxu0 %v1966
      %v2371 = vpop.f32.mrf.mxu0
      %v2372 = vadd.f32 0.0, %v2371
      %2373 = vmatmul.f32.gmra.mxu0 %v1968
      %v2374 = vpop.f32.mrf.mxu0
      %v2375 = vadd.f32 0.0, %v2374
      %2376 = vmatmul.f32.gmra.mxu0 %v1970
      %v2377 = vpop.f32.mrf.mxu0
      %v2378 = vadd.f32 0.0, %v2377
      %2379 = vmatmul.f32.gmra.mxu0 %v1972
      %v2380 = vpop.f32.mrf.mxu0
      %v2381 = vadd.f32 0.0, %v2380
      %2382 = vmatmul.f32.gmra.mxu0 %v1974
      %v2383 = vpop.f32.mrf.mxu0
      %v2384 = vadd.f32 0.0, %v2383
      %2385 = vmatmul.f32.gmra.mxu0 %v1976
      %v2386 = vpop.f32.mrf.mxu0
      %v2387 = vadd.f32 0.0, %v2386
      %2388 = vmatmul.f32.gmra.mxu0 %v1978
      %v2389 = vpop.f32.mrf.mxu0
      %v2390 = vadd.f32 0.0, %v2389
      %2391 = vmatmul.f32.gmra.mxu0 %v1980
      %v2392 = vpop.f32.mrf.mxu0
      %v2393 = vadd.f32 0.0, %v2392
      %2394 = vmatmul.f32.gmra.mxu0 %v1982
      %v2395 = vpop.f32.mrf.mxu0
      %v2396 = vadd.f32 0.0, %v2395
      %2397 = vmatmul.f32.gmra.mxu0 %v1984
      %v2398 = vpop.f32.mrf.mxu0
      %v2399 = vadd.f32 0.0, %v2398
      %2400 = vmatmul.f32.gmra.mxu0 %v1986
      %v2401 = vpop.f32.mrf.mxu0
      %v2402 = vadd.f32 0.0, %v2401
      %2403 = vmatmul.f32.gmra.mxu0 %v1988
      %v2404 = vpop.f32.mrf.mxu0
      %v2405 = vadd.f32 0.0, %v2404
      %2406 = vmatmul.f32.gmra.mxu0 %v1990
      %v2407 = vpop.f32.mrf.mxu0
      %v2408 = vadd.f32 0.0, %v2407
      %2409 = vmatmul.f32.gmra.mxu0 %v1992
      %v2410 = vpop.f32.mrf.mxu0
      %v2411 = vadd.f32 0.0, %v2410
      %2412 = vmatmul.f32.gmra.mxu0 %v1994
      %v2413 = vpop.f32.mrf.mxu0
      %v2414 = vadd.f32 0.0, %v2413
      %2415 = vmatmul.f32.gmra.mxu0 %v1996
      %v2416 = vpop.f32.mrf.mxu0
      %v2417 = vadd.f32 0.0, %v2416
      %2418 = vmatmul.f32.gmra.mxu0 %v1998
      %v2419 = vpop.f32.mrf.mxu0
      %v2420 = vadd.f32 0.0, %v2419
      %2421 = vmatmul.f32.gmra.mxu0 %v2000
      %v2422 = vpop.f32.mrf.mxu0
      %v2423 = vadd.f32 0.0, %v2422
      %2424 = vmatmul.f32.gmra.mxu0 %v2002
      %v2425 = vpop.f32.mrf.mxu0
      %v2426 = vadd.f32 0.0, %v2425
      %2427 = vmatmul.f32.gmra.mxu0 %v2004
      %v2428 = vpop.f32.mrf.mxu0
      %v2429 = vadd.f32 0.0, %v2428
      %2430 = vmatmul.f32.gmra.mxu0 %v2006
      %v2431 = vpop.f32.mrf.mxu0
      %v2432 = vadd.f32 0.0, %v2431
      %2433 = vmatmul.f32.gmra.mxu0 %v2008
      %v2434 = vpop.f32.mrf.mxu0
      %v2435 = vadd.f32 0.0, %v2434
      %2436 = vmatmul.f32.gmra.mxu0 %v2010
      %v2437 = vpop.f32.mrf.mxu0
      %v2438 = vadd.f32 0.0, %v2437
      %2439 = vmatmul.f32.gmra.mxu0 %v2012
      %v2440 = vpop.f32.mrf.mxu0
      %v2441 = vadd.f32 0.0, %v2440
      %2442 = vmatmul.f32.gmra.mxu0 %v2014
      %v2443 = vpop.f32.mrf.mxu0
      %v2444 = vadd.f32 0.0, %v2443
      %2445 = vmatmul.f32.gmra.mxu0 %v2016
      %v2446 = vpop.f32.mrf.mxu0
      %v2447 = vadd.f32 0.0, %v2446
      %2448 = vmatmul.f32.gmra.mxu0 %v2018
      %v2449 = vpop.f32.mrf.mxu0
      %v2450 = vadd.f32 0.0, %v2449
      %2451 = vmatmul.f32.gmra.mxu0 %v2020
      %v2452 = vpop.f32.mrf.mxu0
      %v2453 = vadd.f32 0.0, %v2452
      %2454 = vmatmul.f32.gmra.mxu0 %v2022
      %v2455 = vpop.f32.mrf.mxu0
      %v2456 = vadd.f32 0.0, %v2455
      %2457 = vmatmul.f32.gmra.mxu0 %v2024
      %v2458 = vpop.f32.mrf.mxu0
      %v2459 = vadd.f32 0.0, %v2458
      %2460 = vmatmul.f32.gmra.mxu0 %v2026
      %v2461 = vpop.f32.mrf.mxu0
      %v2462 = vadd.f32 0.0, %v2461
      %2463 = vmatmul.f32.gmra.mxu0 %v2028
      %v2464 = vpop.f32.mrf.mxu0
      %v2465 = vadd.f32 0.0, %v2464
      %2466 = vmatmul.f32.gmra.mxu0 %v2030
      %v2467 = vpop.f32.mrf.mxu0
      %v2468 = vadd.f32 0.0, %v2467
      %2469 = vmatmul.f32.gmra.mxu0 %v2032
      %v2470 = vpop.f32.mrf.mxu0
      %v2471 = vadd.f32 0.0, %v2470
      %2472 = vmatmul.f32.gmra.mxu0 %v2034
      %v2473 = vpop.f32.mrf.mxu0
      %v2474 = vadd.f32 0.0, %v2473
      %2475 = vmatmul.f32.gmra.mxu0 %v2036
      %v2476 = vpop.f32.mrf.mxu0
      %v2477 = vadd.f32 0.0, %v2476
      %2478 = vmatmul.f32.gmra.mxu0 %v2038
      %v2479 = vpop.f32.mrf.mxu0
      %v2480 = vadd.f32 0.0, %v2479
      %2481 = vmatmul.f32.gmra.mxu0 %v2040
      %v2482 = vpop.f32.mrf.mxu0
      %v2483 = vadd.f32 0.0, %v2482
      %2484 = vmatmul.f32.gmra.mxu0 %v2042
      %v2485 = vpop.f32.mrf.mxu0
      %v2486 = vadd.f32 0.0, %v2485
      %2487 = vmatmul.f32.gmra.mxu0 %v2044
      %v2488 = vpop.f32.mrf.mxu0
      %v2489 = vadd.f32 0.0, %v2488
      %2490 = vmatmul.f32.gmra.mxu0 %v2046
      %v2491 = vpop.f32.mrf.mxu0
      %v2492 = vadd.f32 0.0, %v2491
      %2493 = vmatmul.f32.gmra.mxu0 %v2048
      %v2494 = vpop.f32.mrf.mxu0
      %v2495 = vadd.f32 0.0, %v2494
      %2496 = vmatmul.f32.gmra.mxu0 %v2050
      %v2497 = vpop.f32.mrf.mxu0
      %v2498 = vadd.f32 0.0, %v2497
      %2499 = vmatmul.f32.gmra.mxu0 %v2052
      %v2500 = vpop.f32.mrf.mxu0
      %v2501 = vadd.f32 0.0, %v2500
      %2502 = vmatmul.f32.gmra.mxu0 %v2054
      %v2503 = vpop.f32.mrf.mxu0
      %v2504 = vadd.f32 0.0, %v2503
      %2505 = vmatmul.f32.gmra.mxu0 %v2056
      %v2506 = vpop.f32.mrf.mxu0
      %v2507 = vadd.f32 0.0, %v2506
      %2508 = vmatmul.f32.gmra.mxu0 %v2058
      %v2509 = vpop.f32.mrf.mxu0
      %v2510 = vadd.f32 0.0, %v2509
      %2511 = vmatmul.f32.gmra.mxu0 %v2060
      %v2512 = vpop.f32.mrf.mxu0
      %v2513 = vadd.f32 0.0, %v2512
      %2514 = vmatmul.f32.gmra.mxu0 %v2062
      %v2515 = vpop.f32.mrf.mxu0
      %v2516 = vadd.f32 0.0, %v2515
      %2517 = vmatmul.f32.gmra.mxu0 %v2064
      %v2518 = vpop.f32.mrf.mxu0
      %v2519 = vadd.f32 0.0, %v2518
      %2520 = vmatmul.f32.gmra.mxu0 %v2066
      %v2521 = vpop.f32.mrf.mxu0
      %v2522 = vadd.f32 0.0, %v2521
      %2523 = vmatmul.f32.gmra.mxu0 %v2068
      %v2524 = vpop.f32.mrf.mxu0
      %v2525 = vadd.f32 0.0, %v2524
      %2526 = vmatmul.f32.gmra.mxu0 %v2070
      %v2527 = vpop.f32.mrf.mxu0
      %v2528 = vadd.f32 0.0, %v2527
      %2529 = vmatmul.f32.gmra.mxu0 %v2072
      %v2530 = vpop.f32.mrf.mxu0
      %v2531 = vadd.f32 0.0, %v2530
      %2532 = vmatmul.f32.gmra.mxu0 %v2074
      %v2533 = vpop.f32.mrf.mxu0
      %v2534 = vadd.f32 0.0, %v2533
      %2535 = vmatmul.f32.gmra.mxu0 %v2076
      %v2536 = vpop.f32.mrf.mxu0
      %v2537 = vadd.f32 0.0, %v2536
      %2538 = vmatmul.f32.gmra.mxu0 %v2078
      %v2539 = vpop.f32.mrf.mxu0
      %v2540 = vadd.f32 0.0, %v2539
      %2541 = vmatmul.f32.gmra.mxu0 %v2080
      %v2542 = vpop.f32.mrf.mxu0
      %v2543 = vadd.f32 0.0, %v2542
      %2544 = vmatmul.f32.gmra.mxu0 %v2082
      %v2545 = vpop.f32.mrf.mxu0
      %v2546 = vadd.f32 0.0, %v2545
      %2547 = vmatmul.f32.gmra.mxu0 %v2084
      %v2548 = vpop.f32.mrf.mxu0
      %v2549 = vadd.f32 0.0, %v2548
      %2550 = vdwg.mxu0
      %2551 = vmatpush.msra.mxu0 %v2148
      %2552 = vmatpush.msra.mxu0 %v2146
      %2553 = vmatpush.msra.mxu0 %v2144
      %2554 = vmatpush.msra.mxu0 %v2142
      %2555 = vmatpush.msra.mxu0 %v2140
      %2556 = vmatpush.msra.mxu0 %v2138
      %2557 = vmatpush.msra.mxu0 %v2136
      %2558 = vmatpush.msra.mxu0 %v2134
      %2559 = vmatpush.msra.mxu0 %v2132
      %2560 = vmatpush.msra.mxu0 %v2130
      %2561 = vmatpush.msra.mxu0 %v2128
      %2562 = vmatpush.msra.mxu0 %v2126
      %2563 = vmatpush.msra.mxu0 %v2124
      %2564 = vmatpush.msra.mxu0 %v2122
      %2565 = vmatpush.msra.mxu0 %v2120
      %2566 = vmatpush.msra.mxu0 %v2118
      %2567 = vmatmul.f32.gmra.mxu0 %v1831
      %v2568 = vpop.f32.mrf.mxu0
      %v2569 = vadd.f32 %v2168, %v2568
      %2570 = vmatmul.f32.gmra.mxu0 %v1833
      %v2571 = vpop.f32.mrf.mxu0
      %v2572 = vadd.f32 %v2171, %v2571
      %2573 = vmatmul.f32.gmra.mxu0 %v1835
      %v2574 = vpop.f32.mrf.mxu0
      %v2575 = vadd.f32 %v2174, %v2574
      %2576 = vmatmul.f32.gmra.mxu0 %v1837
      %v2577 = vpop.f32.mrf.mxu0
      %v2578 = vadd.f32 %v2177, %v2577
      %2579 = vmatmul.f32.gmra.mxu0 %v1839
      %v2580 = vpop.f32.mrf.mxu0
      %v2581 = vadd.f32 %v2180, %v2580
      %2582 = vmatmul.f32.gmra.mxu0 %v1841
      %v2583 = vpop.f32.mrf.mxu0
      %v2584 = vadd.f32 %v2183, %v2583
      %2585 = vmatmul.f32.gmra.mxu0 %v1843
      %v2586 = vpop.f32.mrf.mxu0
      %v2587 = vadd.f32 %v2186, %v2586
      %2588 = vmatmul.f32.gmra.mxu0 %v1845
      %v2589 = vpop.f32.mrf.mxu0
      %v2590 = vadd.f32 %v2189, %v2589
      %2591 = vmatmul.f32.gmra.mxu0 %v1847
      %v2592 = vpop.f32.mrf.mxu0
      %v2593 = vadd.f32 %v2192, %v2592
      %2594 = vmatmul.f32.gmra.mxu0 %v1849
      %v2595 = vpop.f32.mrf.mxu0
      %v2596 = vadd.f32 %v2195, %v2595
      %2597 = vmatmul.f32.gmra.mxu0 %v1851
      %v2598 = vpop.f32.mrf.mxu0
      %v2599 = vadd.f32 %v2198, %v2598
      %2600 = vmatmul.f32.gmra.mxu0 %v1853
      %v2601 = vpop.f32.mrf.mxu0
      %v2602 = vadd.f32 %v2201, %v2601
      %2603 = vmatmul.f32.gmra.mxu0 %v1855
      %v2604 = vpop.f32.mrf.mxu0
      %v2605 = vadd.f32 %v2204, %v2604
      %2606 = vmatmul.f32.gmra.mxu0 %v1857
      %v2607 = vpop.f32.mrf.mxu0
      %v2608 = vadd.f32 %v2207, %v2607
      %2609 = vmatmul.f32.gmra.mxu0 %v1859
      %v2610 = vpop.f32.mrf.mxu0
      %v2611 = vadd.f32 %v2210, %v2610
      %2612 = vmatmul.f32.gmra.mxu0 %v1861
      %v2613 = vpop.f32.mrf.mxu0
      %v2614 = vadd.f32 %v2213, %v2613
      %2615 = vmatmul.f32.gmra.mxu0 %v1863
      %v2616 = vpop.f32.mrf.mxu0
      %v2617 = vadd.f32 %v2216, %v2616
      %2618 = vmatmul.f32.gmra.mxu0 %v1865
      %v2619 = vpop.f32.mrf.mxu0
      %v2620 = vadd.f32 %v2219, %v2619
      %2621 = vmatmul.f32.gmra.mxu0 %v1867
      %v2622 = vpop.f32.mrf.mxu0
      %v2623 = vadd.f32 %v2222, %v2622
      %2624 = vmatmul.f32.gmra.mxu0 %v1869
      %v2625 = vpop.f32.mrf.mxu0
      %v2626 = vadd.f32 %v2225, %v2625
      %2627 = vmatmul.f32.gmra.mxu0 %v1871
      %v2628 = vpop.f32.mrf.mxu0
      %v2629 = vadd.f32 %v2228, %v2628
      %2630 = vmatmul.f32.gmra.mxu0 %v1873
      %v2631 = vpop.f32.mrf.mxu0
      %v2632 = vadd.f32 %v2231, %v2631
      %2633 = vmatmul.f32.gmra.mxu0 %v1875
      %v2634 = vpop.f32.mrf.mxu0
      %v2635 = vadd.f32 %v2234, %v2634
      %2636 = vmatmul.f32.gmra.mxu0 %v1877
      %v2637 = vpop.f32.mrf.mxu0
      %v2638 = vadd.f32 %v2237, %v2637
      %2639 = vmatmul.f32.gmra.mxu0 %v1879
      %v2640 = vpop.f32.mrf.mxu0
      %v2641 = vadd.f32 %v2240, %v2640
      %2642 = vmatmul.f32.gmra.mxu0 %v1881
      %v2643 = vpop.f32.mrf.mxu0
      %v2644 = vadd.f32 %v2243, %v2643
      %2645 = vmatmul.f32.gmra.mxu0 %v1883
      %v2646 = vpop.f32.mrf.mxu0
      %v2647 = vadd.f32 %v2246, %v2646
      %2648 = vmatmul.f32.gmra.mxu0 %v1885
      %v2649 = vpop.f32.mrf.mxu0
      %v2650 = vadd.f32 %v2249, %v2649
      %2651 = vmatmul.f32.gmra.mxu0 %v1887
      %v2652 = vpop.f32.mrf.mxu0
      %v2653 = vadd.f32 %v2252, %v2652
      %2654 = vmatmul.f32.gmra.mxu0 %v1889
      %v2655 = vpop.f32.mrf.mxu0
      %v2656 = vadd.f32 %v2255, %v2655
      %2657 = vmatmul.f32.gmra.mxu0 %v1891
      %v2658 = vpop.f32.mrf.mxu0
      %v2659 = vadd.f32 %v2258, %v2658
      %2660 = vmatmul.f32.gmra.mxu0 %v1893
      %v2661 = vpop.f32.mrf.mxu0
      %v2662 = vadd.f32 %v2261, %v2661
      %2663 = vmatmul.f32.gmra.mxu0 %v1895
      %v2664 = vpop.f32.mrf.mxu0
      %v2665 = vadd.f32 %v2264, %v2664
      %2666 = vmatmul.f32.gmra.mxu0 %v1897
      %v2667 = vpop.f32.mrf.mxu0
      %v2668 = vadd.f32 %v2267, %v2667
      %2669 = vmatmul.f32.gmra.mxu0 %v1899
      %v2670 = vpop.f32.mrf.mxu0
      %v2671 = vadd.f32 %v2270, %v2670
      %2672 = vmatmul.f32.gmra.mxu0 %v1901
      %v2673 = vpop.f32.mrf.mxu0
      %v2674 = vadd.f32 %v2273, %v2673
      %2675 = vmatmul.f32.gmra.mxu0 %v1903
      %v2676 = vpop.f32.mrf.mxu0
      %v2677 = vadd.f32 %v2276, %v2676
      %2678 = vmatmul.f32.gmra.mxu0 %v1905
      %v2679 = vpop.f32.mrf.mxu0
      %v2680 = vadd.f32 %v2279, %v2679
      %2681 = vmatmul.f32.gmra.mxu0 %v1907
      %v2682 = vpop.f32.mrf.mxu0
      %v2683 = vadd.f32 %v2282, %v2682
      %2684 = vmatmul.f32.gmra.mxu0 %v1909
      %v2685 = vpop.f32.mrf.mxu0
      %v2686 = vadd.f32 %v2285, %v2685
      %2687 = vmatmul.f32.gmra.mxu0 %v1911
      %v2688 = vpop.f32.mrf.mxu0
      %v2689 = vadd.f32 %v2288, %v2688
      %2690 = vmatmul.f32.gmra.mxu0 %v1913
      %v2691 = vpop.f32.mrf.mxu0
      %v2692 = vadd.f32 %v2291, %v2691
      %2693 = vmatmul.f32.gmra.mxu0 %v1915
      %v2694 = vpop.f32.mrf.mxu0
      %v2695 = vadd.f32 %v2294, %v2694
      %2696 = vmatmul.f32.gmra.mxu0 %v1917
      %v2697 = vpop.f32.mrf.mxu0
      %v2698 = vadd.f32 %v2297, %v2697
      %2699 = vmatmul.f32.gmra.mxu0 %v1919
      %v2700 = vpop.f32.mrf.mxu0
      %v2701 = vadd.f32 %v2300, %v2700
      %2702 = vmatmul.f32.gmra.mxu0 %v1921
      %v2703 = vpop.f32.mrf.mxu0
      %v2704 = vadd.f32 %v2303, %v2703
      %2705 = vmatmul.f32.gmra.mxu0 %v1923
      %v2706 = vpop.f32.mrf.mxu0
      %v2707 = vadd.f32 %v2306, %v2706
      %2708 = vmatmul.f32.gmra.mxu0 %v1925
      %v2709 = vpop.f32.mrf.mxu0
      %v2710 = vadd.f32 %v2309, %v2709
      %2711 = vmatmul.f32.gmra.mxu0 %v1927
      %v2712 = vpop.f32.mrf.mxu0
      %v2713 = vadd.f32 %v2312, %v2712
      %2714 = vmatmul.f32.gmra.mxu0 %v1929
      %v2715 = vpop.f32.mrf.mxu0
      %v2716 = vadd.f32 %v2315, %v2715
      %2717 = vmatmul.f32.gmra.mxu0 %v1931
      %v2718 = vpop.f32.mrf.mxu0
      %v2719 = vadd.f32 %v2318, %v2718
      %2720 = vmatmul.f32.gmra.mxu0 %v1933
      %v2721 = vpop.f32.mrf.mxu0
      %v2722 = vadd.f32 %v2321, %v2721
      %2723 = vmatmul.f32.gmra.mxu0 %v1935
      %v2724 = vpop.f32.mrf.mxu0
      %v2725 = vadd.f32 %v2324, %v2724
      %2726 = vmatmul.f32.gmra.mxu0 %v1937
      %v2727 = vpop.f32.mrf.mxu0
      %v2728 = vadd.f32 %v2327, %v2727
      %2729 = vmatmul.f32.gmra.mxu0 %v1939
      %v2730 = vpop.f32.mrf.mxu0
      %v2731 = vadd.f32 %v2330, %v2730
      %2732 = vmatmul.f32.gmra.mxu0 %v1941
      %v2733 = vpop.f32.mrf.mxu0
      %v2734 = vadd.f32 %v2333, %v2733
      %2735 = vmatmul.f32.gmra.mxu0 %v1943
      %v2736 = vpop.f32.mrf.mxu0
      %v2737 = vadd.f32 %v2336, %v2736
      %2738 = vmatmul.f32.gmra.mxu0 %v1945
      %v2739 = vpop.f32.mrf.mxu0
      %v2740 = vadd.f32 %v2339, %v2739
      %2741 = vmatmul.f32.gmra.mxu0 %v1947
      %v2742 = vpop.f32.mrf.mxu0
      %v2743 = vadd.f32 %v2342, %v2742
      %2744 = vmatmul.f32.gmra.mxu0 %v1949
      %v2745 = vpop.f32.mrf.mxu0
      %v2746 = vadd.f32 %v2345, %v2745
      %2747 = vmatmul.f32.gmra.mxu0 %v1951
      %v2748 = vpop.f32.mrf.mxu0
      %v2749 = vadd.f32 %v2348, %v2748
      %2750 = vmatmul.f32.gmra.mxu0 %v1953
      %v2751 = vpop.f32.mrf.mxu0
      %v2752 = vadd.f32 %v2351, %v2751
      %2753 = vmatmul.f32.gmra.mxu0 %v1955
      %v2754 = vpop.f32.mrf.mxu0
      %v2755 = vadd.f32 %v2354, %v2754
      %2756 = vmatmul.f32.gmra.mxu0 %v1957
      %v2757 = vpop.f32.mrf.mxu0
      %v2758 = vadd.f32 %v2357, %v2757
      %2759 = vmatmul.f32.gmra.mxu0 %v1959
      %v2760 = vpop.f32.mrf.mxu0
      %v2761 = vadd.f32 %v2360, %v2760
      %2762 = vmatmul.f32.gmra.mxu0 %v1961
      %v2763 = vpop.f32.mrf.mxu0
      %v2764 = vadd.f32 %v2363, %v2763
      %2765 = vmatmul.f32.gmra.mxu0 %v1963
      %v2766 = vpop.f32.mrf.mxu0
      %v2767 = vadd.f32 %v2366, %v2766
      %2768 = vmatmul.f32.gmra.mxu0 %v1965
      %v2769 = vpop.f32.mrf.mxu0
      %v2770 = vadd.f32 %v2369, %v2769
      %2771 = vmatmul.f32.gmra.mxu0 %v1967
      %v2772 = vpop.f32.mrf.mxu0
      %v2773 = vadd.f32 %v2372, %v2772
      %2774 = vmatmul.f32.gmra.mxu0 %v1969
      %v2775 = vpop.f32.mrf.mxu0
      %v2776 = vadd.f32 %v2375, %v2775
      %2777 = vmatmul.f32.gmra.mxu0 %v1971
      %v2778 = vpop.f32.mrf.mxu0
      %v2779 = vadd.f32 %v2378, %v2778
      %2780 = vmatmul.f32.gmra.mxu0 %v1973
      %v2781 = vpop.f32.mrf.mxu0
      %v2782 = vadd.f32 %v2381, %v2781
      %2783 = vmatmul.f32.gmra.mxu0 %v1975
      %v2784 = vpop.f32.mrf.mxu0
      %v2785 = vadd.f32 %v2384, %v2784
      %2786 = vmatmul.f32.gmra.mxu0 %v1977
      %v2787 = vpop.f32.mrf.mxu0
      %v2788 = vadd.f32 %v2387, %v2787
      %2789 = vmatmul.f32.gmra.mxu0 %v1979
      %v2790 = vpop.f32.mrf.mxu0
      %v2791 = vadd.f32 %v2390, %v2790
      %2792 = vmatmul.f32.gmra.mxu0 %v1981
      %v2793 = vpop.f32.mrf.mxu0
      %v2794 = vadd.f32 %v2393, %v2793
      %2795 = vmatmul.f32.gmra.mxu0 %v1983
      %v2796 = vpop.f32.mrf.mxu0
      %v2797 = vadd.f32 %v2396, %v2796
      %2798 = vmatmul.f32.gmra.mxu0 %v1985
      %v2799 = vpop.f32.mrf.mxu0
      %v2800 = vadd.f32 %v2399, %v2799
      %2801 = vmatmul.f32.gmra.mxu0 %v1987
      %v2802 = vpop.f32.mrf.mxu0
      %v2803 = vadd.f32 %v2402, %v2802
      %2804 = vmatmul.f32.gmra.mxu0 %v1989
      %v2805 = vpop.f32.mrf.mxu0
      %v2806 = vadd.f32 %v2405, %v2805
      %2807 = vmatmul.f32.gmra.mxu0 %v1991
      %v2808 = vpop.f32.mrf.mxu0
      %v2809 = vadd.f32 %v2408, %v2808
      %2810 = vmatmul.f32.gmra.mxu0 %v1993
      %v2811 = vpop.f32.mrf.mxu0
      %v2812 = vadd.f32 %v2411, %v2811
      %2813 = vmatmul.f32.gmra.mxu0 %v1995
      %v2814 = vpop.f32.mrf.mxu0
      %v2815 = vadd.f32 %v2414, %v2814
      %2816 = vmatmul.f32.gmra.mxu0 %v1997
      %v2817 = vpop.f32.mrf.mxu0
      %v2818 = vadd.f32 %v2417, %v2817
      %2819 = vmatmul.f32.gmra.mxu0 %v1999
      %v2820 = vpop.f32.mrf.mxu0
      %v2821 = vadd.f32 %v2420, %v2820
      %2822 = vmatmul.f32.gmra.mxu0 %v2001
      %v2823 = vpop.f32.mrf.mxu0
      %v2824 = vadd.f32 %v2423, %v2823
      %2825 = vmatmul.f32.gmra.mxu0 %v2003
      %v2826 = vpop.f32.mrf.mxu0
      %v2827 = vadd.f32 %v2426, %v2826
      %2828 = vmatmul.f32.gmra.mxu0 %v2005
      %v2829 = vpop.f32.mrf.mxu0
      %v2830 = vadd.f32 %v2429, %v2829
      %2831 = vmatmul.f32.gmra.mxu0 %v2007
      %v2832 = vpop.f32.mrf.mxu0
      %v2833 = vadd.f32 %v2432, %v2832
      %2834 = vmatmul.f32.gmra.mxu0 %v2009
      %v2835 = vpop.f32.mrf.mxu0
      %v2836 = vadd.f32 %v2435, %v2835
      %2837 = vmatmul.f32.gmra.mxu0 %v2011
      %v2838 = vpop.f32.mrf.mxu0
      %v2839 = vadd.f32 %v2438, %v2838
      %2840 = vmatmul.f32.gmra.mxu0 %v2013
      %v2841 = vpop.f32.mrf.mxu0
      %v2842 = vadd.f32 %v2441, %v2841
      %2843 = vmatmul.f32.gmra.mxu0 %v2015
      %v2844 = vpop.f32.mrf.mxu0
      %v2845 = vadd.f32 %v2444, %v2844
      %2846 = vmatmul.f32.gmra.mxu0 %v2017
      %v2847 = vpop.f32.mrf.mxu0
      %v2848 = vadd.f32 %v2447, %v2847
      %2849 = vmatmul.f32.gmra.mxu0 %v2019
      %v2850 = vpop.f32.mrf.mxu0
      %v2851 = vadd.f32 %v2450, %v2850
      %2852 = vmatmul.f32.gmra.mxu0 %v2021
      %v2853 = vpop.f32.mrf.mxu0
      %v2854 = vadd.f32 %v2453, %v2853
      %2855 = vmatmul.f32.gmra.mxu0 %v2023
      %v2856 = vpop.f32.mrf.mxu0
      %v2857 = vadd.f32 %v2456, %v2856
      %2858 = vmatmul.f32.gmra.mxu0 %v2025
      %v2859 = vpop.f32.mrf.mxu0
      %v2860 = vadd.f32 %v2459, %v2859
      %2861 = vmatmul.f32.gmra.mxu0 %v2027
      %v2862 = vpop.f32.mrf.mxu0
      %v2863 = vadd.f32 %v2462, %v2862
      %2864 = vmatmul.f32.gmra.mxu0 %v2029
      %v2865 = vpop.f32.mrf.mxu0
      %v2866 = vadd.f32 %v2465, %v2865
      %2867 = vmatmul.f32.gmra.mxu0 %v2031
      %v2868 = vpop.f32.mrf.mxu0
      %v2869 = vadd.f32 %v2468, %v2868
      %2870 = vmatmul.f32.gmra.mxu0 %v2033
      %v2871 = vpop.f32.mrf.mxu0
      %v2872 = vadd.f32 %v2471, %v2871
      %2873 = vmatmul.f32.gmra.mxu0 %v2035
      %v2874 = vpop.f32.mrf.mxu0
      %v2875 = vadd.f32 %v2474, %v2874
      %2876 = vmatmul.f32.gmra.mxu0 %v2037
      %v2877 = vpop.f32.mrf.mxu0
      %v2878 = vadd.f32 %v2477, %v2877
      %2879 = vmatmul.f32.gmra.mxu0 %v2039
      %v2880 = vpop.f32.mrf.mxu0
      %v2881 = vadd.f32 %v2480, %v2880
      %2882 = vmatmul.f32.gmra.mxu0 %v2041
      %v2883 = vpop.f32.mrf.mxu0
      %v2884 = vadd.f32 %v2483, %v2883
      %2885 = vmatmul.f32.gmra.mxu0 %v2043
      %v2886 = vpop.f32.mrf.mxu0
      %v2887 = vadd.f32 %v2486, %v2886
      %2888 = vmatmul.f32.gmra.mxu0 %v2045
      %v2889 = vpop.f32.mrf.mxu0
      %v2890 = vadd.f32 %v2489, %v2889
      %2891 = vmatmul.f32.gmra.mxu0 %v2047
      %v2892 = vpop.f32.mrf.mxu0
      %v2893 = vadd.f32 %v2492, %v2892
      %2894 = vmatmul.f32.gmra.mxu0 %v2049
      %v2895 = vpop.f32.mrf.mxu0
      %v2896 = vadd.f32 %v2495, %v2895
      %2897 = vmatmul.f32.gmra.mxu0 %v2051
      %v2898 = vpop.f32.mrf.mxu0
      %v2899 = vadd.f32 %v2498, %v2898
      %2900 = vmatmul.f32.gmra.mxu0 %v2053
      %v2901 = vpop.f32.mrf.mxu0
      %v2902 = vadd.f32 %v2501, %v2901
      %2903 = vmatmul.f32.gmra.mxu0 %v2055
      %v2904 = vpop.f32.mrf.mxu0
      %v2905 = vadd.f32 %v2504, %v2904
      %2906 = vmatmul.f32.gmra.mxu0 %v2057
      %v2907 = vpop.f32.mrf.mxu0
      %v2908 = vadd.f32 %v2507, %v2907
      %2909 = vmatmul.f32.gmra.mxu0 %v2059
      %v2910 = vpop.f32.mrf.mxu0
      %v2911 = vadd.f32 %v2510, %v2910
      %2912 = vmatmul.f32.gmra.mxu0 %v2061
      %v2913 = vpop.f32.mrf.mxu0
      %v2914 = vadd.f32 %v2513, %v2913
      %2915 = vmatmul.f32.gmra.mxu0 %v2063
      %v2916 = vpop.f32.mrf.mxu0
      %v2917 = vadd.f32 %v2516, %v2916
      %2918 = vmatmul.f32.gmra.mxu0 %v2065
      %v2919 = vpop.f32.mrf.mxu0
      %v2920 = vadd.f32 %v2519, %v2919
      %2921 = vmatmul.f32.gmra.mxu0 %v2067
      %v2922 = vpop.f32.mrf.mxu0
      %v2923 = vadd.f32 %v2522, %v2922
      %2924 = vmatmul.f32.gmra.mxu0 %v2069
      %v2925 = vpop.f32.mrf.mxu0
      %v2926 = vadd.f32 %v2525, %v2925
      %2927 = vmatmul.f32.gmra.mxu0 %v2071
      %v2928 = vpop.f32.mrf.mxu0
      %v2929 = vadd.f32 %v2528, %v2928
      %2930 = vmatmul.f32.gmra.mxu0 %v2073
      %v2931 = vpop.f32.mrf.mxu0
      %v2932 = vadd.f32 %v2531, %v2931
      %2933 = vmatmul.f32.gmra.mxu0 %v2075
      %v2934 = vpop.f32.mrf.mxu0
      %v2935 = vadd.f32 %v2534, %v2934
      %2936 = vmatmul.f32.gmra.mxu0 %v2077
      %v2937 = vpop.f32.mrf.mxu0
      %v2938 = vadd.f32 %v2537, %v2937
      %2939 = vmatmul.f32.gmra.mxu0 %v2079
      %v2940 = vpop.f32.mrf.mxu0
      %v2941 = vadd.f32 %v2540, %v2940
      %2942 = vmatmul.f32.gmra.mxu0 %v2081
      %v2943 = vpop.f32.mrf.mxu0
      %v2944 = vadd.f32 %v2543, %v2943
      %2945 = vmatmul.f32.gmra.mxu0 %v2083
      %v2946 = vpop.f32.mrf.mxu0
      %v2947 = vadd.f32 %v2546, %v2946
      %2948 = vmatmul.f32.gmra.mxu0 %v2085
      %v2949 = vpop.f32.mrf.mxu0
      %v2950 = vadd.f32 %v2549, %v2949
      %2951 = vdwg.mxu0
      %2952 = vmatpush.msra.mxu0 %v2117
      %2953 = vmatpush.msra.mxu0 %v2115
      %2954 = vmatpush.msra.mxu0 %v2113
      %2955 = vmatpush.msra.mxu0 %v2111
      %2956 = vmatpush.msra.mxu0 %v2109
      %2957 = vmatpush.msra.mxu0 %v2107
      %2958 = vmatpush.msra.mxu0 %v2105
      %2959 = vmatpush.msra.mxu0 %v2103
      %2960 = vmatpush.msra.mxu0 %v2101
      %2961 = vmatpush.msra.mxu0 %v2099
      %2962 = vmatpush.msra.mxu0 %v2097
      %2963 = vmatpush.msra.mxu0 %v2095
      %2964 = vmatpush.msra.mxu0 %v2093
      %2965 = vmatpush.msra.mxu0 %v2091
      %2966 = vmatpush.msra.mxu0 %v2089
      %2967 = vmatpush.msra.mxu0 %v2087
      %2968 = vmatmul.f32.gmra.mxu0 %v1830
      %v2969 = vpop.f32.mrf.mxu0
      %v2970 = vadd.f32 0.0, %v2969
      %2971 = vmatmul.f32.gmra.mxu0 %v1832
      %v2972 = vpop.f32.mrf.mxu0
      %v2973 = vadd.f32 0.0, %v2972
      %2974 = vmatmul.f32.gmra.mxu0 %v1834
      %v2975 = vpop.f32.mrf.mxu0
      %v2976 = vadd.f32 0.0, %v2975
      %2977 = vmatmul.f32.gmra.mxu0 %v1836
      %v2978 = vpop.f32.mrf.mxu0
      %v2979 = vadd.f32 0.0, %v2978
      %2980 = vmatmul.f32.gmra.mxu0 %v1838
      %v2981 = vpop.f32.mrf.mxu0
      %v2982 = vadd.f32 0.0, %v2981
      %2983 = vmatmul.f32.gmra.mxu0 %v1840
      %v2984 = vpop.f32.mrf.mxu0
      %v2985 = vadd.f32 0.0, %v2984
      %2986 = vmatmul.f32.gmra.mxu0 %v1842
      %v2987 = vpop.f32.mrf.mxu0
      %v2988 = vadd.f32 0.0, %v2987
      %2989 = vmatmul.f32.gmra.mxu0 %v1844
      %v2990 = vpop.f32.mrf.mxu0
      %v2991 = vadd.f32 0.0, %v2990
      %2992 = vmatmul.f32.gmra.mxu0 %v1846
      %v2993 = vpop.f32.mrf.mxu0
      %v2994 = vadd.f32 0.0, %v2993
      %2995 = vmatmul.f32.gmra.mxu0 %v1848
      %v2996 = vpop.f32.mrf.mxu0
      %v2997 = vadd.f32 0.0, %v2996
      %2998 = vmatmul.f32.gmra.mxu0 %v1850
      %v2999 = vpop.f32.mrf.mxu0
      %v3000 = vadd.f32 0.0, %v2999
      %3001 = vmatmul.f32.gmra.mxu0 %v1852
      %v3002 = vpop.f32.mrf.mxu0
      %v3003 = vadd.f32 0.0, %v3002
      %3004 = vmatmul.f32.gmra.mxu0 %v1854
      %v3005 = vpop.f32.mrf.mxu0
      %v3006 = vadd.f32 0.0, %v3005
      %3007 = vmatmul.f32.gmra.mxu0 %v1856
      %v3008 = vpop.f32.mrf.mxu0
      %v3009 = vadd.f32 0.0, %v3008
      %3010 = vmatmul.f32.gmra.mxu0 %v1858
      %v3011 = vpop.f32.mrf.mxu0
      %v3012 = vadd.f32 0.0, %v3011
      %3013 = vmatmul.f32.gmra.mxu0 %v1860
      %v3014 = vpop.f32.mrf.mxu0
      %v3015 = vadd.f32 0.0, %v3014
      %3016 = vmatmul.f32.gmra.mxu0 %v1862
      %v3017 = vpop.f32.mrf.mxu0
      %v3018 = vadd.f32 0.0, %v3017
      %3019 = vmatmul.f32.gmra.mxu0 %v1864
      %v3020 = vpop.f32.mrf.mxu0
      %v3021 = vadd.f32 0.0, %v3020
      %3022 = vmatmul.f32.gmra.mxu0 %v1866
      %v3023 = vpop.f32.mrf.mxu0
      %v3024 = vadd.f32 0.0, %v3023
      %3025 = vmatmul.f32.gmra.mxu0 %v1868
      %v3026 = vpop.f32.mrf.mxu0
      %v3027 = vadd.f32 0.0, %v3026
      %3028 = vmatmul.f32.gmra.mxu0 %v1870
      %v3029 = vpop.f32.mrf.mxu0
      %v3030 = vadd.f32 0.0, %v3029
      %3031 = vmatmul.f32.gmra.mxu0 %v1872
      %v3032 = vpop.f32.mrf.mxu0
      %v3033 = vadd.f32 0.0, %v3032
      %3034 = vmatmul.f32.gmra.mxu0 %v1874
      %v3035 = vpop.f32.mrf.mxu0
      %v3036 = vadd.f32 0.0, %v3035
      %3037 = vmatmul.f32.gmra.mxu0 %v1876
      %v3038 = vpop.f32.mrf.mxu0
      %v3039 = vadd.f32 0.0, %v3038
      %3040 = vmatmul.f32.gmra.mxu0 %v1878
      %v3041 = vpop.f32.mrf.mxu0
      %v3042 = vadd.f32 0.0, %v3041
      %3043 = vmatmul.f32.gmra.mxu0 %v1880
      %v3044 = vpop.f32.mrf.mxu0
      %v3045 = vadd.f32 0.0, %v3044
      %3046 = vmatmul.f32.gmra.mxu0 %v1882
      %v3047 = vpop.f32.mrf.mxu0
      %v3048 = vadd.f32 0.0, %v3047
      %3049 = vmatmul.f32.gmra.mxu0 %v1884
      %v3050 = vpop.f32.mrf.mxu0
      %v3051 = vadd.f32 0.0, %v3050
      %3052 = vmatmul.f32.gmra.mxu0 %v1886
      %v3053 = vpop.f32.mrf.mxu0
      %v3054 = vadd.f32 0.0, %v3053
      %3055 = vmatmul.f32.gmra.mxu0 %v1888
      %v3056 = vpop.f32.mrf.mxu0
      %v3057 = vadd.f32 0.0, %v3056
      %3058 = vmatmul.f32.gmra.mxu0 %v1890
      %v3059 = vpop.f32.mrf.mxu0
      %v3060 = vadd.f32 0.0, %v3059
      %3061 = vmatmul.f32.gmra.mxu0 %v1892
      %v3062 = vpop.f32.mrf.mxu0
      %v3063 = vadd.f32 0.0, %v3062
      %3064 = vmatmul.f32.gmra.mxu0 %v1894
      %v3065 = vpop.f32.mrf.mxu0
      %v3066 = vadd.f32 0.0, %v3065
      %3067 = vmatmul.f32.gmra.mxu0 %v1896
      %v3068 = vpop.f32.mrf.mxu0
      %v3069 = vadd.f32 0.0, %v3068
      %3070 = vmatmul.f32.gmra.mxu0 %v1898
      %v3071 = vpop.f32.mrf.mxu0
      %v3072 = vadd.f32 0.0, %v3071
      %3073 = vmatmul.f32.gmra.mxu0 %v1900
      %v3074 = vpop.f32.mrf.mxu0
      %v3075 = vadd.f32 0.0, %v3074
      %3076 = vmatmul.f32.gmra.mxu0 %v1902
      %v3077 = vpop.f32.mrf.mxu0
      %v3078 = vadd.f32 0.0, %v3077
      %3079 = vmatmul.f32.gmra.mxu0 %v1904
      %v3080 = vpop.f32.mrf.mxu0
      %v3081 = vadd.f32 0.0, %v3080
      %3082 = vmatmul.f32.gmra.mxu0 %v1906
      %v3083 = vpop.f32.mrf.mxu0
      %v3084 = vadd.f32 0.0, %v3083
      %3085 = vmatmul.f32.gmra.mxu0 %v1908
      %v3086 = vpop.f32.mrf.mxu0
      %v3087 = vadd.f32 0.0, %v3086
      %3088 = vmatmul.f32.gmra.mxu0 %v1910
      %v3089 = vpop.f32.mrf.mxu0
      %v3090 = vadd.f32 0.0, %v3089
      %3091 = vmatmul.f32.gmra.mxu0 %v1912
      %v3092 = vpop.f32.mrf.mxu0
      %v3093 = vadd.f32 0.0, %v3092
      %3094 = vmatmul.f32.gmra.mxu0 %v1914
      %v3095 = vpop.f32.mrf.mxu0
      %v3096 = vadd.f32 0.0, %v3095
      %3097 = vmatmul.f32.gmra.mxu0 %v1916
      %v3098 = vpop.f32.mrf.mxu0
      %v3099 = vadd.f32 0.0, %v3098
      %3100 = vmatmul.f32.gmra.mxu0 %v1918
      %v3101 = vpop.f32.mrf.mxu0
      %v3102 = vadd.f32 0.0, %v3101
      %3103 = vmatmul.f32.gmra.mxu0 %v1920
      %v3104 = vpop.f32.mrf.mxu0
      %v3105 = vadd.f32 0.0, %v3104
      %3106 = vmatmul.f32.gmra.mxu0 %v1922
      %v3107 = vpop.f32.mrf.mxu0
      %v3108 = vadd.f32 0.0, %v3107
      %3109 = vmatmul.f32.gmra.mxu0 %v1924
      %v3110 = vpop.f32.mrf.mxu0
      %v3111 = vadd.f32 0.0, %v3110
      %3112 = vmatmul.f32.gmra.mxu0 %v1926
      %v3113 = vpop.f32.mrf.mxu0
      %v3114 = vadd.f32 0.0, %v3113
      %3115 = vmatmul.f32.gmra.mxu0 %v1928
      %v3116 = vpop.f32.mrf.mxu0
      %v3117 = vadd.f32 0.0, %v3116
      %3118 = vmatmul.f32.gmra.mxu0 %v1930
      %v3119 = vpop.f32.mrf.mxu0
      %v3120 = vadd.f32 0.0, %v3119
      %3121 = vmatmul.f32.gmra.mxu0 %v1932
      %v3122 = vpop.f32.mrf.mxu0
      %v3123 = vadd.f32 0.0, %v3122
      %3124 = vmatmul.f32.gmra.mxu0 %v1934
      %v3125 = vpop.f32.mrf.mxu0
      %v3126 = vadd.f32 0.0, %v3125
      %3127 = vmatmul.f32.gmra.mxu0 %v1936
      %v3128 = vpop.f32.mrf.mxu0
      %v3129 = vadd.f32 0.0, %v3128
      %3130 = vmatmul.f32.gmra.mxu0 %v1938
      %v3131 = vpop.f32.mrf.mxu0
      %v3132 = vadd.f32 0.0, %v3131
      %3133 = vmatmul.f32.gmra.mxu0 %v1940
      %v3134 = vpop.f32.mrf.mxu0
      %v3135 = vadd.f32 0.0, %v3134
      %3136 = vmatmul.f32.gmra.mxu0 %v1942
      %v3137 = vpop.f32.mrf.mxu0
      %v3138 = vadd.f32 0.0, %v3137
      %3139 = vmatmul.f32.gmra.mxu0 %v1944
      %v3140 = vpop.f32.mrf.mxu0
      %v3141 = vadd.f32 0.0, %v3140
      %3142 = vmatmul.f32.gmra.mxu0 %v1946
      %v3143 = vpop.f32.mrf.mxu0
      %v3144 = vadd.f32 0.0, %v3143
      %3145 = vmatmul.f32.gmra.mxu0 %v1948
      %v3146 = vpop.f32.mrf.mxu0
      %v3147 = vadd.f32 0.0, %v3146
      %3148 = vmatmul.f32.gmra.mxu0 %v1950
      %v3149 = vpop.f32.mrf.mxu0
      %v3150 = vadd.f32 0.0, %v3149
      %3151 = vmatmul.f32.gmra.mxu0 %v1952
      %v3152 = vpop.f32.mrf.mxu0
      %v3153 = vadd.f32 0.0, %v3152
      %3154 = vmatmul.f32.gmra.mxu0 %v1954
      %v3155 = vpop.f32.mrf.mxu0
      %v3156 = vadd.f32 0.0, %v3155
      %3157 = vmatmul.f32.gmra.mxu0 %v1956
      %v3158 = vpop.f32.mrf.mxu0
      %v3159 = vadd.f32 0.0, %v3158
      %3160 = vmatmul.f32.gmra.mxu0 %v1958
      %v3161 = vpop.f32.mrf.mxu0
      %v3162 = vadd.f32 0.0, %v3161
      %3163 = vmatmul.f32.gmra.mxu0 %v1960
      %v3164 = vpop.f32.mrf.mxu0
      %v3165 = vadd.f32 0.0, %v3164
      %3166 = vmatmul.f32.gmra.mxu0 %v1962
      %v3167 = vpop.f32.mrf.mxu0
      %v3168 = vadd.f32 0.0, %v3167
      %3169 = vmatmul.f32.gmra.mxu0 %v1964
      %v3170 = vpop.f32.mrf.mxu0
      %v3171 = vadd.f32 0.0, %v3170
      %3172 = vmatmul.f32.gmra.mxu0 %v1966
      %v3173 = vpop.f32.mrf.mxu0
      %v3174 = vadd.f32 0.0, %v3173
      %3175 = vmatmul.f32.gmra.mxu0 %v1968
      %v3176 = vpop.f32.mrf.mxu0
      %v3177 = vadd.f32 0.0, %v3176
      %3178 = vmatmul.f32.gmra.mxu0 %v1970
      %v3179 = vpop.f32.mrf.mxu0
      %v3180 = vadd.f32 0.0, %v3179
      %3181 = vmatmul.f32.gmra.mxu0 %v1972
      %v3182 = vpop.f32.mrf.mxu0
      %v3183 = vadd.f32 0.0, %v3182
      %3184 = vmatmul.f32.gmra.mxu0 %v1974
      %v3185 = vpop.f32.mrf.mxu0
      %v3186 = vadd.f32 0.0, %v3185
      %3187 = vmatmul.f32.gmra.mxu0 %v1976
      %v3188 = vpop.f32.mrf.mxu0
      %v3189 = vadd.f32 0.0, %v3188
      %3190 = vmatmul.f32.gmra.mxu0 %v1978
      %v3191 = vpop.f32.mrf.mxu0
      %v3192 = vadd.f32 0.0, %v3191
      %3193 = vmatmul.f32.gmra.mxu0 %v1980
      %v3194 = vpop.f32.mrf.mxu0
      %v3195 = vadd.f32 0.0, %v3194
      %3196 = vmatmul.f32.gmra.mxu0 %v1982
      %v3197 = vpop.f32.mrf.mxu0
      %v3198 = vadd.f32 0.0, %v3197
      %3199 = vmatmul.f32.gmra.mxu0 %v1984
      %v3200 = vpop.f32.mrf.mxu0
      %v3201 = vadd.f32 0.0, %v3200
      %3202 = vmatmul.f32.gmra.mxu0 %v1986
      %v3203 = vpop.f32.mrf.mxu0
      %v3204 = vadd.f32 0.0, %v3203
      %3205 = vmatmul.f32.gmra.mxu0 %v1988
      %v3206 = vpop.f32.mrf.mxu0
      %v3207 = vadd.f32 0.0, %v3206
      %3208 = vmatmul.f32.gmra.mxu0 %v1990
      %v3209 = vpop.f32.mrf.mxu0
      %v3210 = vadd.f32 0.0, %v3209
      %3211 = vmatmul.f32.gmra.mxu0 %v1992
      %v3212 = vpop.f32.mrf.mxu0
      %v3213 = vadd.f32 0.0, %v3212
      %3214 = vmatmul.f32.gmra.mxu0 %v1994
      %v3215 = vpop.f32.mrf.mxu0
      %v3216 = vadd.f32 0.0, %v3215
      %3217 = vmatmul.f32.gmra.mxu0 %v1996
      %v3218 = vpop.f32.mrf.mxu0
      %v3219 = vadd.f32 0.0, %v3218
      %3220 = vmatmul.f32.gmra.mxu0 %v1998
      %v3221 = vpop.f32.mrf.mxu0
      %v3222 = vadd.f32 0.0, %v3221
      %3223 = vmatmul.f32.gmra.mxu0 %v2000
      %v3224 = vpop.f32.mrf.mxu0
      %v3225 = vadd.f32 0.0, %v3224
      %3226 = vmatmul.f32.gmra.mxu0 %v2002
      %v3227 = vpop.f32.mrf.mxu0
      %v3228 = vadd.f32 0.0, %v3227
      %3229 = vmatmul.f32.gmra.mxu0 %v2004
      %v3230 = vpop.f32.mrf.mxu0
      %v3231 = vadd.f32 0.0, %v3230
      %3232 = vmatmul.f32.gmra.mxu0 %v2006
      %v3233 = vpop.f32.mrf.mxu0
      %v3234 = vadd.f32 0.0, %v3233
      %3235 = vmatmul.f32.gmra.mxu0 %v2008
      %v3236 = vpop.f32.mrf.mxu0
      %v3237 = vadd.f32 0.0, %v3236
      %3238 = vmatmul.f32.gmra.mxu0 %v2010
      %v3239 = vpop.f32.mrf.mxu0
      %v3240 = vadd.f32 0.0, %v3239
      %3241 = vmatmul.f32.gmra.mxu0 %v2012
      %v3242 = vpop.f32.mrf.mxu0
      %v3243 = vadd.f32 0.0, %v3242
      %3244 = vmatmul.f32.gmra.mxu0 %v2014
      %v3245 = vpop.f32.mrf.mxu0
      %v3246 = vadd.f32 0.0, %v3245
      %3247 = vmatmul.f32.gmra.mxu0 %v2016
      %v3248 = vpop.f32.mrf.mxu0
      %v3249 = vadd.f32 0.0, %v3248
      %3250 = vmatmul.f32.gmra.mxu0 %v2018
      %v3251 = vpop.f32.mrf.mxu0
      %v3252 = vadd.f32 0.0, %v3251
      %3253 = vmatmul.f32.gmra.mxu0 %v2020
      %v3254 = vpop.f32.mrf.mxu0
      %v3255 = vadd.f32 0.0, %v3254
      %3256 = vmatmul.f32.gmra.mxu0 %v2022
      %v3257 = vpop.f32.mrf.mxu0
      %v3258 = vadd.f32 0.0, %v3257
      %3259 = vmatmul.f32.gmra.mxu0 %v2024
      %v3260 = vpop.f32.mrf.mxu0
      %v3261 = vadd.f32 0.0, %v3260
      %3262 = vmatmul.f32.gmra.mxu0 %v2026
      %v3263 = vpop.f32.mrf.mxu0
      %v3264 = vadd.f32 0.0, %v3263
      %3265 = vmatmul.f32.gmra.mxu0 %v2028
      %v3266 = vpop.f32.mrf.mxu0
      %v3267 = vadd.f32 0.0, %v3266
      %3268 = vmatmul.f32.gmra.mxu0 %v2030
      %v3269 = vpop.f32.mrf.mxu0
      %v3270 = vadd.f32 0.0, %v3269
      %3271 = vmatmul.f32.gmra.mxu0 %v2032
      %v3272 = vpop.f32.mrf.mxu0
      %v3273 = vadd.f32 0.0, %v3272
      %3274 = vmatmul.f32.gmra.mxu0 %v2034
      %v3275 = vpop.f32.mrf.mxu0
      %v3276 = vadd.f32 0.0, %v3275
      %3277 = vmatmul.f32.gmra.mxu0 %v2036
      %v3278 = vpop.f32.mrf.mxu0
      %v3279 = vadd.f32 0.0, %v3278
      %3280 = vmatmul.f32.gmra.mxu0 %v2038
      %v3281 = vpop.f32.mrf.mxu0
      %v3282 = vadd.f32 0.0, %v3281
      %3283 = vmatmul.f32.gmra.mxu0 %v2040
      %v3284 = vpop.f32.mrf.mxu0
      %v3285 = vadd.f32 0.0, %v3284
      %3286 = vmatmul.f32.gmra.mxu0 %v2042
      %v3287 = vpop.f32.mrf.mxu0
      %v3288 = vadd.f32 0.0, %v3287
      %3289 = vmatmul.f32.gmra.mxu0 %v2044
      %v3290 = vpop.f32.mrf.mxu0
      %v3291 = vadd.f32 0.0, %v3290
      %3292 = vmatmul.f32.gmra.mxu0 %v2046
      %v3293 = vpop.f32.mrf.mxu0
      %v3294 = vadd.f32 0.0, %v3293
      %3295 = vmatmul.f32.gmra.mxu0 %v2048
      %v3296 = vpop.f32.mrf.mxu0
      %v3297 = vadd.f32 0.0, %v3296
      %3298 = vmatmul.f32.gmra.mxu0 %v2050
      %v3299 = vpop.f32.mrf.mxu0
      %v3300 = vadd.f32 0.0, %v3299
      %3301 = vmatmul.f32.gmra.mxu0 %v2052
      %v3302 = vpop.f32.mrf.mxu0
      %v3303 = vadd.f32 0.0, %v3302
      %3304 = vmatmul.f32.gmra.mxu0 %v2054
      %v3305 = vpop.f32.mrf.mxu0
      %v3306 = vadd.f32 0.0, %v3305
      %3307 = vmatmul.f32.gmra.mxu0 %v2056
      %v3308 = vpop.f32.mrf.mxu0
      %v3309 = vadd.f32 0.0, %v3308
      %3310 = vmatmul.f32.gmra.mxu0 %v2058
      %v3311 = vpop.f32.mrf.mxu0
      %v3312 = vadd.f32 0.0, %v3311
      %3313 = vmatmul.f32.gmra.mxu0 %v2060
      %v3314 = vpop.f32.mrf.mxu0
      %v3315 = vadd.f32 0.0, %v3314
      %3316 = vmatmul.f32.gmra.mxu0 %v2062
      %v3317 = vpop.f32.mrf.mxu0
      %v3318 = vadd.f32 0.0, %v3317
      %3319 = vmatmul.f32.gmra.mxu0 %v2064
      %v3320 = vpop.f32.mrf.mxu0
      %v3321 = vadd.f32 0.0, %v3320
      %3322 = vmatmul.f32.gmra.mxu0 %v2066
      %v3323 = vpop.f32.mrf.mxu0
      %v3324 = vadd.f32 0.0, %v3323
      %3325 = vmatmul.f32.gmra.mxu0 %v2068
      %v3326 = vpop.f32.mrf.mxu0
      %v3327 = vadd.f32 0.0, %v3326
      %3328 = vmatmul.f32.gmra.mxu0 %v2070
      %v3329 = vpop.f32.mrf.mxu0
      %v3330 = vadd.f32 0.0, %v3329
      %3331 = vmatmul.f32.gmra.mxu0 %v2072
      %v3332 = vpop.f32.mrf.mxu0
      %v3333 = vadd.f32 0.0, %v3332
      %3334 = vmatmul.f32.gmra.mxu0 %v2074
      %v3335 = vpop.f32.mrf.mxu0
      %v3336 = vadd.f32 0.0, %v3335
      %3337 = vmatmul.f32.gmra.mxu0 %v2076
      %v3338 = vpop.f32.mrf.mxu0
      %v3339 = vadd.f32 0.0, %v3338
      %3340 = vmatmul.f32.gmra.mxu0 %v2078
      %v3341 = vpop.f32.mrf.mxu0
      %v3342 = vadd.f32 0.0, %v3341
      %3343 = vmatmul.f32.gmra.mxu0 %v2080
      %v3344 = vpop.f32.mrf.mxu0
      %v3345 = vadd.f32 0.0, %v3344
      %3346 = vmatmul.f32.gmra.mxu0 %v2082
      %v3347 = vpop.f32.mrf.mxu0
      %v3348 = vadd.f32 0.0, %v3347
      %3349 = vmatmul.f32.gmra.mxu0 %v2084
      %v3350 = vpop.f32.mrf.mxu0
      %v3351 = vadd.f32 0.0, %v3350
      %3352 = vdwg.mxu0
      %3353 = vmatpush.msra.mxu0 %v2149
      %3354 = vmatpush.msra.mxu0 %v2147
      %3355 = vmatpush.msra.mxu0 %v2145
      %3356 = vmatpush.msra.mxu0 %v2143
      %3357 = vmatpush.msra.mxu0 %v2141
      %3358 = vmatpush.msra.mxu0 %v2139
      %3359 = vmatpush.msra.mxu0 %v2137
      %3360 = vmatpush.msra.mxu0 %v2135
      %3361 = vmatpush.msra.mxu0 %v2133
      %3362 = vmatpush.msra.mxu0 %v2131
      %3363 = vmatpush.msra.mxu0 %v2129
      %3364 = vmatpush.msra.mxu0 %v2127
      %3365 = vmatpush.msra.mxu0 %v2125
      %3366 = vmatpush.msra.mxu0 %v2123
      %3367 = vmatpush.msra.mxu0 %v2121
      %3368 = vmatpush.msra.mxu0 %v2119
      %3369 = vmatmul.f32.gmra.mxu0 %v1831
      %v3370 = vpop.f32.mrf.mxu0
      %v3371 = vadd.f32 %v2970, %v3370
      %3372 = vmatmul.f32.gmra.mxu0 %v1833
      %v3373 = vpop.f32.mrf.mxu0
      %v3374 = vadd.f32 %v2973, %v3373
      %3375 = vmatmul.f32.gmra.mxu0 %v1835
      %v3376 = vpop.f32.mrf.mxu0
      %v3377 = vadd.f32 %v2976, %v3376
      %3378 = vmatmul.f32.gmra.mxu0 %v1837
      %v3379 = vpop.f32.mrf.mxu0
      %v3380 = vadd.f32 %v2979, %v3379
      %3381 = vmatmul.f32.gmra.mxu0 %v1839
      %v3382 = vpop.f32.mrf.mxu0
      %v3383 = vadd.f32 %v2982, %v3382
      %3384 = vmatmul.f32.gmra.mxu0 %v1841
      %v3385 = vpop.f32.mrf.mxu0
      %v3386 = vadd.f32 %v2985, %v3385
      %3387 = vmatmul.f32.gmra.mxu0 %v1843
      %v3388 = vpop.f32.mrf.mxu0
      %v3389 = vadd.f32 %v2988, %v3388
      %3390 = vmatmul.f32.gmra.mxu0 %v1845
      %v3391 = vpop.f32.mrf.mxu0
      %v3392 = vadd.f32 %v2991, %v3391
      %3393 = vmatmul.f32.gmra.mxu0 %v1847
      %v3394 = vpop.f32.mrf.mxu0
      %v3395 = vadd.f32 %v2994, %v3394
      %3396 = vmatmul.f32.gmra.mxu0 %v1849
      %v3397 = vpop.f32.mrf.mxu0
      %v3398 = vadd.f32 %v2997, %v3397
      %3399 = vmatmul.f32.gmra.mxu0 %v1851
      %v3400 = vpop.f32.mrf.mxu0
      %v3401 = vadd.f32 %v3000, %v3400
      %3402 = vmatmul.f32.gmra.mxu0 %v1853
      %v3403 = vpop.f32.mrf.mxu0
      %v3404 = vadd.f32 %v3003, %v3403
      %3405 = vmatmul.f32.gmra.mxu0 %v1855
      %v3406 = vpop.f32.mrf.mxu0
      %v3407 = vadd.f32 %v3006, %v3406
      %3408 = vmatmul.f32.gmra.mxu0 %v1857
      %v3409 = vpop.f32.mrf.mxu0
      %v3410 = vadd.f32 %v3009, %v3409
      %3411 = vmatmul.f32.gmra.mxu0 %v1859
      %v3412 = vpop.f32.mrf.mxu0
      %v3413 = vadd.f32 %v3012, %v3412
      %3414 = vmatmul.f32.gmra.mxu0 %v1861
      %v3415 = vpop.f32.mrf.mxu0
      %v3416 = vadd.f32 %v3015, %v3415
      %3417 = vmatmul.f32.gmra.mxu0 %v1863
      %v3418 = vpop.f32.mrf.mxu0
      %v3419 = vadd.f32 %v3018, %v3418
      %3420 = vmatmul.f32.gmra.mxu0 %v1865
      %v3421 = vpop.f32.mrf.mxu0
      %v3422 = vadd.f32 %v3021, %v3421
      %3423 = vmatmul.f32.gmra.mxu0 %v1867
      %v3424 = vpop.f32.mrf.mxu0
      %v3425 = vadd.f32 %v3024, %v3424
      %3426 = vmatmul.f32.gmra.mxu0 %v1869
      %v3427 = vpop.f32.mrf.mxu0
      %v3428 = vadd.f32 %v3027, %v3427
      %3429 = vmatmul.f32.gmra.mxu0 %v1871
      %v3430 = vpop.f32.mrf.mxu0
      %v3431 = vadd.f32 %v3030, %v3430
      %3432 = vmatmul.f32.gmra.mxu0 %v1873
      %v3433 = vpop.f32.mrf.mxu0
      %v3434 = vadd.f32 %v3033, %v3433
      %3435 = vmatmul.f32.gmra.mxu0 %v1875
      %v3436 = vpop.f32.mrf.mxu0
      %v3437 = vadd.f32 %v3036, %v3436
      %3438 = vmatmul.f32.gmra.mxu0 %v1877
      %v3439 = vpop.f32.mrf.mxu0
      %v3440 = vadd.f32 %v3039, %v3439
      %3441 = vmatmul.f32.gmra.mxu0 %v1879
      %v3442 = vpop.f32.mrf.mxu0
      %v3443 = vadd.f32 %v3042, %v3442
      %3444 = vmatmul.f32.gmra.mxu0 %v1881
      %v3445 = vpop.f32.mrf.mxu0
      %v3446 = vadd.f32 %v3045, %v3445
      %3447 = vmatmul.f32.gmra.mxu0 %v1883
      %v3448 = vpop.f32.mrf.mxu0
      %v3449 = vadd.f32 %v3048, %v3448
      %3450 = vmatmul.f32.gmra.mxu0 %v1885
      %v3451 = vpop.f32.mrf.mxu0
      %v3452 = vadd.f32 %v3051, %v3451
      %3453 = vmatmul.f32.gmra.mxu0 %v1887
      %v3454 = vpop.f32.mrf.mxu0
      %v3455 = vadd.f32 %v3054, %v3454
      %3456 = vmatmul.f32.gmra.mxu0 %v1889
      %v3457 = vpop.f32.mrf.mxu0
      %v3458 = vadd.f32 %v3057, %v3457
      %3459 = vmatmul.f32.gmra.mxu0 %v1891
      %v3460 = vpop.f32.mrf.mxu0
      %v3461 = vadd.f32 %v3060, %v3460
      %3462 = vmatmul.f32.gmra.mxu0 %v1893
      %v3463 = vpop.f32.mrf.mxu0
      %v3464 = vadd.f32 %v3063, %v3463
      %3465 = vmatmul.f32.gmra.mxu0 %v1895
      %v3466 = vpop.f32.mrf.mxu0
      %v3467 = vadd.f32 %v3066, %v3466
      %3468 = vmatmul.f32.gmra.mxu0 %v1897
      %v3469 = vpop.f32.mrf.mxu0
      %v3470 = vadd.f32 %v3069, %v3469
      %3471 = vmatmul.f32.gmra.mxu0 %v1899
      %v3472 = vpop.f32.mrf.mxu0
      %v3473 = vadd.f32 %v3072, %v3472
      %3474 = vmatmul.f32.gmra.mxu0 %v1901
      %v3475 = vpop.f32.mrf.mxu0
      %v3476 = vadd.f32 %v3075, %v3475
      %3477 = vmatmul.f32.gmra.mxu0 %v1903
      %v3478 = vpop.f32.mrf.mxu0
      %v3479 = vadd.f32 %v3078, %v3478
      %3480 = vmatmul.f32.gmra.mxu0 %v1905
      %v3481 = vpop.f32.mrf.mxu0
      %v3482 = vadd.f32 %v3081, %v3481
      %3483 = vmatmul.f32.gmra.mxu0 %v1907
      %v3484 = vpop.f32.mrf.mxu0
      %v3485 = vadd.f32 %v3084, %v3484
      %3486 = vmatmul.f32.gmra.mxu0 %v1909
      %v3487 = vpop.f32.mrf.mxu0
      %v3488 = vadd.f32 %v3087, %v3487
      %3489 = vmatmul.f32.gmra.mxu0 %v1911
      %v3490 = vpop.f32.mrf.mxu0
      %v3491 = vadd.f32 %v3090, %v3490
      %3492 = vmatmul.f32.gmra.mxu0 %v1913
      %v3493 = vpop.f32.mrf.mxu0
      %v3494 = vadd.f32 %v3093, %v3493
      %3495 = vmatmul.f32.gmra.mxu0 %v1915
      %v3496 = vpop.f32.mrf.mxu0
      %v3497 = vadd.f32 %v3096, %v3496
      %3498 = vmatmul.f32.gmra.mxu0 %v1917
      %v3499 = vpop.f32.mrf.mxu0
      %v3500 = vadd.f32 %v3099, %v3499
      %3501 = vmatmul.f32.gmra.mxu0 %v1919
      %v3502 = vpop.f32.mrf.mxu0
      %v3503 = vadd.f32 %v3102, %v3502
      %3504 = vmatmul.f32.gmra.mxu0 %v1921
      %v3505 = vpop.f32.mrf.mxu0
      %v3506 = vadd.f32 %v3105, %v3505
      %3507 = vmatmul.f32.gmra.mxu0 %v1923
      %v3508 = vpop.f32.mrf.mxu0
      %v3509 = vadd.f32 %v3108, %v3508
      %3510 = vmatmul.f32.gmra.mxu0 %v1925
      %v3511 = vpop.f32.mrf.mxu0
      %v3512 = vadd.f32 %v3111, %v3511
      %3513 = vmatmul.f32.gmra.mxu0 %v1927
      %v3514 = vpop.f32.mrf.mxu0
      %v3515 = vadd.f32 %v3114, %v3514
      %3516 = vmatmul.f32.gmra.mxu0 %v1929
      %v3517 = vpop.f32.mrf.mxu0
      %v3518 = vadd.f32 %v3117, %v3517
      %3519 = vmatmul.f32.gmra.mxu0 %v1931
      %v3520 = vpop.f32.mrf.mxu0
      %v3521 = vadd.f32 %v3120, %v3520
      %3522 = vmatmul.f32.gmra.mxu0 %v1933
      %v3523 = vpop.f32.mrf.mxu0
      %v3524 = vadd.f32 %v3123, %v3523
      %3525 = vmatmul.f32.gmra.mxu0 %v1935
      %v3526 = vpop.f32.mrf.mxu0
      %v3527 = vadd.f32 %v3126, %v3526
      %3528 = vmatmul.f32.gmra.mxu0 %v1937
      %v3529 = vpop.f32.mrf.mxu0
      %v3530 = vadd.f32 %v3129, %v3529
      %3531 = vmatmul.f32.gmra.mxu0 %v1939
      %v3532 = vpop.f32.mrf.mxu0
      %v3533 = vadd.f32 %v3132, %v3532
      %3534 = vmatmul.f32.gmra.mxu0 %v1941
      %v3535 = vpop.f32.mrf.mxu0
      %v3536 = vadd.f32 %v3135, %v3535
      %3537 = vmatmul.f32.gmra.mxu0 %v1943
      %v3538 = vpop.f32.mrf.mxu0
      %v3539 = vadd.f32 %v3138, %v3538
      %3540 = vmatmul.f32.gmra.mxu0 %v1945
      %v3541 = vpop.f32.mrf.mxu0
      %v3542 = vadd.f32 %v3141, %v3541
      %3543 = vmatmul.f32.gmra.mxu0 %v1947
      %v3544 = vpop.f32.mrf.mxu0
      %v3545 = vadd.f32 %v3144, %v3544
      %3546 = vmatmul.f32.gmra.mxu0 %v1949
      %v3547 = vpop.f32.mrf.mxu0
      %v3548 = vadd.f32 %v3147, %v3547
      %3549 = vmatmul.f32.gmra.mxu0 %v1951
      %v3550 = vpop.f32.mrf.mxu0
      %v3551 = vadd.f32 %v3150, %v3550
      %3552 = vmatmul.f32.gmra.mxu0 %v1953
      %v3553 = vpop.f32.mrf.mxu0
      %v3554 = vadd.f32 %v3153, %v3553
      %3555 = vmatmul.f32.gmra.mxu0 %v1955
      %v3556 = vpop.f32.mrf.mxu0
      %v3557 = vadd.f32 %v3156, %v3556
      %3558 = vmatmul.f32.gmra.mxu0 %v1957
      %v3559 = vpop.f32.mrf.mxu0
      %v3560 = vadd.f32 %v3159, %v3559
      %3561 = vmatmul.f32.gmra.mxu0 %v1959
      %v3562 = vpop.f32.mrf.mxu0
      %v3563 = vadd.f32 %v3162, %v3562
      %3564 = vmatmul.f32.gmra.mxu0 %v1961
      %v3565 = vpop.f32.mrf.mxu0
      %v3566 = vadd.f32 %v3165, %v3565
      %3567 = vmatmul.f32.gmra.mxu0 %v1963
      %v3568 = vpop.f32.mrf.mxu0
      %v3569 = vadd.f32 %v3168, %v3568
      %3570 = vmatmul.f32.gmra.mxu0 %v1965
      %v3571 = vpop.f32.mrf.mxu0
      %v3572 = vadd.f32 %v3171, %v3571
      %3573 = vmatmul.f32.gmra.mxu0 %v1967
      %v3574 = vpop.f32.mrf.mxu0
      %v3575 = vadd.f32 %v3174, %v3574
      %3576 = vmatmul.f32.gmra.mxu0 %v1969
      %v3577 = vpop.f32.mrf.mxu0
      %v3578 = vadd.f32 %v3177, %v3577
      %3579 = vmatmul.f32.gmra.mxu0 %v1971
      %v3580 = vpop.f32.mrf.mxu0
      %v3581 = vadd.f32 %v3180, %v3580
      %3582 = vmatmul.f32.gmra.mxu0 %v1973
      %v3583 = vpop.f32.mrf.mxu0
      %v3584 = vadd.f32 %v3183, %v3583
      %3585 = vmatmul.f32.gmra.mxu0 %v1975
      %v3586 = vpop.f32.mrf.mxu0
      %v3587 = vadd.f32 %v3186, %v3586
      %3588 = vmatmul.f32.gmra.mxu0 %v1977
      %v3589 = vpop.f32.mrf.mxu0
      %v3590 = vadd.f32 %v3189, %v3589
      %3591 = vmatmul.f32.gmra.mxu0 %v1979
      %v3592 = vpop.f32.mrf.mxu0
      %v3593 = vadd.f32 %v3192, %v3592
      %3594 = vmatmul.f32.gmra.mxu0 %v1981
      %v3595 = vpop.f32.mrf.mxu0
      %v3596 = vadd.f32 %v3195, %v3595
      %3597 = vmatmul.f32.gmra.mxu0 %v1983
      %v3598 = vpop.f32.mrf.mxu0
      %v3599 = vadd.f32 %v3198, %v3598
      %3600 = vmatmul.f32.gmra.mxu0 %v1985
      %v3601 = vpop.f32.mrf.mxu0
      %v3602 = vadd.f32 %v3201, %v3601
      %3603 = vmatmul.f32.gmra.mxu0 %v1987
      %v3604 = vpop.f32.mrf.mxu0
      %v3605 = vadd.f32 %v3204, %v3604
      %3606 = vmatmul.f32.gmra.mxu0 %v1989
      %v3607 = vpop.f32.mrf.mxu0
      %v3608 = vadd.f32 %v3207, %v3607
      %3609 = vmatmul.f32.gmra.mxu0 %v1991
      %v3610 = vpop.f32.mrf.mxu0
      %v3611 = vadd.f32 %v3210, %v3610
      %3612 = vmatmul.f32.gmra.mxu0 %v1993
      %v3613 = vpop.f32.mrf.mxu0
      %v3614 = vadd.f32 %v3213, %v3613
      %3615 = vmatmul.f32.gmra.mxu0 %v1995
      %v3616 = vpop.f32.mrf.mxu0
      %v3617 = vadd.f32 %v3216, %v3616
      %3618 = vmatmul.f32.gmra.mxu0 %v1997
      %v3619 = vpop.f32.mrf.mxu0
      %v3620 = vadd.f32 %v3219, %v3619
      %3621 = vmatmul.f32.gmra.mxu0 %v1999
      %v3622 = vpop.f32.mrf.mxu0
      %v3623 = vadd.f32 %v3222, %v3622
      %3624 = vmatmul.f32.gmra.mxu0 %v2001
      %v3625 = vpop.f32.mrf.mxu0
      %v3626 = vadd.f32 %v3225, %v3625
      %3627 = vmatmul.f32.gmra.mxu0 %v2003
      %v3628 = vpop.f32.mrf.mxu0
      %v3629 = vadd.f32 %v3228, %v3628
      %3630 = vmatmul.f32.gmra.mxu0 %v2005
      %v3631 = vpop.f32.mrf.mxu0
      %v3632 = vadd.f32 %v3231, %v3631
      %3633 = vmatmul.f32.gmra.mxu0 %v2007
      %v3634 = vpop.f32.mrf.mxu0
      %v3635 = vadd.f32 %v3234, %v3634
      %3636 = vmatmul.f32.gmra.mxu0 %v2009
      %v3637 = vpop.f32.mrf.mxu0
      %v3638 = vadd.f32 %v3237, %v3637
      %3639 = vmatmul.f32.gmra.mxu0 %v2011
      %v3640 = vpop.f32.mrf.mxu0
      %v3641 = vadd.f32 %v3240, %v3640
      %3642 = vmatmul.f32.gmra.mxu0 %v2013
      %v3643 = vpop.f32.mrf.mxu0
      %v3644 = vadd.f32 %v3243, %v3643
      %3645 = vmatmul.f32.gmra.mxu0 %v2015
      %v3646 = vpop.f32.mrf.mxu0
      %v3647 = vadd.f32 %v3246, %v3646
      %3648 = vmatmul.f32.gmra.mxu0 %v2017
      %v3649 = vpop.f32.mrf.mxu0
      %v3650 = vadd.f32 %v3249, %v3649
      %3651 = vmatmul.f32.gmra.mxu0 %v2019
      %v3652 = vpop.f32.mrf.mxu0
      %v3653 = vadd.f32 %v3252, %v3652
      %3654 = vmatmul.f32.gmra.mxu0 %v2021
      %v3655 = vpop.f32.mrf.mxu0
      %v3656 = vadd.f32 %v3255, %v3655
      %3657 = vmatmul.f32.gmra.mxu0 %v2023
      %v3658 = vpop.f32.mrf.mxu0
      %v3659 = vadd.f32 %v3258, %v3658
      %3660 = vmatmul.f32.gmra.mxu0 %v2025
      %v3661 = vpop.f32.mrf.mxu0
      %v3662 = vadd.f32 %v3261, %v3661
      %3663 = vmatmul.f32.gmra.mxu0 %v2027
      %v3664 = vpop.f32.mrf.mxu0
      %v3665 = vadd.f32 %v3264, %v3664
      %3666 = vmatmul.f32.gmra.mxu0 %v2029
      %v3667 = vpop.f32.mrf.mxu0
      %v3668 = vadd.f32 %v3267, %v3667
      %3669 = vmatmul.f32.gmra.mxu0 %v2031
      %v3670 = vpop.f32.mrf.mxu0
      %v3671 = vadd.f32 %v3270, %v3670
      %3672 = vmatmul.f32.gmra.mxu0 %v2033
      %v3673 = vpop.f32.mrf.mxu0
      %v3674 = vadd.f32 %v3273, %v3673
      %3675 = vmatmul.f32.gmra.mxu0 %v2035
      %v3676 = vpop.f32.mrf.mxu0
      %v3677 = vadd.f32 %v3276, %v3676
      %3678 = vmatmul.f32.gmra.mxu0 %v2037
      %v3679 = vpop.f32.mrf.mxu0
      %v3680 = vadd.f32 %v3279, %v3679
      %3681 = vmatmul.f32.gmra.mxu0 %v2039
      %v3682 = vpop.f32.mrf.mxu0
      %v3683 = vadd.f32 %v3282, %v3682
      %3684 = vmatmul.f32.gmra.mxu0 %v2041
      %v3685 = vpop.f32.mrf.mxu0
      %v3686 = vadd.f32 %v3285, %v3685
      %3687 = vmatmul.f32.gmra.mxu0 %v2043
      %v3688 = vpop.f32.mrf.mxu0
      %v3689 = vadd.f32 %v3288, %v3688
      %3690 = vmatmul.f32.gmra.mxu0 %v2045
      %v3691 = vpop.f32.mrf.mxu0
      %v3692 = vadd.f32 %v3291, %v3691
      %3693 = vmatmul.f32.gmra.mxu0 %v2047
      %v3694 = vpop.f32.mrf.mxu0
      %v3695 = vadd.f32 %v3294, %v3694
      %3696 = vmatmul.f32.gmra.mxu0 %v2049
      %v3697 = vpop.f32.mrf.mxu0
      %v3698 = vadd.f32 %v3297, %v3697
      %3699 = vmatmul.f32.gmra.mxu0 %v2051
      %v3700 = vpop.f32.mrf.mxu0
      %v3701 = vadd.f32 %v3300, %v3700
      %3702 = vmatmul.f32.gmra.mxu0 %v2053
      %v3703 = vpop.f32.mrf.mxu0
      %v3704 = vadd.f32 %v3303, %v3703
      %3705 = vmatmul.f32.gmra.mxu0 %v2055
      %v3706 = vpop.f32.mrf.mxu0
      %v3707 = vadd.f32 %v3306, %v3706
      %3708 = vmatmul.f32.gmra.mxu0 %v2057
      %v3709 = vpop.f32.mrf.mxu0
      %v3710 = vadd.f32 %v3309, %v3709
      %3711 = vmatmul.f32.gmra.mxu0 %v2059
      %v3712 = vpop.f32.mrf.mxu0
      %v3713 = vadd.f32 %v3312, %v3712
      %3714 = vmatmul.f32.gmra.mxu0 %v2061
      %v3715 = vpop.f32.mrf.mxu0
      %v3716 = vadd.f32 %v3315, %v3715
      %3717 = vmatmul.f32.gmra.mxu0 %v2063
      %v3718 = vpop.f32.mrf.mxu0
      %v3719 = vadd.f32 %v3318, %v3718
      %3720 = vmatmul.f32.gmra.mxu0 %v2065
      %v3721 = vpop.f32.mrf.mxu0
      %v3722 = vadd.f32 %v3321, %v3721
      %3723 = vmatmul.f32.gmra.mxu0 %v2067
      %v3724 = vpop.f32.mrf.mxu0
      %v3725 = vadd.f32 %v3324, %v3724
      %3726 = vmatmul.f32.gmra.mxu0 %v2069
      %v3727 = vpop.f32.mrf.mxu0
      %v3728 = vadd.f32 %v3327, %v3727
      %3729 = vmatmul.f32.gmra.mxu0 %v2071
      %v3730 = vpop.f32.mrf.mxu0
      %v3731 = vadd.f32 %v3330, %v3730
      %3732 = vmatmul.f32.gmra.mxu0 %v2073
      %v3733 = vpop.f32.mrf.mxu0
      %v3734 = vadd.f32 %v3333, %v3733
      %3735 = vmatmul.f32.gmra.mxu0 %v2075
      %v3736 = vpop.f32.mrf.mxu0
      %v3737 = vadd.f32 %v3336, %v3736
      %3738 = vmatmul.f32.gmra.mxu0 %v2077
      %v3739 = vpop.f32.mrf.mxu0
      %v3740 = vadd.f32 %v3339, %v3739
      %3741 = vmatmul.f32.gmra.mxu0 %v2079
      %v3742 = vpop.f32.mrf.mxu0
      %v3743 = vadd.f32 %v3342, %v3742
      %3744 = vmatmul.f32.gmra.mxu0 %v2081
      %v3745 = vpop.f32.mrf.mxu0
      %v3746 = vadd.f32 %v3345, %v3745
      %3747 = vmatmul.f32.gmra.mxu0 %v2083
      %v3748 = vpop.f32.mrf.mxu0
      %v3749 = vadd.f32 %v3348, %v3748
      %3750 = vmatmul.f32.gmra.mxu0 %v2085
      %v3751 = vpop.f32.mrf.mxu0
      %v3752 = vadd.f32 %v3351, %v3751
      %3753 = vdwg.mxu0
      %v3754 = vld [vmem:[%s6 + $0x1] sm:$0x1]
      %v3756 = vperm.slane %v3754, 0
      %v3758 = vadd.f32 %v3371, %v3756
      %v3759 = vadd.f32 %v3374, %v3756
      %v3760 = vadd.f32 %v3377, %v3756
      %v3761 = vadd.f32 %v3380, %v3756
      %v3762 = vadd.f32 %v3383, %v3756
      %v3763 = vadd.f32 %v3386, %v3756
      %v3764 = vadd.f32 %v3389, %v3756
      %v3765 = vadd.f32 %v3392, %v3756
      %v3766 = vadd.f32 %v3395, %v3756
      %v3767 = vadd.f32 %v3398, %v3756
      %v3768 = vadd.f32 %v3401, %v3756
      %v3769 = vadd.f32 %v3404, %v3756
      %v3770 = vadd.f32 %v3407, %v3756
      %v3771 = vadd.f32 %v3410, %v3756
      %v3772 = vadd.f32 %v3413, %v3756
      %v3773 = vadd.f32 %v3416, %v3756
      %v3774 = vadd.f32 %v3419, %v3756
      %v3775 = vadd.f32 %v3422, %v3756
      %v3776 = vadd.f32 %v3425, %v3756
      %v3777 = vadd.f32 %v3428, %v3756
      %v3778 = vadd.f32 %v3431, %v3756
      %v3779 = vadd.f32 %v3434, %v3756
      %v3780 = vadd.f32 %v3437, %v3756
      %v3781 = vadd.f32 %v3440, %v3756
      %v3782 = vadd.f32 %v3443, %v3756
      %v3783 = vadd.f32 %v3446, %v3756
      %v3784 = vadd.f32 %v3449, %v3756
      %v3785 = vadd.f32 %v3452, %v3756
      %v3786 = vadd.f32 %v3455, %v3756
      %v3787 = vadd.f32 %v3458, %v3756
      %v3788 = vadd.f32 %v3461, %v3756
      %v3789 = vadd.f32 %v3464, %v3756
      %v3790 = vadd.f32 %v3467, %v3756
      %v3791 = vadd.f32 %v3470, %v3756
      %v3792 = vadd.f32 %v3473, %v3756
      %v3793 = vadd.f32 %v3476, %v3756
      %v3794 = vadd.f32 %v3479, %v3756
      %v3795 = vadd.f32 %v3482, %v3756
      %v3796 = vadd.f32 %v3485, %v3756
      %v3797 = vadd.f32 %v3488, %v3756
      %v3798 = vadd.f32 %v3491, %v3756
      %v3799 = vadd.f32 %v3494, %v3756
      %v3800 = vadd.f32 %v3497, %v3756
      %v3801 = vadd.f32 %v3500, %v3756
      %v3802 = vadd.f32 %v3503, %v3756
      %v3803 = vadd.f32 %v3506, %v3756
      %v3804 = vadd.f32 %v3509, %v3756
      %v3805 = vadd.f32 %v3512, %v3756
      %v3806 = vadd.f32 %v3515, %v3756
      %v3807 = vadd.f32 %v3518, %v3756
      %v3808 = vadd.f32 %v3521, %v3756
      %v3809 = vadd.f32 %v3524, %v3756
      %v3810 = vadd.f32 %v3527, %v3756
      %v3811 = vadd.f32 %v3530, %v3756
      %v3812 = vadd.f32 %v3533, %v3756
      %v3813 = vadd.f32 %v3536, %v3756
      %v3814 = vadd.f32 %v3539, %v3756
      %v3815 = vadd.f32 %v3542, %v3756
      %v3816 = vadd.f32 %v3545, %v3756
      %v3817 = vadd.f32 %v3548, %v3756
      %v3818 = vadd.f32 %v3551, %v3756
      %v3819 = vadd.f32 %v3554, %v3756
      %v3820 = vadd.f32 %v3557, %v3756
      %v3821 = vadd.f32 %v3560, %v3756
      %v3822 = vadd.f32 %v3563, %v3756
      %v3823 = vadd.f32 %v3566, %v3756
      %v3824 = vadd.f32 %v3569, %v3756
      %v3825 = vadd.f32 %v3572, %v3756
      %v3826 = vadd.f32 %v3575, %v3756
      %v3827 = vadd.f32 %v3578, %v3756
      %v3828 = vadd.f32 %v3581, %v3756
      %v3829 = vadd.f32 %v3584, %v3756
      %v3830 = vadd.f32 %v3587, %v3756
      %v3831 = vadd.f32 %v3590, %v3756
      %v3832 = vadd.f32 %v3593, %v3756
      %v3833 = vadd.f32 %v3596, %v3756
      %v3834 = vadd.f32 %v3599, %v3756
      %v3835 = vadd.f32 %v3602, %v3756
      %v3836 = vadd.f32 %v3605, %v3756
      %v3837 = vadd.f32 %v3608, %v3756
      %v3838 = vadd.f32 %v3611, %v3756
      %v3839 = vadd.f32 %v3614, %v3756
      %v3840 = vadd.f32 %v3617, %v3756
      %v3841 = vadd.f32 %v3620, %v3756
      %v3842 = vadd.f32 %v3623, %v3756
      %v3843 = vadd.f32 %v3626, %v3756
      %v3844 = vadd.f32 %v3629, %v3756
      %v3845 = vadd.f32 %v3632, %v3756
      %v3846 = vadd.f32 %v3635, %v3756
      %v3847 = vadd.f32 %v3638, %v3756
      %v3848 = vadd.f32 %v3641, %v3756
      %v3849 = vadd.f32 %v3644, %v3756
      %v3850 = vadd.f32 %v3647, %v3756
      %v3851 = vadd.f32 %v3650, %v3756
      %v3852 = vadd.f32 %v3653, %v3756
      %v3853 = vadd.f32 %v3656, %v3756
      %v3854 = vadd.f32 %v3659, %v3756
      %v3855 = vadd.f32 %v3662, %v3756
      %v3856 = vadd.f32 %v3665, %v3756
      %v3857 = vadd.f32 %v3668, %v3756
      %v3858 = vadd.f32 %v3671, %v3756
      %v3859 = vadd.f32 %v3674, %v3756
      %v3860 = vadd.f32 %v3677, %v3756
      %v3861 = vadd.f32 %v3680, %v3756
      %v3862 = vadd.f32 %v3683, %v3756
      %v3863 = vadd.f32 %v3686, %v3756
      %v3864 = vadd.f32 %v3689, %v3756
      %v3865 = vadd.f32 %v3692, %v3756
      %v3866 = vadd.f32 %v3695, %v3756
      %v3867 = vadd.f32 %v3698, %v3756
      %v3868 = vadd.f32 %v3701, %v3756
      %v3869 = vadd.f32 %v3704, %v3756
      %v3870 = vadd.f32 %v3707, %v3756
      %v3871 = vadd.f32 %v3710, %v3756
      %v3872 = vadd.f32 %v3713, %v3756
      %v3873 = vadd.f32 %v3716, %v3756
      %v3874 = vadd.f32 %v3719, %v3756
      %v3875 = vadd.f32 %v3722, %v3756
      %v3876 = vadd.f32 %v3725, %v3756
      %v3877 = vadd.f32 %v3728, %v3756
      %v3878 = vadd.f32 %v3731, %v3756
      %v3879 = vadd.f32 %v3734, %v3756
      %v3880 = vadd.f32 %v3737, %v3756
      %v3881 = vadd.f32 %v3740, %v3756
      %v3882 = vadd.f32 %v3743, %v3756
      %v3883 = vadd.f32 %v3746, %v3756
      %v3884 = vadd.f32 %v3749, %v3756
      %v3885 = vadd.f32 %v3752, %v3756
      %v3886 = vld [vmem:[%s5] sm:$0xff]
      %v3887 = vld [vmem:[%s5 + $0x8] sm:$0xff]
      %v3888 = vld [vmem:[%s5 + $0x10] sm:$0xff]
      %vm3889 = vcmask 195584
      %v3891 = vsel %vm3889, %v486, 0
      %v3894 = vsel %vm3889, %v487, 0
      %v3897 = vsel %vm3889, %v488, 0
      %v3900 = vsel %vm3889, %v489, 0
      %v3903 = vsel %vm3889, %v490, 0
      %v3906 = vsel %vm3889, %v491, 0
      %v3909 = vsel %vm3889, %v492, 0
      %v3912 = vsel %vm3889, %v493, 0
      %v3915 = vsel %vm3889, %v494, 0
      %v3918 = vsel %vm3889, %v495, 0
      %v3921 = vsel %vm3889, %v496, 0
      %v3924 = vsel %vm3889, %v497, 0
      %v3927 = vsel %vm3889, %v498, 0
      %v3930 = vsel %vm3889, %v499, 0
      %v3933 = vsel %vm3889, %v500, 0
      %v3936 = vsel %vm3889, %v501, 0
      %v3939 = vsel %vm3889, %v502, 0
      %v3942 = vsel %vm3889, %v503, 0
      %v3945 = vsel %vm3889, %v504, 0
      %v3948 = vsel %vm3889, %v505, 0
      %v3951 = vsel %vm3889, %v506, 0
      %v3954 = vsel %vm3889, %v507, 0
      %v3957 = vsel %vm3889, %v508, 0
      %v3960 = vsel %vm3889, %v509, 0
      %v3963 = vsel %vm3889, %v510, 0
      %v3966 = vsel %vm3889, %v511, 0
      %v3969 = vsel %vm3889, %v512, 0
      %v3972 = vsel %vm3889, %v513, 0
      %v3975 = vsel %vm3889, %v514, 0
      %v3978 = vsel %vm3889, %v515, 0
      %v3981 = vsel %vm3889, %v516, 0
      %v3984 = vsel %vm3889, %v517, 0
      %v3987 = vsel %vm3889, %v518, 0
      %v3990 = vsel %vm3889, %v519, 0
      %v3993 = vsel %vm3889, %v520, 0
      %v3996 = vsel %vm3889, %v521, 0
      %v3999 = vsel %vm3889, %v522, 0
      %v4002 = vsel %vm3889, %v523, 0
      %v4005 = vsel %vm3889, %v524, 0
      %v4008 = vsel %vm3889, %v525, 0
      %v4011 = vsel %vm3889, %v526, 0
      %v4014 = vsel %vm3889, %v527, 0
      %v4017 = vsel %vm3889, %v528, 0
      %v4020 = vsel %vm3889, %v529, 0
      %v4023 = vsel %vm3889, %v530, 0
      %v4026 = vsel %vm3889, %v531, 0
      %v4029 = vsel %vm3889, %v532, 0
      %v4032 = vsel %vm3889, %v533, 0
      %v4035 = vsel %vm3889, %v534, 0
      %v4038 = vsel %vm3889, %v535, 0
      %v4041 = vsel %vm3889, %v536, 0
      %v4044 = vsel %vm3889, %v537, 0
      %v4047 = vsel %vm3889, %v538, 0
      %v4050 = vsel %vm3889, %v539, 0
      %v4053 = vsel %vm3889, %v540, 0
      %v4056 = vsel %vm3889, %v541, 0
      %v4059 = vsel %vm3889, %v542, 0
      %v4062 = vsel %vm3889, %v543, 0
      %v4065 = vsel %vm3889, %v544, 0
      %v4068 = vsel %vm3889, %v545, 0
      %v4071 = vsel %vm3889, %v546, 0
      %v4074 = vsel %vm3889, %v547, 0
      %v4077 = vsel %vm3889, %v548, 0
      %v4080 = vsel %vm3889, %v549, 0
      %v4083 = vsel %vm3889, %v550, 0
      %v4086 = vsel %vm3889, %v551, 0
      %v4089 = vsel %vm3889, %v552, 0
      %v4092 = vsel %vm3889, %v553, 0
      %v4095 = vsel %vm3889, %v554, 0
      %v4098 = vsel %vm3889, %v555, 0
      %v4101 = vsel %vm3889, %v556, 0
      %v4104 = vsel %vm3889, %v557, 0
      %v4107 = vsel %vm3889, %v558, 0
      %v4110 = vsel %vm3889, %v559, 0
      %v4113 = vsel %vm3889, %v560, 0
      %v4116 = vsel %vm3889, %v561, 0
      %v4119 = vsel %vm3889, %v562, 0
      %v4122 = vsel %vm3889, %v563, 0
      %v4125 = vsel %vm3889, %v564, 0
      %v4128 = vsel %vm3889, %v565, 0
      %v4131 = vsel %vm3889, %v566, 0
      %v4134 = vsel %vm3889, %v567, 0
      %v4137 = vsel %vm3889, %v568, 0
      %v4140 = vsel %vm3889, %v569, 0
      %v4143 = vsel %vm3889, %v570, 0
      %v4146 = vsel %vm3889, %v571, 0
      %v4149 = vsel %vm3889, %v572, 0
      %v4152 = vsel %vm3889, %v573, 0
      %v4155 = vsel %vm3889, %v574, 0
      %v4158 = vsel %vm3889, %v575, 0
      %v4161 = vsel %vm3889, %v576, 0
      %v4164 = vsel %vm3889, %v577, 0
      %v4167 = vsel %vm3889, %v578, 0
      %v4170 = vsel %vm3889, %v579, 0
      %v4173 = vsel %vm3889, %v580, 0
      %v4176 = vsel %vm3889, %v581, 0
      %v4179 = vsel %vm3889, %v582, 0
      %v4182 = vsel %vm3889, %v583, 0
      %v4185 = vsel %vm3889, %v584, 0
      %v4188 = vsel %vm3889, %v585, 0
      %v4191 = vsel %vm3889, %v586, 0
      %v4194 = vsel %vm3889, %v587, 0
      %v4197 = vsel %vm3889, %v588, 0
      %v4200 = vsel %vm3889, %v589, 0
      %v4203 = vsel %vm3889, %v590, 0
      %v4206 = vsel %vm3889, %v591, 0
      %v4209 = vsel %vm3889, %v592, 0
      %v4212 = vsel %vm3889, %v593, 0
      %v4215 = vsel %vm3889, %v594, 0
      %v4218 = vsel %vm3889, %v595, 0
      %v4221 = vsel %vm3889, %v596, 0
      %v4224 = vsel %vm3889, %v597, 0
      %v4227 = vsel %vm3889, %v598, 0
      %v4230 = vsel %vm3889, %v599, 0
      %v4233 = vsel %vm3889, %v600, 0
      %v4236 = vsel %vm3889, %v601, 0
      %v4239 = vsel %vm3889, %v602, 0
      %v4242 = vsel %vm3889, %v603, 0
      %v4245 = vsel %vm3889, %v604, 0
      %v4248 = vsel %vm3889, %v605, 0
      %v4251 = vsel %vm3889, %v606, 0
      %v4254 = vsel %vm3889, %v607, 0
      %v4257 = vsel %vm3889, %v608, 0
      %v4260 = vsel %vm3889, %v609, 0
      %v4263 = vsel %vm3889, %v610, 0
      %v4266 = vsel %vm3889, %v611, 0
      %v4269 = vsel %vm3889, %v612, 0
      %v4272 = vsel %vm3889, %v613, 0
      %4274 = vmatpush.msra.mxu0 0.0
      %4275 = vmatpush.msra.mxu0 0.0
      %4276 = vmatpush.msra.mxu0 0.0
      %4277 = vmatpush.msra.mxu0 0.0
      %4278 = vmatpush.msra.mxu0 0.0
      %4279 = vmatpush.msra.mxu0 0.0
      %4280 = vmatpush.msra.mxu0 0.0
      %4281 = vmatpush.msra.mxu0 0.0
      %4282 = vmatpush.msra.mxu0 0.0
      %4283 = vmatpush.msra.mxu0 0.0
      %4284 = vmatpush.msra.mxu0 0.0
      %4285 = vmatpush.msra.mxu0 0.0
      %4286 = vmatpush.msra.mxu0 0.0
      %4287 = vmatpush.msra.mxu0 %v3888
      %4288 = vmatpush.msra.mxu0 %v3887
      %4289 = vmatpush.msra.mxu0 %v3886
      %4290 = vmatmul.f32.gmra.mxu0 %v3891
      %v4291 = vpop.f32.mrf.mxu0
      %v4292 = vadd.f32 0.0, %v4291
      %4293 = vmatmul.f32.gmra.mxu0 %v3894
      %v4294 = vpop.f32.mrf.mxu0
      %v4295 = vadd.f32 0.0, %v4294
      %4296 = vmatmul.f32.gmra.mxu0 %v3897
      %v4297 = vpop.f32.mrf.mxu0
      %v4298 = vadd.f32 0.0, %v4297
      %4299 = vmatmul.f32.gmra.mxu0 %v3900
      %v4300 = vpop.f32.mrf.mxu0
      %v4301 = vadd.f32 0.0, %v4300
      %4302 = vmatmul.f32.gmra.mxu0 %v3903
      %v4303 = vpop.f32.mrf.mxu0
      %v4304 = vadd.f32 0.0, %v4303
      %4305 = vmatmul.f32.gmra.mxu0 %v3906
      %v4306 = vpop.f32.mrf.mxu0
      %v4307 = vadd.f32 0.0, %v4306
      %4308 = vmatmul.f32.gmra.mxu0 %v3909
      %v4309 = vpop.f32.mrf.mxu0
      %v4310 = vadd.f32 0.0, %v4309
      %4311 = vmatmul.f32.gmra.mxu0 %v3912
      %v4312 = vpop.f32.mrf.mxu0
      %v4313 = vadd.f32 0.0, %v4312
      %4314 = vmatmul.f32.gmra.mxu0 %v3915
      %v4315 = vpop.f32.mrf.mxu0
      %v4316 = vadd.f32 0.0, %v4315
      %4317 = vmatmul.f32.gmra.mxu0 %v3918
      %v4318 = vpop.f32.mrf.mxu0
      %v4319 = vadd.f32 0.0, %v4318
      %4320 = vmatmul.f32.gmra.mxu0 %v3921
      %v4321 = vpop.f32.mrf.mxu0
      %v4322 = vadd.f32 0.0, %v4321
      %4323 = vmatmul.f32.gmra.mxu0 %v3924
      %v4324 = vpop.f32.mrf.mxu0
      %v4325 = vadd.f32 0.0, %v4324
      %4326 = vmatmul.f32.gmra.mxu0 %v3927
      %v4327 = vpop.f32.mrf.mxu0
      %v4328 = vadd.f32 0.0, %v4327
      %4329 = vmatmul.f32.gmra.mxu0 %v3930
      %v4330 = vpop.f32.mrf.mxu0
      %v4331 = vadd.f32 0.0, %v4330
      %4332 = vmatmul.f32.gmra.mxu0 %v3933
      %v4333 = vpop.f32.mrf.mxu0
      %v4334 = vadd.f32 0.0, %v4333
      %4335 = vmatmul.f32.gmra.mxu0 %v3936
      %v4336 = vpop.f32.mrf.mxu0
      %v4337 = vadd.f32 0.0, %v4336
      %4338 = vmatmul.f32.gmra.mxu0 %v3939
      %v4339 = vpop.f32.mrf.mxu0
      %v4340 = vadd.f32 0.0, %v4339
      %4341 = vmatmul.f32.gmra.mxu0 %v3942
      %v4342 = vpop.f32.mrf.mxu0
      %v4343 = vadd.f32 0.0, %v4342
      %4344 = vmatmul.f32.gmra.mxu0 %v3945
      %v4345 = vpop.f32.mrf.mxu0
      %v4346 = vadd.f32 0.0, %v4345
      %4347 = vmatmul.f32.gmra.mxu0 %v3948
      %v4348 = vpop.f32.mrf.mxu0
      %v4349 = vadd.f32 0.0, %v4348
      %4350 = vmatmul.f32.gmra.mxu0 %v3951
      %v4351 = vpop.f32.mrf.mxu0
      %v4352 = vadd.f32 0.0, %v4351
      %4353 = vmatmul.f32.gmra.mxu0 %v3954
      %v4354 = vpop.f32.mrf.mxu0
      %v4355 = vadd.f32 0.0, %v4354
      %4356 = vmatmul.f32.gmra.mxu0 %v3957
      %v4357 = vpop.f32.mrf.mxu0
      %v4358 = vadd.f32 0.0, %v4357
      %4359 = vmatmul.f32.gmra.mxu0 %v3960
      %v4360 = vpop.f32.mrf.mxu0
      %v4361 = vadd.f32 0.0, %v4360
      %4362 = vmatmul.f32.gmra.mxu0 %v3963
      %v4363 = vpop.f32.mrf.mxu0
      %v4364 = vadd.f32 0.0, %v4363
      %4365 = vmatmul.f32.gmra.mxu0 %v3966
      %v4366 = vpop.f32.mrf.mxu0
      %v4367 = vadd.f32 0.0, %v4366
      %4368 = vmatmul.f32.gmra.mxu0 %v3969
      %v4369 = vpop.f32.mrf.mxu0
      %v4370 = vadd.f32 0.0, %v4369
      %4371 = vmatmul.f32.gmra.mxu0 %v3972
      %v4372 = vpop.f32.mrf.mxu0
      %v4373 = vadd.f32 0.0, %v4372
      %4374 = vmatmul.f32.gmra.mxu0 %v3975
      %v4375 = vpop.f32.mrf.mxu0
      %v4376 = vadd.f32 0.0, %v4375
      %4377 = vmatmul.f32.gmra.mxu0 %v3978
      %v4378 = vpop.f32.mrf.mxu0
      %v4379 = vadd.f32 0.0, %v4378
      %4380 = vmatmul.f32.gmra.mxu0 %v3981
      %v4381 = vpop.f32.mrf.mxu0
      %v4382 = vadd.f32 0.0, %v4381
      %4383 = vmatmul.f32.gmra.mxu0 %v3984
      %v4384 = vpop.f32.mrf.mxu0
      %v4385 = vadd.f32 0.0, %v4384
      %4386 = vmatmul.f32.gmra.mxu0 %v3987
      %v4387 = vpop.f32.mrf.mxu0
      %v4388 = vadd.f32 0.0, %v4387
      %4389 = vmatmul.f32.gmra.mxu0 %v3990
      %v4390 = vpop.f32.mrf.mxu0
      %v4391 = vadd.f32 0.0, %v4390
      %4392 = vmatmul.f32.gmra.mxu0 %v3993
      %v4393 = vpop.f32.mrf.mxu0
      %v4394 = vadd.f32 0.0, %v4393
      %4395 = vmatmul.f32.gmra.mxu0 %v3996
      %v4396 = vpop.f32.mrf.mxu0
      %v4397 = vadd.f32 0.0, %v4396
      %4398 = vmatmul.f32.gmra.mxu0 %v3999
      %v4399 = vpop.f32.mrf.mxu0
      %v4400 = vadd.f32 0.0, %v4399
      %4401 = vmatmul.f32.gmra.mxu0 %v4002
      %v4402 = vpop.f32.mrf.mxu0
      %v4403 = vadd.f32 0.0, %v4402
      %4404 = vmatmul.f32.gmra.mxu0 %v4005
      %v4405 = vpop.f32.mrf.mxu0
      %v4406 = vadd.f32 0.0, %v4405
      %4407 = vmatmul.f32.gmra.mxu0 %v4008
      %v4408 = vpop.f32.mrf.mxu0
      %v4409 = vadd.f32 0.0, %v4408
      %4410 = vmatmul.f32.gmra.mxu0 %v4011
      %v4411 = vpop.f32.mrf.mxu0
      %v4412 = vadd.f32 0.0, %v4411
      %4413 = vmatmul.f32.gmra.mxu0 %v4014
      %v4414 = vpop.f32.mrf.mxu0
      %v4415 = vadd.f32 0.0, %v4414
      %4416 = vmatmul.f32.gmra.mxu0 %v4017
      %v4417 = vpop.f32.mrf.mxu0
      %v4418 = vadd.f32 0.0, %v4417
      %4419 = vmatmul.f32.gmra.mxu0 %v4020
      %v4420 = vpop.f32.mrf.mxu0
      %v4421 = vadd.f32 0.0, %v4420
      %4422 = vmatmul.f32.gmra.mxu0 %v4023
      %v4423 = vpop.f32.mrf.mxu0
      %v4424 = vadd.f32 0.0, %v4423
      %4425 = vmatmul.f32.gmra.mxu0 %v4026
      %v4426 = vpop.f32.mrf.mxu0
      %v4427 = vadd.f32 0.0, %v4426
      %4428 = vmatmul.f32.gmra.mxu0 %v4029
      %v4429 = vpop.f32.mrf.mxu0
      %v4430 = vadd.f32 0.0, %v4429
      %4431 = vmatmul.f32.gmra.mxu0 %v4032
      %v4432 = vpop.f32.mrf.mxu0
      %v4433 = vadd.f32 0.0, %v4432
      %4434 = vmatmul.f32.gmra.mxu0 %v4035
      %v4435 = vpop.f32.mrf.mxu0
      %v4436 = vadd.f32 0.0, %v4435
      %4437 = vmatmul.f32.gmra.mxu0 %v4038
      %v4438 = vpop.f32.mrf.mxu0
      %v4439 = vadd.f32 0.0, %v4438
      %4440 = vmatmul.f32.gmra.mxu0 %v4041
      %v4441 = vpop.f32.mrf.mxu0
      %v4442 = vadd.f32 0.0, %v4441
      %4443 = vmatmul.f32.gmra.mxu0 %v4044
      %v4444 = vpop.f32.mrf.mxu0
      %v4445 = vadd.f32 0.0, %v4444
      %4446 = vmatmul.f32.gmra.mxu0 %v4047
      %v4447 = vpop.f32.mrf.mxu0
      %v4448 = vadd.f32 0.0, %v4447
      %4449 = vmatmul.f32.gmra.mxu0 %v4050
      %v4450 = vpop.f32.mrf.mxu0
      %v4451 = vadd.f32 0.0, %v4450
      %4452 = vmatmul.f32.gmra.mxu0 %v4053
      %v4453 = vpop.f32.mrf.mxu0
      %v4454 = vadd.f32 0.0, %v4453
      %4455 = vmatmul.f32.gmra.mxu0 %v4056
      %v4456 = vpop.f32.mrf.mxu0
      %v4457 = vadd.f32 0.0, %v4456
      %4458 = vmatmul.f32.gmra.mxu0 %v4059
      %v4459 = vpop.f32.mrf.mxu0
      %v4460 = vadd.f32 0.0, %v4459
      %4461 = vmatmul.f32.gmra.mxu0 %v4062
      %v4462 = vpop.f32.mrf.mxu0
      %v4463 = vadd.f32 0.0, %v4462
      %4464 = vmatmul.f32.gmra.mxu0 %v4065
      %v4465 = vpop.f32.mrf.mxu0
      %v4466 = vadd.f32 0.0, %v4465
      %4467 = vmatmul.f32.gmra.mxu0 %v4068
      %v4468 = vpop.f32.mrf.mxu0
      %v4469 = vadd.f32 0.0, %v4468
      %4470 = vmatmul.f32.gmra.mxu0 %v4071
      %v4471 = vpop.f32.mrf.mxu0
      %v4472 = vadd.f32 0.0, %v4471
      %4473 = vmatmul.f32.gmra.mxu0 %v4074
      %v4474 = vpop.f32.mrf.mxu0
      %v4475 = vadd.f32 0.0, %v4474
      %4476 = vmatmul.f32.gmra.mxu0 %v4077
      %v4477 = vpop.f32.mrf.mxu0
      %v4478 = vadd.f32 0.0, %v4477
      %4479 = vmatmul.f32.gmra.mxu0 %v4080
      %v4480 = vpop.f32.mrf.mxu0
      %v4481 = vadd.f32 0.0, %v4480
      %4482 = vmatmul.f32.gmra.mxu0 %v4083
      %v4483 = vpop.f32.mrf.mxu0
      %v4484 = vadd.f32 0.0, %v4483
      %4485 = vmatmul.f32.gmra.mxu0 %v4086
      %v4486 = vpop.f32.mrf.mxu0
      %v4487 = vadd.f32 0.0, %v4486
      %4488 = vmatmul.f32.gmra.mxu0 %v4089
      %v4489 = vpop.f32.mrf.mxu0
      %v4490 = vadd.f32 0.0, %v4489
      %4491 = vmatmul.f32.gmra.mxu0 %v4092
      %v4492 = vpop.f32.mrf.mxu0
      %v4493 = vadd.f32 0.0, %v4492
      %4494 = vmatmul.f32.gmra.mxu0 %v4095
      %v4495 = vpop.f32.mrf.mxu0
      %v4496 = vadd.f32 0.0, %v4495
      %4497 = vmatmul.f32.gmra.mxu0 %v4098
      %v4498 = vpop.f32.mrf.mxu0
      %v4499 = vadd.f32 0.0, %v4498
      %4500 = vmatmul.f32.gmra.mxu0 %v4101
      %v4501 = vpop.f32.mrf.mxu0
      %v4502 = vadd.f32 0.0, %v4501
      %4503 = vmatmul.f32.gmra.mxu0 %v4104
      %v4504 = vpop.f32.mrf.mxu0
      %v4505 = vadd.f32 0.0, %v4504
      %4506 = vmatmul.f32.gmra.mxu0 %v4107
      %v4507 = vpop.f32.mrf.mxu0
      %v4508 = vadd.f32 0.0, %v4507
      %4509 = vmatmul.f32.gmra.mxu0 %v4110
      %v4510 = vpop.f32.mrf.mxu0
      %v4511 = vadd.f32 0.0, %v4510
      %4512 = vmatmul.f32.gmra.mxu0 %v4113
      %v4513 = vpop.f32.mrf.mxu0
      %v4514 = vadd.f32 0.0, %v4513
      %4515 = vmatmul.f32.gmra.mxu0 %v4116
      %v4516 = vpop.f32.mrf.mxu0
      %v4517 = vadd.f32 0.0, %v4516
      %4518 = vmatmul.f32.gmra.mxu0 %v4119
      %v4519 = vpop.f32.mrf.mxu0
      %v4520 = vadd.f32 0.0, %v4519
      %4521 = vmatmul.f32.gmra.mxu0 %v4122
      %v4522 = vpop.f32.mrf.mxu0
      %v4523 = vadd.f32 0.0, %v4522
      %4524 = vmatmul.f32.gmra.mxu0 %v4125
      %v4525 = vpop.f32.mrf.mxu0
      %v4526 = vadd.f32 0.0, %v4525
      %4527 = vmatmul.f32.gmra.mxu0 %v4128
      %v4528 = vpop.f32.mrf.mxu0
      %v4529 = vadd.f32 0.0, %v4528
      %4530 = vmatmul.f32.gmra.mxu0 %v4131
      %v4531 = vpop.f32.mrf.mxu0
      %v4532 = vadd.f32 0.0, %v4531
      %4533 = vmatmul.f32.gmra.mxu0 %v4134
      %v4534 = vpop.f32.mrf.mxu0
      %v4535 = vadd.f32 0.0, %v4534
      %4536 = vmatmul.f32.gmra.mxu0 %v4137
      %v4537 = vpop.f32.mrf.mxu0
      %v4538 = vadd.f32 0.0, %v4537
      %4539 = vmatmul.f32.gmra.mxu0 %v4140
      %v4540 = vpop.f32.mrf.mxu0
      %v4541 = vadd.f32 0.0, %v4540
      %4542 = vmatmul.f32.gmra.mxu0 %v4143
      %v4543 = vpop.f32.mrf.mxu0
      %v4544 = vadd.f32 0.0, %v4543
      %4545 = vmatmul.f32.gmra.mxu0 %v4146
      %v4546 = vpop.f32.mrf.mxu0
      %v4547 = vadd.f32 0.0, %v4546
      %4548 = vmatmul.f32.gmra.mxu0 %v4149
      %v4549 = vpop.f32.mrf.mxu0
      %v4550 = vadd.f32 0.0, %v4549
      %4551 = vmatmul.f32.gmra.mxu0 %v4152
      %v4552 = vpop.f32.mrf.mxu0
      %v4553 = vadd.f32 0.0, %v4552
      %4554 = vmatmul.f32.gmra.mxu0 %v4155
      %v4555 = vpop.f32.mrf.mxu0
      %v4556 = vadd.f32 0.0, %v4555
      %4557 = vmatmul.f32.gmra.mxu0 %v4158
      %v4558 = vpop.f32.mrf.mxu0
      %v4559 = vadd.f32 0.0, %v4558
      %4560 = vmatmul.f32.gmra.mxu0 %v4161
      %v4561 = vpop.f32.mrf.mxu0
      %v4562 = vadd.f32 0.0, %v4561
      %4563 = vmatmul.f32.gmra.mxu0 %v4164
      %v4564 = vpop.f32.mrf.mxu0
      %v4565 = vadd.f32 0.0, %v4564
      %4566 = vmatmul.f32.gmra.mxu0 %v4167
      %v4567 = vpop.f32.mrf.mxu0
      %v4568 = vadd.f32 0.0, %v4567
      %4569 = vmatmul.f32.gmra.mxu0 %v4170
      %v4570 = vpop.f32.mrf.mxu0
      %v4571 = vadd.f32 0.0, %v4570
      %4572 = vmatmul.f32.gmra.mxu0 %v4173
      %v4573 = vpop.f32.mrf.mxu0
      %v4574 = vadd.f32 0.0, %v4573
      %4575 = vmatmul.f32.gmra.mxu0 %v4176
      %v4576 = vpop.f32.mrf.mxu0
      %v4577 = vadd.f32 0.0, %v4576
      %4578 = vmatmul.f32.gmra.mxu0 %v4179
      %v4579 = vpop.f32.mrf.mxu0
      %v4580 = vadd.f32 0.0, %v4579
      %4581 = vmatmul.f32.gmra.mxu0 %v4182
      %v4582 = vpop.f32.mrf.mxu0
      %v4583 = vadd.f32 0.0, %v4582
      %4584 = vmatmul.f32.gmra.mxu0 %v4185
      %v4585 = vpop.f32.mrf.mxu0
      %v4586 = vadd.f32 0.0, %v4585
      %4587 = vmatmul.f32.gmra.mxu0 %v4188
      %v4588 = vpop.f32.mrf.mxu0
      %v4589 = vadd.f32 0.0, %v4588
      %4590 = vmatmul.f32.gmra.mxu0 %v4191
      %v4591 = vpop.f32.mrf.mxu0
      %v4592 = vadd.f32 0.0, %v4591
      %4593 = vmatmul.f32.gmra.mxu0 %v4194
      %v4594 = vpop.f32.mrf.mxu0
      %v4595 = vadd.f32 0.0, %v4594
      %4596 = vmatmul.f32.gmra.mxu0 %v4197
      %v4597 = vpop.f32.mrf.mxu0
      %v4598 = vadd.f32 0.0, %v4597
      %4599 = vmatmul.f32.gmra.mxu0 %v4200
      %v4600 = vpop.f32.mrf.mxu0
      %v4601 = vadd.f32 0.0, %v4600
      %4602 = vmatmul.f32.gmra.mxu0 %v4203
      %v4603 = vpop.f32.mrf.mxu0
      %v4604 = vadd.f32 0.0, %v4603
      %4605 = vmatmul.f32.gmra.mxu0 %v4206
      %v4606 = vpop.f32.mrf.mxu0
      %v4607 = vadd.f32 0.0, %v4606
      %4608 = vmatmul.f32.gmra.mxu0 %v4209
      %v4609 = vpop.f32.mrf.mxu0
      %v4610 = vadd.f32 0.0, %v4609
      %4611 = vmatmul.f32.gmra.mxu0 %v4212
      %v4612 = vpop.f32.mrf.mxu0
      %v4613 = vadd.f32 0.0, %v4612
      %4614 = vmatmul.f32.gmra.mxu0 %v4215
      %v4615 = vpop.f32.mrf.mxu0
      %v4616 = vadd.f32 0.0, %v4615
      %4617 = vmatmul.f32.gmra.mxu0 %v4218
      %v4618 = vpop.f32.mrf.mxu0
      %v4619 = vadd.f32 0.0, %v4618
      %4620 = vmatmul.f32.gmra.mxu0 %v4221
      %v4621 = vpop.f32.mrf.mxu0
      %v4622 = vadd.f32 0.0, %v4621
      %4623 = vmatmul.f32.gmra.mxu0 %v4224
      %v4624 = vpop.f32.mrf.mxu0
      %v4625 = vadd.f32 0.0, %v4624
      %4626 = vmatmul.f32.gmra.mxu0 %v4227
      %v4627 = vpop.f32.mrf.mxu0
      %v4628 = vadd.f32 0.0, %v4627
      %4629 = vmatmul.f32.gmra.mxu0 %v4230
      %v4630 = vpop.f32.mrf.mxu0
      %v4631 = vadd.f32 0.0, %v4630
      %4632 = vmatmul.f32.gmra.mxu0 %v4233
      %v4633 = vpop.f32.mrf.mxu0
      %v4634 = vadd.f32 0.0, %v4633
      %4635 = vmatmul.f32.gmra.mxu0 %v4236
      %v4636 = vpop.f32.mrf.mxu0
      %v4637 = vadd.f32 0.0, %v4636
      %4638 = vmatmul.f32.gmra.mxu0 %v4239
      %v4639 = vpop.f32.mrf.mxu0
      %v4640 = vadd.f32 0.0, %v4639
      %4641 = vmatmul.f32.gmra.mxu0 %v4242
      %v4642 = vpop.f32.mrf.mxu0
      %v4643 = vadd.f32 0.0, %v4642
      %4644 = vmatmul.f32.gmra.mxu0 %v4245
      %v4645 = vpop.f32.mrf.mxu0
      %v4646 = vadd.f32 0.0, %v4645
      %4647 = vmatmul.f32.gmra.mxu0 %v4248
      %v4648 = vpop.f32.mrf.mxu0
      %v4649 = vadd.f32 0.0, %v4648
      %4650 = vmatmul.f32.gmra.mxu0 %v4251
      %v4651 = vpop.f32.mrf.mxu0
      %v4652 = vadd.f32 0.0, %v4651
      %4653 = vmatmul.f32.gmra.mxu0 %v4254
      %v4654 = vpop.f32.mrf.mxu0
      %v4655 = vadd.f32 0.0, %v4654
      %4656 = vmatmul.f32.gmra.mxu0 %v4257
      %v4657 = vpop.f32.mrf.mxu0
      %v4658 = vadd.f32 0.0, %v4657
      %4659 = vmatmul.f32.gmra.mxu0 %v4260
      %v4660 = vpop.f32.mrf.mxu0
      %v4661 = vadd.f32 0.0, %v4660
      %4662 = vmatmul.f32.gmra.mxu0 %v4263
      %v4663 = vpop.f32.mrf.mxu0
      %v4664 = vadd.f32 0.0, %v4663
      %4665 = vmatmul.f32.gmra.mxu0 %v4266
      %v4666 = vpop.f32.mrf.mxu0
      %v4667 = vadd.f32 0.0, %v4666
      %4668 = vmatmul.f32.gmra.mxu0 %v4269
      %v4669 = vpop.f32.mrf.mxu0
      %v4670 = vadd.f32 0.0, %v4669
      %4671 = vmatmul.f32.gmra.mxu0 %v4272
      %v4672 = vpop.f32.mrf.mxu0
      %v4673 = vadd.f32 0.0, %v4672
      %4674 = vdwg.mxu0
      %v4675 = vadd.f32 %v2569, %v4292
      %v4676 = vadd.f32 %v2572, %v4295
      %v4677 = vadd.f32 %v2575, %v4298
      %v4678 = vadd.f32 %v2578, %v4301
      %v4679 = vadd.f32 %v2581, %v4304
      %v4680 = vadd.f32 %v2584, %v4307
      %v4681 = vadd.f32 %v2587, %v4310
      %v4682 = vadd.f32 %v2590, %v4313
      %v4683 = vadd.f32 %v2593, %v4316
      %v4684 = vadd.f32 %v2596, %v4319
      %v4685 = vadd.f32 %v2599, %v4322
      %v4686 = vadd.f32 %v2602, %v4325
      %v4687 = vadd.f32 %v2605, %v4328
      %v4688 = vadd.f32 %v2608, %v4331
      %v4689 = vadd.f32 %v2611, %v4334
      %v4690 = vadd.f32 %v2614, %v4337
      %v4691 = vadd.f32 %v2617, %v4340
      %v4692 = vadd.f32 %v2620, %v4343
      %v4693 = vadd.f32 %v2623, %v4346
      %v4694 = vadd.f32 %v2626, %v4349
      %v4695 = vadd.f32 %v2629, %v4352
      %v4696 = vadd.f32 %v2632, %v4355
      %v4697 = vadd.f32 %v2635, %v4358
      %v4698 = vadd.f32 %v2638, %v4361
      %v4699 = vadd.f32 %v2641, %v4364
      %v4700 = vadd.f32 %v2644, %v4367
      %v4701 = vadd.f32 %v2647, %v4370
      %v4702 = vadd.f32 %v2650, %v4373
      %v4703 = vadd.f32 %v2653, %v4376
      %v4704 = vadd.f32 %v2656, %v4379
      %v4705 = vadd.f32 %v2659, %v4382
      %v4706 = vadd.f32 %v2662, %v4385
      %v4707 = vadd.f32 %v2665, %v4388
      %v4708 = vadd.f32 %v2668, %v4391
      %v4709 = vadd.f32 %v2671, %v4394
      %v4710 = vadd.f32 %v2674, %v4397
      %v4711 = vadd.f32 %v2677, %v4400
      %v4712 = vadd.f32 %v2680, %v4403
      %v4713 = vadd.f32 %v2683, %v4406
      %v4714 = vadd.f32 %v2686, %v4409
      %v4715 = vadd.f32 %v2689, %v4412
      %v4716 = vadd.f32 %v2692, %v4415
      %v4717 = vadd.f32 %v2695, %v4418
      %v4718 = vadd.f32 %v2698, %v4421
      %v4719 = vadd.f32 %v2701, %v4424
      %v4720 = vadd.f32 %v2704, %v4427
      %v4721 = vadd.f32 %v2707, %v4430
      %v4722 = vadd.f32 %v2710, %v4433
      %v4723 = vadd.f32 %v2713, %v4436
      %v4724 = vadd.f32 %v2716, %v4439
      %v4725 = vadd.f32 %v2719, %v4442
      %v4726 = vadd.f32 %v2722, %v4445
      %v4727 = vadd.f32 %v2725, %v4448
      %v4728 = vadd.f32 %v2728, %v4451
      %v4729 = vadd.f32 %v2731, %v4454
      %v4730 = vadd.f32 %v2734, %v4457
      %v4731 = vadd.f32 %v2737, %v4460
      %v4732 = vadd.f32 %v2740, %v4463
      %v4733 = vadd.f32 %v2743, %v4466
      %v4734 = vadd.f32 %v2746, %v4469
      %v4735 = vadd.f32 %v2749, %v4472
      %v4736 = vadd.f32 %v2752, %v4475
      %v4737 = vadd.f32 %v2755, %v4478
      %v4738 = vadd.f32 %v2758, %v4481
      %v4739 = vadd.f32 %v2761, %v4484
      %v4740 = vadd.f32 %v2764, %v4487
      %v4741 = vadd.f32 %v2767, %v4490
      %v4742 = vadd.f32 %v2770, %v4493
      %v4743 = vadd.f32 %v2773, %v4496
      %v4744 = vadd.f32 %v2776, %v4499
      %v4745 = vadd.f32 %v2779, %v4502
      %v4746 = vadd.f32 %v2782, %v4505
      %v4747 = vadd.f32 %v2785, %v4508
      %v4748 = vadd.f32 %v2788, %v4511
      %v4749 = vadd.f32 %v2791, %v4514
      %v4750 = vadd.f32 %v2794, %v4517
      %v4751 = vadd.f32 %v2797, %v4520
      %v4752 = vadd.f32 %v2800, %v4523
      %v4753 = vadd.f32 %v2803, %v4526
      %v4754 = vadd.f32 %v2806, %v4529
      %v4755 = vadd.f32 %v2809, %v4532
      %v4756 = vadd.f32 %v2812, %v4535
      %v4757 = vadd.f32 %v2815, %v4538
      %v4758 = vadd.f32 %v2818, %v4541
      %v4759 = vadd.f32 %v2821, %v4544
      %v4760 = vadd.f32 %v2824, %v4547
      %v4761 = vadd.f32 %v2827, %v4550
      %v4762 = vadd.f32 %v2830, %v4553
      %v4763 = vadd.f32 %v2833, %v4556
      %v4764 = vadd.f32 %v2836, %v4559
      %v4765 = vadd.f32 %v2839, %v4562
      %v4766 = vadd.f32 %v2842, %v4565
      %v4767 = vadd.f32 %v2845, %v4568
      %v4768 = vadd.f32 %v2848, %v4571
      %v4769 = vadd.f32 %v2851, %v4574
      %v4770 = vadd.f32 %v2854, %v4577
      %v4771 = vadd.f32 %v2857, %v4580
      %v4772 = vadd.f32 %v2860, %v4583
      %v4773 = vadd.f32 %v2863, %v4586
      %v4774 = vadd.f32 %v2866, %v4589
      %v4775 = vadd.f32 %v2869, %v4592
      %v4776 = vadd.f32 %v2872, %v4595
      %v4777 = vadd.f32 %v2875, %v4598
      %v4778 = vadd.f32 %v2878, %v4601
      %v4779 = vadd.f32 %v2881, %v4604
      %v4780 = vadd.f32 %v2884, %v4607
      %v4781 = vadd.f32 %v2887, %v4610
      %v4782 = vadd.f32 %v2890, %v4613
      %v4783 = vadd.f32 %v2893, %v4616
      %v4784 = vadd.f32 %v2896, %v4619
      %v4785 = vadd.f32 %v2899, %v4622
      %v4786 = vadd.f32 %v2902, %v4625
      %v4787 = vadd.f32 %v2905, %v4628
      %v4788 = vadd.f32 %v2908, %v4631
      %v4789 = vadd.f32 %v2911, %v4634
      %v4790 = vadd.f32 %v2914, %v4637
      %v4791 = vadd.f32 %v2917, %v4640
      %v4792 = vadd.f32 %v2920, %v4643
      %v4793 = vadd.f32 %v2923, %v4646
      %v4794 = vadd.f32 %v2926, %v4649
      %v4795 = vadd.f32 %v2929, %v4652
      %v4796 = vadd.f32 %v2932, %v4655
      %v4797 = vadd.f32 %v2935, %v4658
      %v4798 = vadd.f32 %v2938, %v4661
      %v4799 = vadd.f32 %v2941, %v4664
      %v4800 = vadd.f32 %v2944, %v4667
      %v4801 = vadd.f32 %v2947, %v4670
      %v4802 = vadd.f32 %v2950, %v4673
      %v4803 = vld [vmem:[%s6] sm:$0x1]
      %v4805 = vperm.slane %v4803, 0
      %v4807 = vadd.f32 %v4675, %v4805
      %v4808 = vadd.f32 %v4676, %v4805
      %v4809 = vadd.f32 %v4677, %v4805
      %v4810 = vadd.f32 %v4678, %v4805
      %v4811 = vadd.f32 %v4679, %v4805
      %v4812 = vadd.f32 %v4680, %v4805
      %v4813 = vadd.f32 %v4681, %v4805
      %v4814 = vadd.f32 %v4682, %v4805
      %v4815 = vadd.f32 %v4683, %v4805
      %v4816 = vadd.f32 %v4684, %v4805
      %v4817 = vadd.f32 %v4685, %v4805
      %v4818 = vadd.f32 %v4686, %v4805
      %v4819 = vadd.f32 %v4687, %v4805
      %v4820 = vadd.f32 %v4688, %v4805
      %v4821 = vadd.f32 %v4689, %v4805
      %v4822 = vadd.f32 %v4690, %v4805
      %v4823 = vadd.f32 %v4691, %v4805
      %v4824 = vadd.f32 %v4692, %v4805
      %v4825 = vadd.f32 %v4693, %v4805
      %v4826 = vadd.f32 %v4694, %v4805
      %v4827 = vadd.f32 %v4695, %v4805
      %v4828 = vadd.f32 %v4696, %v4805
      %v4829 = vadd.f32 %v4697, %v4805
      %v4830 = vadd.f32 %v4698, %v4805
      %v4831 = vadd.f32 %v4699, %v4805
      %v4832 = vadd.f32 %v4700, %v4805
      %v4833 = vadd.f32 %v4701, %v4805
      %v4834 = vadd.f32 %v4702, %v4805
      %v4835 = vadd.f32 %v4703, %v4805
      %v4836 = vadd.f32 %v4704, %v4805
      %v4837 = vadd.f32 %v4705, %v4805
      %v4838 = vadd.f32 %v4706, %v4805
      %v4839 = vadd.f32 %v4707, %v4805
      %v4840 = vadd.f32 %v4708, %v4805
      %v4841 = vadd.f32 %v4709, %v4805
      %v4842 = vadd.f32 %v4710, %v4805
      %v4843 = vadd.f32 %v4711, %v4805
      %v4844 = vadd.f32 %v4712, %v4805
      %v4845 = vadd.f32 %v4713, %v4805
      %v4846 = vadd.f32 %v4714, %v4805
      %v4847 = vadd.f32 %v4715, %v4805
      %v4848 = vadd.f32 %v4716, %v4805
      %v4849 = vadd.f32 %v4717, %v4805
      %v4850 = vadd.f32 %v4718, %v4805
      %v4851 = vadd.f32 %v4719, %v4805
      %v4852 = vadd.f32 %v4720, %v4805
      %v4853 = vadd.f32 %v4721, %v4805
      %v4854 = vadd.f32 %v4722, %v4805
      %v4855 = vadd.f32 %v4723, %v4805
      %v4856 = vadd.f32 %v4724, %v4805
      %v4857 = vadd.f32 %v4725, %v4805
      %v4858 = vadd.f32 %v4726, %v4805
      %v4859 = vadd.f32 %v4727, %v4805
      %v4860 = vadd.f32 %v4728, %v4805
      %v4861 = vadd.f32 %v4729, %v4805
      %v4862 = vadd.f32 %v4730, %v4805
      %v4863 = vadd.f32 %v4731, %v4805
      %v4864 = vadd.f32 %v4732, %v4805
      %v4865 = vadd.f32 %v4733, %v4805
      %v4866 = vadd.f32 %v4734, %v4805
      %v4867 = vadd.f32 %v4735, %v4805
      %v4868 = vadd.f32 %v4736, %v4805
      %v4869 = vadd.f32 %v4737, %v4805
      %v4870 = vadd.f32 %v4738, %v4805
      %v4871 = vadd.f32 %v4739, %v4805
      %v4872 = vadd.f32 %v4740, %v4805
      %v4873 = vadd.f32 %v4741, %v4805
      %v4874 = vadd.f32 %v4742, %v4805
      %v4875 = vadd.f32 %v4743, %v4805
      %v4876 = vadd.f32 %v4744, %v4805
      %v4877 = vadd.f32 %v4745, %v4805
      %v4878 = vadd.f32 %v4746, %v4805
      %v4879 = vadd.f32 %v4747, %v4805
      %v4880 = vadd.f32 %v4748, %v4805
      %v4881 = vadd.f32 %v4749, %v4805
      %v4882 = vadd.f32 %v4750, %v4805
      %v4883 = vadd.f32 %v4751, %v4805
      %v4884 = vadd.f32 %v4752, %v4805
      %v4885 = vadd.f32 %v4753, %v4805
      %v4886 = vadd.f32 %v4754, %v4805
      %v4887 = vadd.f32 %v4755, %v4805
      %v4888 = vadd.f32 %v4756, %v4805
      %v4889 = vadd.f32 %v4757, %v4805
      %v4890 = vadd.f32 %v4758, %v4805
      %v4891 = vadd.f32 %v4759, %v4805
      %v4892 = vadd.f32 %v4760, %v4805
      %v4893 = vadd.f32 %v4761, %v4805
      %v4894 = vadd.f32 %v4762, %v4805
      %v4895 = vadd.f32 %v4763, %v4805
      %v4896 = vadd.f32 %v4764, %v4805
      %v4897 = vadd.f32 %v4765, %v4805
      %v4898 = vadd.f32 %v4766, %v4805
      %v4899 = vadd.f32 %v4767, %v4805
      %v4900 = vadd.f32 %v4768, %v4805
      %v4901 = vadd.f32 %v4769, %v4805
      %v4902 = vadd.f32 %v4770, %v4805
      %v4903 = vadd.f32 %v4771, %v4805
      %v4904 = vadd.f32 %v4772, %v4805
      %v4905 = vadd.f32 %v4773, %v4805
      %v4906 = vadd.f32 %v4774, %v4805
      %v4907 = vadd.f32 %v4775, %v4805
      %v4908 = vadd.f32 %v4776, %v4805
      %v4909 = vadd.f32 %v4777, %v4805
      %v4910 = vadd.f32 %v4778, %v4805
      %v4911 = vadd.f32 %v4779, %v4805
      %v4912 = vadd.f32 %v4780, %v4805
      %v4913 = vadd.f32 %v4781, %v4805
      %v4914 = vadd.f32 %v4782, %v4805
      %v4915 = vadd.f32 %v4783, %v4805
      %v4916 = vadd.f32 %v4784, %v4805
      %v4917 = vadd.f32 %v4785, %v4805
      %v4918 = vadd.f32 %v4786, %v4805
      %v4919 = vadd.f32 %v4787, %v4805
      %v4920 = vadd.f32 %v4788, %v4805
      %v4921 = vadd.f32 %v4789, %v4805
      %v4922 = vadd.f32 %v4790, %v4805
      %v4923 = vadd.f32 %v4791, %v4805
      %v4924 = vadd.f32 %v4792, %v4805
      %v4925 = vadd.f32 %v4793, %v4805
      %v4926 = vadd.f32 %v4794, %v4805
      %v4927 = vadd.f32 %v4795, %v4805
      %v4928 = vadd.f32 %v4796, %v4805
      %v4929 = vadd.f32 %v4797, %v4805
      %v4930 = vadd.f32 %v4798, %v4805
      %v4931 = vadd.f32 %v4799, %v4805
      %v4932 = vadd.f32 %v4800, %v4805
      %v4933 = vadd.f32 %v4801, %v4805
      %v4934 = vadd.f32 %v4802, %v4805
      %v4935 = vmax.f32 %v4807, 0.0
      %v4936 = vmax.f32 %v4808, 0.0
      %v4937 = vmax.f32 %v4809, 0.0
      %v4938 = vmax.f32 %v4810, 0.0
      %v4939 = vmax.f32 %v4811, 0.0
      %v4940 = vmax.f32 %v4812, 0.0
      %v4941 = vmax.f32 %v4813, 0.0
      %v4942 = vmax.f32 %v4814, 0.0
      %v4943 = vmax.f32 %v4815, 0.0
      %v4944 = vmax.f32 %v4816, 0.0
      %v4945 = vmax.f32 %v4817, 0.0
      %v4946 = vmax.f32 %v4818, 0.0
      %v4947 = vmax.f32 %v4819, 0.0
      %v4948 = vmax.f32 %v4820, 0.0
      %v4949 = vmax.f32 %v4821, 0.0
      %v4950 = vmax.f32 %v4822, 0.0
      %v4951 = vmax.f32 %v4823, 0.0
      %v4952 = vmax.f32 %v4824, 0.0
      %v4953 = vmax.f32 %v4825, 0.0
      %v4954 = vmax.f32 %v4826, 0.0
      %v4955 = vmax.f32 %v4827, 0.0
      %v4956 = vmax.f32 %v4828, 0.0
      %v4957 = vmax.f32 %v4829, 0.0
      %v4958 = vmax.f32 %v4830, 0.0
      %v4959 = vmax.f32 %v4831, 0.0
      %v4960 = vmax.f32 %v4832, 0.0
      %v4961 = vmax.f32 %v4833, 0.0
      %v4962 = vmax.f32 %v4834, 0.0
      %v4963 = vmax.f32 %v4835, 0.0
      %v4964 = vmax.f32 %v4836, 0.0
      %v4965 = vmax.f32 %v4837, 0.0
      %v4966 = vmax.f32 %v4838, 0.0
      %v4967 = vmax.f32 %v4839, 0.0
      %v4968 = vmax.f32 %v4840, 0.0
      %v4969 = vmax.f32 %v4841, 0.0
      %v4970 = vmax.f32 %v4842, 0.0
      %v4971 = vmax.f32 %v4843, 0.0
      %v4972 = vmax.f32 %v4844, 0.0
      %v4973 = vmax.f32 %v4845, 0.0
      %v4974 = vmax.f32 %v4846, 0.0
      %v4975 = vmax.f32 %v4847, 0.0
      %v4976 = vmax.f32 %v4848, 0.0
      %v4977 = vmax.f32 %v4849, 0.0
      %v4978 = vmax.f32 %v4850, 0.0
      %v4979 = vmax.f32 %v4851, 0.0
      %v4980 = vmax.f32 %v4852, 0.0
      %v4981 = vmax.f32 %v4853, 0.0
      %v4982 = vmax.f32 %v4854, 0.0
      %v4983 = vmax.f32 %v4855, 0.0
      %v4984 = vmax.f32 %v4856, 0.0
      %v4985 = vmax.f32 %v4857, 0.0
      %v4986 = vmax.f32 %v4858, 0.0
      %v4987 = vmax.f32 %v4859, 0.0
      %v4988 = vmax.f32 %v4860, 0.0
      %v4989 = vmax.f32 %v4861, 0.0
      %v4990 = vmax.f32 %v4862, 0.0
      %v4991 = vmax.f32 %v4863, 0.0
      %v4992 = vmax.f32 %v4864, 0.0
      %v4993 = vmax.f32 %v4865, 0.0
      %v4994 = vmax.f32 %v4866, 0.0
      %v4995 = vmax.f32 %v4867, 0.0
      %v4996 = vmax.f32 %v4868, 0.0
      %v4997 = vmax.f32 %v4869, 0.0
      %v4998 = vmax.f32 %v4870, 0.0
      %v4999 = vmax.f32 %v4871, 0.0
      %v5000 = vmax.f32 %v4872, 0.0
      %v5001 = vmax.f32 %v4873, 0.0
      %v5002 = vmax.f32 %v4874, 0.0
      %v5003 = vmax.f32 %v4875, 0.0
      %v5004 = vmax.f32 %v4876, 0.0
      %v5005 = vmax.f32 %v4877, 0.0
      %v5006 = vmax.f32 %v4878, 0.0
      %v5007 = vmax.f32 %v4879, 0.0
      %v5008 = vmax.f32 %v4880, 0.0
      %v5009 = vmax.f32 %v4881, 0.0
      %v5010 = vmax.f32 %v4882, 0.0
      %v5011 = vmax.f32 %v4883, 0.0
      %v5012 = vmax.f32 %v4884, 0.0
      %v5013 = vmax.f32 %v4885, 0.0
      %v5014 = vmax.f32 %v4886, 0.0
      %v5015 = vmax.f32 %v4887, 0.0
      %v5016 = vmax.f32 %v4888, 0.0
      %v5017 = vmax.f32 %v4889, 0.0
      %v5018 = vmax.f32 %v4890, 0.0
      %v5019 = vmax.f32 %v4891, 0.0
      %v5020 = vmax.f32 %v4892, 0.0
      %v5021 = vmax.f32 %v4893, 0.0
      %v5022 = vmax.f32 %v4894, 0.0
      %v5023 = vmax.f32 %v4895, 0.0
      %v5024 = vmax.f32 %v4896, 0.0
      %v5025 = vmax.f32 %v4897, 0.0
      %v5026 = vmax.f32 %v4898, 0.0
      %v5027 = vmax.f32 %v4899, 0.0
      %v5028 = vmax.f32 %v4900, 0.0
      %v5029 = vmax.f32 %v4901, 0.0
      %v5030 = vmax.f32 %v4902, 0.0
      %v5031 = vmax.f32 %v4903, 0.0
      %v5032 = vmax.f32 %v4904, 0.0
      %v5033 = vmax.f32 %v4905, 0.0
      %v5034 = vmax.f32 %v4906, 0.0
      %v5035 = vmax.f32 %v4907, 0.0
      %v5036 = vmax.f32 %v4908, 0.0
      %v5037 = vmax.f32 %v4909, 0.0
      %v5038 = vmax.f32 %v4910, 0.0
      %v5039 = vmax.f32 %v4911, 0.0
      %v5040 = vmax.f32 %v4912, 0.0
      %v5041 = vmax.f32 %v4913, 0.0
      %v5042 = vmax.f32 %v4914, 0.0
      %v5043 = vmax.f32 %v4915, 0.0
      %v5044 = vmax.f32 %v4916, 0.0
      %v5045 = vmax.f32 %v4917, 0.0
      %v5046 = vmax.f32 %v4918, 0.0
      %v5047 = vmax.f32 %v4919, 0.0
      %v5048 = vmax.f32 %v4920, 0.0
      %v5049 = vmax.f32 %v4921, 0.0
      %v5050 = vmax.f32 %v4922, 0.0
      %v5051 = vmax.f32 %v4923, 0.0
      %v5052 = vmax.f32 %v4924, 0.0
      %v5053 = vmax.f32 %v4925, 0.0
      %v5054 = vmax.f32 %v4926, 0.0
      %v5055 = vmax.f32 %v4927, 0.0
      %v5056 = vmax.f32 %v4928, 0.0
      %v5057 = vmax.f32 %v4929, 0.0
      %v5058 = vmax.f32 %v4930, 0.0
      %v5059 = vmax.f32 %v4931, 0.0
      %v5060 = vmax.f32 %v4932, 0.0
      %v5061 = vmax.f32 %v4933, 0.0
      %v5062 = vmax.f32 %v4934, 0.0
      %v5063 = vld [vmem:[%s7] sm:$0xff]
      %v5064 = vld [vmem:[%s7 + $0x8] sm:$0xff]
      %v5065 = vld [vmem:[%s7 + $0x10] sm:$0xff]
      %v5066 = vld [vmem:[%s7 + $0x18] sm:$0xff]
      %v5067 = vld [vmem:[%s7 + $0x20] sm:$0xff]
      %v5068 = vld [vmem:[%s7 + $0x28] sm:$0xff]
      %v5069 = vld [vmem:[%s7 + $0x30] sm:$0xff]
      %v5070 = vld [vmem:[%s7 + $0x38] sm:$0xff]
      %v5071 = vld [vmem:[%s7 + $0x40] sm:$0xff]
      %v5072 = vld [vmem:[%s7 + $0x48] sm:$0xff]
      %v5073 = vld [vmem:[%s7 + $0x50] sm:$0xff]
      %v5074 = vld [vmem:[%s7 + $0x58] sm:$0xff]
      %v5075 = vld [vmem:[%s7 + $0x60] sm:$0xff]
      %v5076 = vld [vmem:[%s7 + $0x68] sm:$0xff]
      %v5077 = vld [vmem:[%s7 + $0x70] sm:$0xff]
      %v5078 = vld [vmem:[%s7 + $0x78] sm:$0xff]
      %v5079 = vld [vmem:[%s8] sm:$0x1]
      %v5081 = vperm.slane %v5079, 0
      %5083 = vmatpush.msra.mxu0 %v5078
      %5084 = vmatpush.msra.mxu0 %v5077
      %5085 = vmatpush.msra.mxu0 %v5076
      %5086 = vmatpush.msra.mxu0 %v5075
      %5087 = vmatpush.msra.mxu0 %v5074
      %5088 = vmatpush.msra.mxu0 %v5073
      %5089 = vmatpush.msra.mxu0 %v5072
      %5090 = vmatpush.msra.mxu0 %v5071
      %5091 = vmatpush.msra.mxu0 %v5070
      %5092 = vmatpush.msra.mxu0 %v5069
      %5093 = vmatpush.msra.mxu0 %v5068
      %5094 = vmatpush.msra.mxu0 %v5067
      %5095 = vmatpush.msra.mxu0 %v5066
      %5096 = vmatpush.msra.mxu0 %v5065
      %5097 = vmatpush.msra.mxu0 %v5064
      %5098 = vmatpush.msra.mxu0 %v5063
      %5099 = vmatmul.f32.gmra.mxu0 %v4935
      %v5100 = vpop.f32.mrf.mxu0
      %v5101 = vadd.f32 %v5081, %v5100
      %5102 = vmatmul.f32.gmra.mxu0 %v4936
      %v5103 = vpop.f32.mrf.mxu0
      %v5104 = vadd.f32 %v5081, %v5103
      %5105 = vmatmul.f32.gmra.mxu0 %v4937
      %v5106 = vpop.f32.mrf.mxu0
      %v5107 = vadd.f32 %v5081, %v5106
      %5108 = vmatmul.f32.gmra.mxu0 %v4938
      %v5109 = vpop.f32.mrf.mxu0
      %v5110 = vadd.f32 %v5081, %v5109
      %5111 = vmatmul.f32.gmra.mxu0 %v4939
      %v5112 = vpop.f32.mrf.mxu0
      %v5113 = vadd.f32 %v5081, %v5112
      %5114 = vmatmul.f32.gmra.mxu0 %v4940
      %v5115 = vpop.f32.mrf.mxu0
      %v5116 = vadd.f32 %v5081, %v5115
      %5117 = vmatmul.f32.gmra.mxu0 %v4941
      %v5118 = vpop.f32.mrf.mxu0
      %v5119 = vadd.f32 %v5081, %v5118
      %5120 = vmatmul.f32.gmra.mxu0 %v4942
      %v5121 = vpop.f32.mrf.mxu0
      %v5122 = vadd.f32 %v5081, %v5121
      %5123 = vmatmul.f32.gmra.mxu0 %v4943
      %v5124 = vpop.f32.mrf.mxu0
      %v5125 = vadd.f32 %v5081, %v5124
      %5126 = vmatmul.f32.gmra.mxu0 %v4944
      %v5127 = vpop.f32.mrf.mxu0
      %v5128 = vadd.f32 %v5081, %v5127
      %5129 = vmatmul.f32.gmra.mxu0 %v4945
      %v5130 = vpop.f32.mrf.mxu0
      %v5131 = vadd.f32 %v5081, %v5130
      %5132 = vmatmul.f32.gmra.mxu0 %v4946
      %v5133 = vpop.f32.mrf.mxu0
      %v5134 = vadd.f32 %v5081, %v5133
      %5135 = vmatmul.f32.gmra.mxu0 %v4947
      %v5136 = vpop.f32.mrf.mxu0
      %v5137 = vadd.f32 %v5081, %v5136
      %5138 = vmatmul.f32.gmra.mxu0 %v4948
      %v5139 = vpop.f32.mrf.mxu0
      %v5140 = vadd.f32 %v5081, %v5139
      %5141 = vmatmul.f32.gmra.mxu0 %v4949
      %v5142 = vpop.f32.mrf.mxu0
      %v5143 = vadd.f32 %v5081, %v5142
      %5144 = vmatmul.f32.gmra.mxu0 %v4950
      %v5145 = vpop.f32.mrf.mxu0
      %v5146 = vadd.f32 %v5081, %v5145
      %5147 = vmatmul.f32.gmra.mxu0 %v4951
      %v5148 = vpop.f32.mrf.mxu0
      %v5149 = vadd.f32 %v5081, %v5148
      %5150 = vmatmul.f32.gmra.mxu0 %v4952
      %v5151 = vpop.f32.mrf.mxu0
      %v5152 = vadd.f32 %v5081, %v5151
      %5153 = vmatmul.f32.gmra.mxu0 %v4953
      %v5154 = vpop.f32.mrf.mxu0
      %v5155 = vadd.f32 %v5081, %v5154
      %5156 = vmatmul.f32.gmra.mxu0 %v4954
      %v5157 = vpop.f32.mrf.mxu0
      %v5158 = vadd.f32 %v5081, %v5157
      %5159 = vmatmul.f32.gmra.mxu0 %v4955
      %v5160 = vpop.f32.mrf.mxu0
      %v5161 = vadd.f32 %v5081, %v5160
      %5162 = vmatmul.f32.gmra.mxu0 %v4956
      %v5163 = vpop.f32.mrf.mxu0
      %v5164 = vadd.f32 %v5081, %v5163
      %5165 = vmatmul.f32.gmra.mxu0 %v4957
      %v5166 = vpop.f32.mrf.mxu0
      %v5167 = vadd.f32 %v5081, %v5166
      %5168 = vmatmul.f32.gmra.mxu0 %v4958
      %v5169 = vpop.f32.mrf.mxu0
      %v5170 = vadd.f32 %v5081, %v5169
      %5171 = vmatmul.f32.gmra.mxu0 %v4959
      %v5172 = vpop.f32.mrf.mxu0
      %v5173 = vadd.f32 %v5081, %v5172
      %5174 = vmatmul.f32.gmra.mxu0 %v4960
      %v5175 = vpop.f32.mrf.mxu0
      %v5176 = vadd.f32 %v5081, %v5175
      %5177 = vmatmul.f32.gmra.mxu0 %v4961
      %v5178 = vpop.f32.mrf.mxu0
      %v5179 = vadd.f32 %v5081, %v5178
      %5180 = vmatmul.f32.gmra.mxu0 %v4962
      %v5181 = vpop.f32.mrf.mxu0
      %v5182 = vadd.f32 %v5081, %v5181
      %5183 = vmatmul.f32.gmra.mxu0 %v4963
      %v5184 = vpop.f32.mrf.mxu0
      %v5185 = vadd.f32 %v5081, %v5184
      %5186 = vmatmul.f32.gmra.mxu0 %v4964
      %v5187 = vpop.f32.mrf.mxu0
      %v5188 = vadd.f32 %v5081, %v5187
      %5189 = vmatmul.f32.gmra.mxu0 %v4965
      %v5190 = vpop.f32.mrf.mxu0
      %v5191 = vadd.f32 %v5081, %v5190
      %5192 = vmatmul.f32.gmra.mxu0 %v4966
      %v5193 = vpop.f32.mrf.mxu0
      %v5194 = vadd.f32 %v5081, %v5193
      %5195 = vmatmul.f32.gmra.mxu0 %v4967
      %v5196 = vpop.f32.mrf.mxu0
      %v5197 = vadd.f32 %v5081, %v5196
      %5198 = vmatmul.f32.gmra.mxu0 %v4968
      %v5199 = vpop.f32.mrf.mxu0
      %v5200 = vadd.f32 %v5081, %v5199
      %5201 = vmatmul.f32.gmra.mxu0 %v4969
      %v5202 = vpop.f32.mrf.mxu0
      %v5203 = vadd.f32 %v5081, %v5202
      %5204 = vmatmul.f32.gmra.mxu0 %v4970
      %v5205 = vpop.f32.mrf.mxu0
      %v5206 = vadd.f32 %v5081, %v5205
      %5207 = vmatmul.f32.gmra.mxu0 %v4971
      %v5208 = vpop.f32.mrf.mxu0
      %v5209 = vadd.f32 %v5081, %v5208
      %5210 = vmatmul.f32.gmra.mxu0 %v4972
      %v5211 = vpop.f32.mrf.mxu0
      %v5212 = vadd.f32 %v5081, %v5211
      %5213 = vmatmul.f32.gmra.mxu0 %v4973
      %v5214 = vpop.f32.mrf.mxu0
      %v5215 = vadd.f32 %v5081, %v5214
      %5216 = vmatmul.f32.gmra.mxu0 %v4974
      %v5217 = vpop.f32.mrf.mxu0
      %v5218 = vadd.f32 %v5081, %v5217
      %5219 = vmatmul.f32.gmra.mxu0 %v4975
      %v5220 = vpop.f32.mrf.mxu0
      %v5221 = vadd.f32 %v5081, %v5220
      %5222 = vmatmul.f32.gmra.mxu0 %v4976
      %v5223 = vpop.f32.mrf.mxu0
      %v5224 = vadd.f32 %v5081, %v5223
      %5225 = vmatmul.f32.gmra.mxu0 %v4977
      %v5226 = vpop.f32.mrf.mxu0
      %v5227 = vadd.f32 %v5081, %v5226
      %5228 = vmatmul.f32.gmra.mxu0 %v4978
      %v5229 = vpop.f32.mrf.mxu0
      %v5230 = vadd.f32 %v5081, %v5229
      %5231 = vmatmul.f32.gmra.mxu0 %v4979
      %v5232 = vpop.f32.mrf.mxu0
      %v5233 = vadd.f32 %v5081, %v5232
      %5234 = vmatmul.f32.gmra.mxu0 %v4980
      %v5235 = vpop.f32.mrf.mxu0
      %v5236 = vadd.f32 %v5081, %v5235
      %5237 = vmatmul.f32.gmra.mxu0 %v4981
      %v5238 = vpop.f32.mrf.mxu0
      %v5239 = vadd.f32 %v5081, %v5238
      %5240 = vmatmul.f32.gmra.mxu0 %v4982
      %v5241 = vpop.f32.mrf.mxu0
      %v5242 = vadd.f32 %v5081, %v5241
      %5243 = vmatmul.f32.gmra.mxu0 %v4983
      %v5244 = vpop.f32.mrf.mxu0
      %v5245 = vadd.f32 %v5081, %v5244
      %5246 = vmatmul.f32.gmra.mxu0 %v4984
      %v5247 = vpop.f32.mrf.mxu0
      %v5248 = vadd.f32 %v5081, %v5247
      %5249 = vmatmul.f32.gmra.mxu0 %v4985
      %v5250 = vpop.f32.mrf.mxu0
      %v5251 = vadd.f32 %v5081, %v5250
      %5252 = vmatmul.f32.gmra.mxu0 %v4986
      %v5253 = vpop.f32.mrf.mxu0
      %v5254 = vadd.f32 %v5081, %v5253
      %5255 = vmatmul.f32.gmra.mxu0 %v4987
      %v5256 = vpop.f32.mrf.mxu0
      %v5257 = vadd.f32 %v5081, %v5256
      %5258 = vmatmul.f32.gmra.mxu0 %v4988
      %v5259 = vpop.f32.mrf.mxu0
      %v5260 = vadd.f32 %v5081, %v5259
      %5261 = vmatmul.f32.gmra.mxu0 %v4989
      %v5262 = vpop.f32.mrf.mxu0
      %v5263 = vadd.f32 %v5081, %v5262
      %5264 = vmatmul.f32.gmra.mxu0 %v4990
      %v5265 = vpop.f32.mrf.mxu0
      %v5266 = vadd.f32 %v5081, %v5265
      %5267 = vmatmul.f32.gmra.mxu0 %v4991
      %v5268 = vpop.f32.mrf.mxu0
      %v5269 = vadd.f32 %v5081, %v5268
      %5270 = vmatmul.f32.gmra.mxu0 %v4992
      %v5271 = vpop.f32.mrf.mxu0
      %v5272 = vadd.f32 %v5081, %v5271
      %5273 = vmatmul.f32.gmra.mxu0 %v4993
      %v5274 = vpop.f32.mrf.mxu0
      %v5275 = vadd.f32 %v5081, %v5274
      %5276 = vmatmul.f32.gmra.mxu0 %v4994
      %v5277 = vpop.f32.mrf.mxu0
      %v5278 = vadd.f32 %v5081, %v5277
      %5279 = vmatmul.f32.gmra.mxu0 %v4995
      %v5280 = vpop.f32.mrf.mxu0
      %v5281 = vadd.f32 %v5081, %v5280
      %5282 = vmatmul.f32.gmra.mxu0 %v4996
      %v5283 = vpop.f32.mrf.mxu0
      %v5284 = vadd.f32 %v5081, %v5283
      %5285 = vmatmul.f32.gmra.mxu0 %v4997
      %v5286 = vpop.f32.mrf.mxu0
      %v5287 = vadd.f32 %v5081, %v5286
      %5288 = vmatmul.f32.gmra.mxu0 %v4998
      %v5289 = vpop.f32.mrf.mxu0
      %v5290 = vadd.f32 %v5081, %v5289
      %5291 = vmatmul.f32.gmra.mxu0 %v4999
      %v5292 = vpop.f32.mrf.mxu0
      %v5293 = vadd.f32 %v5081, %v5292
      %5294 = vmatmul.f32.gmra.mxu0 %v5000
      %v5295 = vpop.f32.mrf.mxu0
      %v5296 = vadd.f32 %v5081, %v5295
      %5297 = vmatmul.f32.gmra.mxu0 %v5001
      %v5298 = vpop.f32.mrf.mxu0
      %v5299 = vadd.f32 %v5081, %v5298
      %5300 = vmatmul.f32.gmra.mxu0 %v5002
      %v5301 = vpop.f32.mrf.mxu0
      %v5302 = vadd.f32 %v5081, %v5301
      %5303 = vmatmul.f32.gmra.mxu0 %v5003
      %v5304 = vpop.f32.mrf.mxu0
      %v5305 = vadd.f32 %v5081, %v5304
      %5306 = vmatmul.f32.gmra.mxu0 %v5004
      %v5307 = vpop.f32.mrf.mxu0
      %v5308 = vadd.f32 %v5081, %v5307
      %5309 = vmatmul.f32.gmra.mxu0 %v5005
      %v5310 = vpop.f32.mrf.mxu0
      %v5311 = vadd.f32 %v5081, %v5310
      %5312 = vmatmul.f32.gmra.mxu0 %v5006
      %v5313 = vpop.f32.mrf.mxu0
      %v5314 = vadd.f32 %v5081, %v5313
      %5315 = vmatmul.f32.gmra.mxu0 %v5007
      %v5316 = vpop.f32.mrf.mxu0
      %v5317 = vadd.f32 %v5081, %v5316
      %5318 = vmatmul.f32.gmra.mxu0 %v5008
      %v5319 = vpop.f32.mrf.mxu0
      %v5320 = vadd.f32 %v5081, %v5319
      %5321 = vmatmul.f32.gmra.mxu0 %v5009
      %v5322 = vpop.f32.mrf.mxu0
      %v5323 = vadd.f32 %v5081, %v5322
      %5324 = vmatmul.f32.gmra.mxu0 %v5010
      %v5325 = vpop.f32.mrf.mxu0
      %v5326 = vadd.f32 %v5081, %v5325
      %5327 = vmatmul.f32.gmra.mxu0 %v5011
      %v5328 = vpop.f32.mrf.mxu0
      %v5329 = vadd.f32 %v5081, %v5328
      %5330 = vmatmul.f32.gmra.mxu0 %v5012
      %v5331 = vpop.f32.mrf.mxu0
      %v5332 = vadd.f32 %v5081, %v5331
      %5333 = vmatmul.f32.gmra.mxu0 %v5013
      %v5334 = vpop.f32.mrf.mxu0
      %v5335 = vadd.f32 %v5081, %v5334
      %5336 = vmatmul.f32.gmra.mxu0 %v5014
      %v5337 = vpop.f32.mrf.mxu0
      %v5338 = vadd.f32 %v5081, %v5337
      %5339 = vmatmul.f32.gmra.mxu0 %v5015
      %v5340 = vpop.f32.mrf.mxu0
      %v5341 = vadd.f32 %v5081, %v5340
      %5342 = vmatmul.f32.gmra.mxu0 %v5016
      %v5343 = vpop.f32.mrf.mxu0
      %v5344 = vadd.f32 %v5081, %v5343
      %5345 = vmatmul.f32.gmra.mxu0 %v5017
      %v5346 = vpop.f32.mrf.mxu0
      %v5347 = vadd.f32 %v5081, %v5346
      %5348 = vmatmul.f32.gmra.mxu0 %v5018
      %v5349 = vpop.f32.mrf.mxu0
      %v5350 = vadd.f32 %v5081, %v5349
      %5351 = vmatmul.f32.gmra.mxu0 %v5019
      %v5352 = vpop.f32.mrf.mxu0
      %v5353 = vadd.f32 %v5081, %v5352
      %5354 = vmatmul.f32.gmra.mxu0 %v5020
      %v5355 = vpop.f32.mrf.mxu0
      %v5356 = vadd.f32 %v5081, %v5355
      %5357 = vmatmul.f32.gmra.mxu0 %v5021
      %v5358 = vpop.f32.mrf.mxu0
      %v5359 = vadd.f32 %v5081, %v5358
      %5360 = vmatmul.f32.gmra.mxu0 %v5022
      %v5361 = vpop.f32.mrf.mxu0
      %v5362 = vadd.f32 %v5081, %v5361
      %5363 = vmatmul.f32.gmra.mxu0 %v5023
      %v5364 = vpop.f32.mrf.mxu0
      %v5365 = vadd.f32 %v5081, %v5364
      %5366 = vmatmul.f32.gmra.mxu0 %v5024
      %v5367 = vpop.f32.mrf.mxu0
      %v5368 = vadd.f32 %v5081, %v5367
      %5369 = vmatmul.f32.gmra.mxu0 %v5025
      %v5370 = vpop.f32.mrf.mxu0
      %v5371 = vadd.f32 %v5081, %v5370
      %5372 = vmatmul.f32.gmra.mxu0 %v5026
      %v5373 = vpop.f32.mrf.mxu0
      %v5374 = vadd.f32 %v5081, %v5373
      %5375 = vmatmul.f32.gmra.mxu0 %v5027
      %v5376 = vpop.f32.mrf.mxu0
      %v5377 = vadd.f32 %v5081, %v5376
      %5378 = vmatmul.f32.gmra.mxu0 %v5028
      %v5379 = vpop.f32.mrf.mxu0
      %v5380 = vadd.f32 %v5081, %v5379
      %5381 = vmatmul.f32.gmra.mxu0 %v5029
      %v5382 = vpop.f32.mrf.mxu0
      %v5383 = vadd.f32 %v5081, %v5382
      %5384 = vmatmul.f32.gmra.mxu0 %v5030
      %v5385 = vpop.f32.mrf.mxu0
      %v5386 = vadd.f32 %v5081, %v5385
      %5387 = vmatmul.f32.gmra.mxu0 %v5031
      %v5388 = vpop.f32.mrf.mxu0
      %v5389 = vadd.f32 %v5081, %v5388
      %5390 = vmatmul.f32.gmra.mxu0 %v5032
      %v5391 = vpop.f32.mrf.mxu0
      %v5392 = vadd.f32 %v5081, %v5391
      %5393 = vmatmul.f32.gmra.mxu0 %v5033
      %v5394 = vpop.f32.mrf.mxu0
      %v5395 = vadd.f32 %v5081, %v5394
      %5396 = vmatmul.f32.gmra.mxu0 %v5034
      %v5397 = vpop.f32.mrf.mxu0
      %v5398 = vadd.f32 %v5081, %v5397
      %5399 = vmatmul.f32.gmra.mxu0 %v5035
      %v5400 = vpop.f32.mrf.mxu0
      %v5401 = vadd.f32 %v5081, %v5400
      %5402 = vmatmul.f32.gmra.mxu0 %v5036
      %v5403 = vpop.f32.mrf.mxu0
      %v5404 = vadd.f32 %v5081, %v5403
      %5405 = vmatmul.f32.gmra.mxu0 %v5037
      %v5406 = vpop.f32.mrf.mxu0
      %v5407 = vadd.f32 %v5081, %v5406
      %5408 = vmatmul.f32.gmra.mxu0 %v5038
      %v5409 = vpop.f32.mrf.mxu0
      %v5410 = vadd.f32 %v5081, %v5409
      %5411 = vmatmul.f32.gmra.mxu0 %v5039
      %v5412 = vpop.f32.mrf.mxu0
      %v5413 = vadd.f32 %v5081, %v5412
      %5414 = vmatmul.f32.gmra.mxu0 %v5040
      %v5415 = vpop.f32.mrf.mxu0
      %v5416 = vadd.f32 %v5081, %v5415
      %5417 = vmatmul.f32.gmra.mxu0 %v5041
      %v5418 = vpop.f32.mrf.mxu0
      %v5419 = vadd.f32 %v5081, %v5418
      %5420 = vmatmul.f32.gmra.mxu0 %v5042
      %v5421 = vpop.f32.mrf.mxu0
      %v5422 = vadd.f32 %v5081, %v5421
      %5423 = vmatmul.f32.gmra.mxu0 %v5043
      %v5424 = vpop.f32.mrf.mxu0
      %v5425 = vadd.f32 %v5081, %v5424
      %5426 = vmatmul.f32.gmra.mxu0 %v5044
      %v5427 = vpop.f32.mrf.mxu0
      %v5428 = vadd.f32 %v5081, %v5427
      %5429 = vmatmul.f32.gmra.mxu0 %v5045
      %v5430 = vpop.f32.mrf.mxu0
      %v5431 = vadd.f32 %v5081, %v5430
      %5432 = vmatmul.f32.gmra.mxu0 %v5046
      %v5433 = vpop.f32.mrf.mxu0
      %v5434 = vadd.f32 %v5081, %v5433
      %5435 = vmatmul.f32.gmra.mxu0 %v5047
      %v5436 = vpop.f32.mrf.mxu0
      %v5437 = vadd.f32 %v5081, %v5436
      %5438 = vmatmul.f32.gmra.mxu0 %v5048
      %v5439 = vpop.f32.mrf.mxu0
      %v5440 = vadd.f32 %v5081, %v5439
      %5441 = vmatmul.f32.gmra.mxu0 %v5049
      %v5442 = vpop.f32.mrf.mxu0
      %v5443 = vadd.f32 %v5081, %v5442
      %5444 = vmatmul.f32.gmra.mxu0 %v5050
      %v5445 = vpop.f32.mrf.mxu0
      %v5446 = vadd.f32 %v5081, %v5445
      %5447 = vmatmul.f32.gmra.mxu0 %v5051
      %v5448 = vpop.f32.mrf.mxu0
      %v5449 = vadd.f32 %v5081, %v5448
      %5450 = vmatmul.f32.gmra.mxu0 %v5052
      %v5451 = vpop.f32.mrf.mxu0
      %v5452 = vadd.f32 %v5081, %v5451
      %5453 = vmatmul.f32.gmra.mxu0 %v5053
      %v5454 = vpop.f32.mrf.mxu0
      %v5455 = vadd.f32 %v5081, %v5454
      %5456 = vmatmul.f32.gmra.mxu0 %v5054
      %v5457 = vpop.f32.mrf.mxu0
      %v5458 = vadd.f32 %v5081, %v5457
      %5459 = vmatmul.f32.gmra.mxu0 %v5055
      %v5460 = vpop.f32.mrf.mxu0
      %v5461 = vadd.f32 %v5081, %v5460
      %5462 = vmatmul.f32.gmra.mxu0 %v5056
      %v5463 = vpop.f32.mrf.mxu0
      %v5464 = vadd.f32 %v5081, %v5463
      %5465 = vmatmul.f32.gmra.mxu0 %v5057
      %v5466 = vpop.f32.mrf.mxu0
      %v5467 = vadd.f32 %v5081, %v5466
      %5468 = vmatmul.f32.gmra.mxu0 %v5058
      %v5469 = vpop.f32.mrf.mxu0
      %v5470 = vadd.f32 %v5081, %v5469
      %5471 = vmatmul.f32.gmra.mxu0 %v5059
      %v5472 = vpop.f32.mrf.mxu0
      %v5473 = vadd.f32 %v5081, %v5472
      %5474 = vmatmul.f32.gmra.mxu0 %v5060
      %v5475 = vpop.f32.mrf.mxu0
      %v5476 = vadd.f32 %v5081, %v5475
      %5477 = vmatmul.f32.gmra.mxu0 %v5061
      %v5478 = vpop.f32.mrf.mxu0
      %v5479 = vadd.f32 %v5081, %v5478
      %5480 = vmatmul.f32.gmra.mxu0 %v5062
      %v5481 = vpop.f32.mrf.mxu0
      %v5482 = vadd.f32 %v5081, %v5481
      %5483 = vdwg.mxu0
      %v5484 = vlaneseq
      %v5485 = vand.u32 %v5484, 127
      %vm5486 = vcmp.eq.s32.totalorder %v5485, 3
      %v5487 = vsel %vm5486, 1, 0
      %vm5488 = vcmp.eq.s32.totalorder %v5487, 1
      %5490 = vset.pattern.permute.xlu0 0
      %5491 = vperm.xlu0 %5490, %v3758
      %v5492 = vpop.permute.xlu0 %5491
      %5495 = vset.pattern.permute.xlu0 0
      %5496 = vperm.xlu0 %5495, %v3759
      %v5497 = vpop.permute.xlu0 %5496
      %5500 = vset.pattern.permute.xlu0 0
      %5501 = vperm.xlu0 %5500, %v3760
      %v5502 = vpop.permute.xlu0 %5501
      %5505 = vset.pattern.permute.xlu0 0
      %5506 = vperm.xlu0 %5505, %v3761
      %v5507 = vpop.permute.xlu0 %5506
      %5510 = vset.pattern.permute.xlu0 0
      %5511 = vperm.xlu0 %5510, %v3762
      %v5512 = vpop.permute.xlu0 %5511
      %5515 = vset.pattern.permute.xlu0 0
      %5516 = vperm.xlu0 %5515, %v3763
      %v5517 = vpop.permute.xlu0 %5516
      %5520 = vset.pattern.permute.xlu0 0
      %5521 = vperm.xlu0 %5520, %v3764
      %v5522 = vpop.permute.xlu0 %5521
      %5525 = vset.pattern.permute.xlu0 0
      %5526 = vperm.xlu0 %5525, %v3765
      %v5527 = vpop.permute.xlu0 %5526
      %5530 = vset.pattern.permute.xlu0 0
      %5531 = vperm.xlu0 %5530, %v3766
      %v5532 = vpop.permute.xlu0 %5531
      %5535 = vset.pattern.permute.xlu0 0
      %5536 = vperm.xlu0 %5535, %v3767
      %v5537 = vpop.permute.xlu0 %5536
      %5540 = vset.pattern.permute.xlu0 0
      %5541 = vperm.xlu0 %5540, %v3768
      %v5542 = vpop.permute.xlu0 %5541
      %5545 = vset.pattern.permute.xlu0 0
      %5546 = vperm.xlu0 %5545, %v3769
      %v5547 = vpop.permute.xlu0 %5546
      %5550 = vset.pattern.permute.xlu0 0
      %5551 = vperm.xlu0 %5550, %v3770
      %v5552 = vpop.permute.xlu0 %5551
      %5555 = vset.pattern.permute.xlu0 0
      %5556 = vperm.xlu0 %5555, %v3771
      %v5557 = vpop.permute.xlu0 %5556
      %5560 = vset.pattern.permute.xlu0 0
      %5561 = vperm.xlu0 %5560, %v3772
      %v5562 = vpop.permute.xlu0 %5561
      %5565 = vset.pattern.permute.xlu0 0
      %5566 = vperm.xlu0 %5565, %v3773
      %v5567 = vpop.permute.xlu0 %5566
      %5570 = vset.pattern.permute.xlu0 0
      %5571 = vperm.xlu0 %5570, %v3774
      %v5572 = vpop.permute.xlu0 %5571
      %5575 = vset.pattern.permute.xlu0 0
      %5576 = vperm.xlu0 %5575, %v3775
      %v5577 = vpop.permute.xlu0 %5576
      %5580 = vset.pattern.permute.xlu0 0
      %5581 = vperm.xlu0 %5580, %v3776
      %v5582 = vpop.permute.xlu0 %5581
      %5585 = vset.pattern.permute.xlu0 0
      %5586 = vperm.xlu0 %5585, %v3777
      %v5587 = vpop.permute.xlu0 %5586
      %5590 = vset.pattern.permute.xlu0 0
      %5591 = vperm.xlu0 %5590, %v3778
      %v5592 = vpop.permute.xlu0 %5591
      %5595 = vset.pattern.permute.xlu0 0
      %5596 = vperm.xlu0 %5595, %v3779
      %v5597 = vpop.permute.xlu0 %5596
      %5600 = vset.pattern.permute.xlu0 0
      %5601 = vperm.xlu0 %5600, %v3780
      %v5602 = vpop.permute.xlu0 %5601
      %5605 = vset.pattern.permute.xlu0 0
      %5606 = vperm.xlu0 %5605, %v3781
      %v5607 = vpop.permute.xlu0 %5606
      %5610 = vset.pattern.permute.xlu0 0
      %5611 = vperm.xlu0 %5610, %v3782
      %v5612 = vpop.permute.xlu0 %5611
      %5615 = vset.pattern.permute.xlu0 0
      %5616 = vperm.xlu0 %5615, %v3783
      %v5617 = vpop.permute.xlu0 %5616
      %5620 = vset.pattern.permute.xlu0 0
      %5621 = vperm.xlu0 %5620, %v3784
      %v5622 = vpop.permute.xlu0 %5621
      %5625 = vset.pattern.permute.xlu0 0
      %5626 = vperm.xlu0 %5625, %v3785
      %v5627 = vpop.permute.xlu0 %5626
      %5630 = vset.pattern.permute.xlu0 0
      %5631 = vperm.xlu0 %5630, %v3786
      %v5632 = vpop.permute.xlu0 %5631
      %5635 = vset.pattern.permute.xlu0 0
      %5636 = vperm.xlu0 %5635, %v3787
      %v5637 = vpop.permute.xlu0 %5636
      %5640 = vset.pattern.permute.xlu0 0
      %5641 = vperm.xlu0 %5640, %v3788
      %v5642 = vpop.permute.xlu0 %5641
      %5645 = vset.pattern.permute.xlu0 0
      %5646 = vperm.xlu0 %5645, %v3789
      %v5647 = vpop.permute.xlu0 %5646
      %5650 = vset.pattern.permute.xlu0 0
      %5651 = vperm.xlu0 %5650, %v3790
      %v5652 = vpop.permute.xlu0 %5651
      %5655 = vset.pattern.permute.xlu0 0
      %5656 = vperm.xlu0 %5655, %v3791
      %v5657 = vpop.permute.xlu0 %5656
      %5660 = vset.pattern.permute.xlu0 0
      %5661 = vperm.xlu0 %5660, %v3792
      %v5662 = vpop.permute.xlu0 %5661
      %5665 = vset.pattern.permute.xlu0 0
      %5666 = vperm.xlu0 %5665, %v3793
      %v5667 = vpop.permute.xlu0 %5666
      %5670 = vset.pattern.permute.xlu0 0
      %5671 = vperm.xlu0 %5670, %v3794
      %v5672 = vpop.permute.xlu0 %5671
      %5675 = vset.pattern.permute.xlu0 0
      %5676 = vperm.xlu0 %5675, %v3795
      %v5677 = vpop.permute.xlu0 %5676
      %5680 = vset.pattern.permute.xlu0 0
      %5681 = vperm.xlu0 %5680, %v3796
      %v5682 = vpop.permute.xlu0 %5681
      %5685 = vset.pattern.permute.xlu0 0
      %5686 = vperm.xlu0 %5685, %v3797
      %v5687 = vpop.permute.xlu0 %5686
      %5690 = vset.pattern.permute.xlu0 0
      %5691 = vperm.xlu0 %5690, %v3798
      %v5692 = vpop.permute.xlu0 %5691
      %5695 = vset.pattern.permute.xlu0 0
      %5696 = vperm.xlu0 %5695, %v3799
      %v5697 = vpop.permute.xlu0 %5696
      %5700 = vset.pattern.permute.xlu0 0
      %5701 = vperm.xlu0 %5700, %v3800
      %v5702 = vpop.permute.xlu0 %5701
      %5705 = vset.pattern.permute.xlu0 0
      %5706 = vperm.xlu0 %5705, %v3801
      %v5707 = vpop.permute.xlu0 %5706
      %5710 = vset.pattern.permute.xlu0 0
      %5711 = vperm.xlu0 %5710, %v3802
      %v5712 = vpop.permute.xlu0 %5711
      %5715 = vset.pattern.permute.xlu0 0
      %5716 = vperm.xlu0 %5715, %v3803
      %v5717 = vpop.permute.xlu0 %5716
      %5720 = vset.pattern.permute.xlu0 0
      %5721 = vperm.xlu0 %5720, %v3804
      %v5722 = vpop.permute.xlu0 %5721
      %5725 = vset.pattern.permute.xlu0 0
      %5726 = vperm.xlu0 %5725, %v3805
      %v5727 = vpop.permute.xlu0 %5726
      %5730 = vset.pattern.permute.xlu0 0
      %5731 = vperm.xlu0 %5730, %v3806
      %v5732 = vpop.permute.xlu0 %5731
      %5735 = vset.pattern.permute.xlu0 0
      %5736 = vperm.xlu0 %5735, %v3807
      %v5737 = vpop.permute.xlu0 %5736
      %5740 = vset.pattern.permute.xlu0 0
      %5741 = vperm.xlu0 %5740, %v3808
      %v5742 = vpop.permute.xlu0 %5741
      %5745 = vset.pattern.permute.xlu0 0
      %5746 = vperm.xlu0 %5745, %v3809
      %v5747 = vpop.permute.xlu0 %5746
      %5750 = vset.pattern.permute.xlu0 0
      %5751 = vperm.xlu0 %5750, %v3810
      %v5752 = vpop.permute.xlu0 %5751
      %5755 = vset.pattern.permute.xlu0 0
      %5756 = vperm.xlu0 %5755, %v3811
      %v5757 = vpop.permute.xlu0 %5756
      %5760 = vset.pattern.permute.xlu0 0
      %5761 = vperm.xlu0 %5760, %v3812
      %v5762 = vpop.permute.xlu0 %5761
      %5765 = vset.pattern.permute.xlu0 0
      %5766 = vperm.xlu0 %5765, %v3813
      %v5767 = vpop.permute.xlu0 %5766
      %5770 = vset.pattern.permute.xlu0 0
      %5771 = vperm.xlu0 %5770, %v3814
      %v5772 = vpop.permute.xlu0 %5771
      %5775 = vset.pattern.permute.xlu0 0
      %5776 = vperm.xlu0 %5775, %v3815
      %v5777 = vpop.permute.xlu0 %5776
      %5780 = vset.pattern.permute.xlu0 0
      %5781 = vperm.xlu0 %5780, %v3816
      %v5782 = vpop.permute.xlu0 %5781
      %5785 = vset.pattern.permute.xlu0 0
      %5786 = vperm.xlu0 %5785, %v3817
      %v5787 = vpop.permute.xlu0 %5786
      %5790 = vset.pattern.permute.xlu0 0
      %5791 = vperm.xlu0 %5790, %v3818
      %v5792 = vpop.permute.xlu0 %5791
      %5795 = vset.pattern.permute.xlu0 0
      %5796 = vperm.xlu0 %5795, %v3819
      %v5797 = vpop.permute.xlu0 %5796
      %5800 = vset.pattern.permute.xlu0 0
      %5801 = vperm.xlu0 %5800, %v3820
      %v5802 = vpop.permute.xlu0 %5801
      %5805 = vset.pattern.permute.xlu0 0
      %5806 = vperm.xlu0 %5805, %v3821
      %v5807 = vpop.permute.xlu0 %5806
      %5810 = vset.pattern.permute.xlu0 0
      %5811 = vperm.xlu0 %5810, %v3822
      %v5812 = vpop.permute.xlu0 %5811
      %5815 = vset.pattern.permute.xlu0 0
      %5816 = vperm.xlu0 %5815, %v3823
      %v5817 = vpop.permute.xlu0 %5816
      %5820 = vset.pattern.permute.xlu0 0
      %5821 = vperm.xlu0 %5820, %v3824
      %v5822 = vpop.permute.xlu0 %5821
      %5825 = vset.pattern.permute.xlu0 0
      %5826 = vperm.xlu0 %5825, %v3825
      %v5827 = vpop.permute.xlu0 %5826
      %5830 = vset.pattern.permute.xlu0 0
      %5831 = vperm.xlu0 %5830, %v3826
      %v5832 = vpop.permute.xlu0 %5831
      %5835 = vset.pattern.permute.xlu0 0
      %5836 = vperm.xlu0 %5835, %v3827
      %v5837 = vpop.permute.xlu0 %5836
      %5840 = vset.pattern.permute.xlu0 0
      %5841 = vperm.xlu0 %5840, %v3828
      %v5842 = vpop.permute.xlu0 %5841
      %5845 = vset.pattern.permute.xlu0 0
      %5846 = vperm.xlu0 %5845, %v3829
      %v5847 = vpop.permute.xlu0 %5846
      %5850 = vset.pattern.permute.xlu0 0
      %5851 = vperm.xlu0 %5850, %v3830
      %v5852 = vpop.permute.xlu0 %5851
      %5855 = vset.pattern.permute.xlu0 0
      %5856 = vperm.xlu0 %5855, %v3831
      %v5857 = vpop.permute.xlu0 %5856
      %5860 = vset.pattern.permute.xlu0 0
      %5861 = vperm.xlu0 %5860, %v3832
      %v5862 = vpop.permute.xlu0 %5861
      %5865 = vset.pattern.permute.xlu0 0
      %5866 = vperm.xlu0 %5865, %v3833
      %v5867 = vpop.permute.xlu0 %5866
      %5870 = vset.pattern.permute.xlu0 0
      %5871 = vperm.xlu0 %5870, %v3834
      %v5872 = vpop.permute.xlu0 %5871
      %5875 = vset.pattern.permute.xlu0 0
      %5876 = vperm.xlu0 %5875, %v3835
      %v5877 = vpop.permute.xlu0 %5876
      %5880 = vset.pattern.permute.xlu0 0
      %5881 = vperm.xlu0 %5880, %v3836
      %v5882 = vpop.permute.xlu0 %5881
      %5885 = vset.pattern.permute.xlu0 0
      %5886 = vperm.xlu0 %5885, %v3837
      %v5887 = vpop.permute.xlu0 %5886
      %5890 = vset.pattern.permute.xlu0 0
      %5891 = vperm.xlu0 %5890, %v3838
      %v5892 = vpop.permute.xlu0 %5891
      %5895 = vset.pattern.permute.xlu0 0
      %5896 = vperm.xlu0 %5895, %v3839
      %v5897 = vpop.permute.xlu0 %5896
      %5900 = vset.pattern.permute.xlu0 0
      %5901 = vperm.xlu0 %5900, %v3840
      %v5902 = vpop.permute.xlu0 %5901
      %5905 = vset.pattern.permute.xlu0 0
      %5906 = vperm.xlu0 %5905, %v3841
      %v5907 = vpop.permute.xlu0 %5906
      %5910 = vset.pattern.permute.xlu0 0
      %5911 = vperm.xlu0 %5910, %v3842
      %v5912 = vpop.permute.xlu0 %5911
      %5915 = vset.pattern.permute.xlu0 0
      %5916 = vperm.xlu0 %5915, %v3843
      %v5917 = vpop.permute.xlu0 %5916
      %5920 = vset.pattern.permute.xlu0 0
      %5921 = vperm.xlu0 %5920, %v3844
      %v5922 = vpop.permute.xlu0 %5921
      %5925 = vset.pattern.permute.xlu0 0
      %5926 = vperm.xlu0 %5925, %v3845
      %v5927 = vpop.permute.xlu0 %5926
      %5930 = vset.pattern.permute.xlu0 0
      %5931 = vperm.xlu0 %5930, %v3846
      %v5932 = vpop.permute.xlu0 %5931
      %5935 = vset.pattern.permute.xlu0 0
      %5936 = vperm.xlu0 %5935, %v3847
      %v5937 = vpop.permute.xlu0 %5936
      %5940 = vset.pattern.permute.xlu0 0
      %5941 = vperm.xlu0 %5940, %v3848
      %v5942 = vpop.permute.xlu0 %5941
      %5945 = vset.pattern.permute.xlu0 0
      %5946 = vperm.xlu0 %5945, %v3849
      %v5947 = vpop.permute.xlu0 %5946
      %5950 = vset.pattern.permute.xlu0 0
      %5951 = vperm.xlu0 %5950, %v3850
      %v5952 = vpop.permute.xlu0 %5951
      %5955 = vset.pattern.permute.xlu0 0
      %5956 = vperm.xlu0 %5955, %v3851
      %v5957 = vpop.permute.xlu0 %5956
      %5960 = vset.pattern.permute.xlu0 0
      %5961 = vperm.xlu0 %5960, %v3852
      %v5962 = vpop.permute.xlu0 %5961
      %5965 = vset.pattern.permute.xlu0 0
      %5966 = vperm.xlu0 %5965, %v3853
      %v5967 = vpop.permute.xlu0 %5966
      %5970 = vset.pattern.permute.xlu0 0
      %5971 = vperm.xlu0 %5970, %v3854
      %v5972 = vpop.permute.xlu0 %5971
      %5975 = vset.pattern.permute.xlu0 0
      %5976 = vperm.xlu0 %5975, %v3855
      %v5977 = vpop.permute.xlu0 %5976
      %5980 = vset.pattern.permute.xlu0 0
      %5981 = vperm.xlu0 %5980, %v3856
      %v5982 = vpop.permute.xlu0 %5981
      %5985 = vset.pattern.permute.xlu0 0
      %5986 = vperm.xlu0 %5985, %v3857
      %v5987 = vpop.permute.xlu0 %5986
      %5990 = vset.pattern.permute.xlu0 0
      %5991 = vperm.xlu0 %5990, %v3858
      %v5992 = vpop.permute.xlu0 %5991
      %5995 = vset.pattern.permute.xlu0 0
      %5996 = vperm.xlu0 %5995, %v3859
      %v5997 = vpop.permute.xlu0 %5996
      %6000 = vset.pattern.permute.xlu0 0
      %6001 = vperm.xlu0 %6000, %v3860
      %v6002 = vpop.permute.xlu0 %6001
      %6005 = vset.pattern.permute.xlu0 0
      %6006 = vperm.xlu0 %6005, %v3861
      %v6007 = vpop.permute.xlu0 %6006
      %6010 = vset.pattern.permute.xlu0 0
      %6011 = vperm.xlu0 %6010, %v3862
      %v6012 = vpop.permute.xlu0 %6011
      %6015 = vset.pattern.permute.xlu0 0
      %6016 = vperm.xlu0 %6015, %v3863
      %v6017 = vpop.permute.xlu0 %6016
      %6020 = vset.pattern.permute.xlu0 0
      %6021 = vperm.xlu0 %6020, %v3864
      %v6022 = vpop.permute.xlu0 %6021
      %6025 = vset.pattern.permute.xlu0 0
      %6026 = vperm.xlu0 %6025, %v3865
      %v6027 = vpop.permute.xlu0 %6026
      %6030 = vset.pattern.permute.xlu0 0
      %6031 = vperm.xlu0 %6030, %v3866
      %v6032 = vpop.permute.xlu0 %6031
      %6035 = vset.pattern.permute.xlu0 0
      %6036 = vperm.xlu0 %6035, %v3867
      %v6037 = vpop.permute.xlu0 %6036
      %6040 = vset.pattern.permute.xlu0 0
      %6041 = vperm.xlu0 %6040, %v3868
      %v6042 = vpop.permute.xlu0 %6041
      %6045 = vset.pattern.permute.xlu0 0
      %6046 = vperm.xlu0 %6045, %v3869
      %v6047 = vpop.permute.xlu0 %6046
      %6050 = vset.pattern.permute.xlu0 0
      %6051 = vperm.xlu0 %6050, %v3870
      %v6052 = vpop.permute.xlu0 %6051
      %6055 = vset.pattern.permute.xlu0 0
      %6056 = vperm.xlu0 %6055, %v3871
      %v6057 = vpop.permute.xlu0 %6056
      %6060 = vset.pattern.permute.xlu0 0
      %6061 = vperm.xlu0 %6060, %v3872
      %v6062 = vpop.permute.xlu0 %6061
      %6065 = vset.pattern.permute.xlu0 0
      %6066 = vperm.xlu0 %6065, %v3873
      %v6067 = vpop.permute.xlu0 %6066
      %6070 = vset.pattern.permute.xlu0 0
      %6071 = vperm.xlu0 %6070, %v3874
      %v6072 = vpop.permute.xlu0 %6071
      %6075 = vset.pattern.permute.xlu0 0
      %6076 = vperm.xlu0 %6075, %v3875
      %v6077 = vpop.permute.xlu0 %6076
      %6080 = vset.pattern.permute.xlu0 0
      %6081 = vperm.xlu0 %6080, %v3876
      %v6082 = vpop.permute.xlu0 %6081
      %6085 = vset.pattern.permute.xlu0 0
      %6086 = vperm.xlu0 %6085, %v3877
      %v6087 = vpop.permute.xlu0 %6086
      %6090 = vset.pattern.permute.xlu0 0
      %6091 = vperm.xlu0 %6090, %v3878
      %v6092 = vpop.permute.xlu0 %6091
      %6095 = vset.pattern.permute.xlu0 0
      %6096 = vperm.xlu0 %6095, %v3879
      %v6097 = vpop.permute.xlu0 %6096
      %6100 = vset.pattern.permute.xlu0 0
      %6101 = vperm.xlu0 %6100, %v3880
      %v6102 = vpop.permute.xlu0 %6101
      %6105 = vset.pattern.permute.xlu0 0
      %6106 = vperm.xlu0 %6105, %v3881
      %v6107 = vpop.permute.xlu0 %6106
      %6110 = vset.pattern.permute.xlu0 0
      %6111 = vperm.xlu0 %6110, %v3882
      %v6112 = vpop.permute.xlu0 %6111
      %6115 = vset.pattern.permute.xlu0 0
      %6116 = vperm.xlu0 %6115, %v3883
      %v6117 = vpop.permute.xlu0 %6116
      %6120 = vset.pattern.permute.xlu0 0
      %6121 = vperm.xlu0 %6120, %v3884
      %v6122 = vpop.permute.xlu0 %6121
      %6125 = vset.pattern.permute.xlu0 0
      %6126 = vperm.xlu0 %6125, %v3885
      %v6127 = vpop.permute.xlu0 %6126
      %v6129 = vsel %vm5488, %v5492, %v5101
      %v6130 = vsel %vm5488, %v5497, %v5104
      %v6131 = vsel %vm5488, %v5502, %v5107
      %v6132 = vsel %vm5488, %v5507, %v5110
      %v6133 = vsel %vm5488, %v5512, %v5113
      %v6134 = vsel %vm5488, %v5517, %v5116
      %v6135 = vsel %vm5488, %v5522, %v5119
      %v6136 = vsel %vm5488, %v5527, %v5122
      %v6137 = vsel %vm5488, %v5532, %v5125
      %v6138 = vsel %vm5488, %v5537, %v5128
      %v6139 = vsel %vm5488, %v5542, %v5131
      %v6140 = vsel %vm5488, %v5547, %v5134
      %v6141 = vsel %vm5488, %v5552, %v5137
      %v6142 = vsel %vm5488, %v5557, %v5140
      %v6143 = vsel %vm5488, %v5562, %v5143
      %v6144 = vsel %vm5488, %v5567, %v5146
      %v6145 = vsel %vm5488, %v5572, %v5149
      %v6146 = vsel %vm5488, %v5577, %v5152
      %v6147 = vsel %vm5488, %v5582, %v5155
      %v6148 = vsel %vm5488, %v5587, %v5158
      %v6149 = vsel %vm5488, %v5592, %v5161
      %v6150 = vsel %vm5488, %v5597, %v5164
      %v6151 = vsel %vm5488, %v5602, %v5167
      %v6152 = vsel %vm5488, %v5607, %v5170
      %v6153 = vsel %vm5488, %v5612, %v5173
      %v6154 = vsel %vm5488, %v5617, %v5176
      %v6155 = vsel %vm5488, %v5622, %v5179
      %v6156 = vsel %vm5488, %v5627, %v5182
      %v6157 = vsel %vm5488, %v5632, %v5185
      %v6158 = vsel %vm5488, %v5637, %v5188
      %v6159 = vsel %vm5488, %v5642, %v5191
      %v6160 = vsel %vm5488, %v5647, %v5194
      %v6161 = vsel %vm5488, %v5652, %v5197
      %v6162 = vsel %vm5488, %v5657, %v5200
      %v6163 = vsel %vm5488, %v5662, %v5203
      %v6164 = vsel %vm5488, %v5667, %v5206
      %v6165 = vsel %vm5488, %v5672, %v5209
      %v6166 = vsel %vm5488, %v5677, %v5212
      %v6167 = vsel %vm5488, %v5682, %v5215
      %v6168 = vsel %vm5488, %v5687, %v5218
      %v6169 = vsel %vm5488, %v5692, %v5221
      %v6170 = vsel %vm5488, %v5697, %v5224
      %v6171 = vsel %vm5488, %v5702, %v5227
      %v6172 = vsel %vm5488, %v5707, %v5230
      %v6173 = vsel %vm5488, %v5712, %v5233
      %v6174 = vsel %vm5488, %v5717, %v5236
      %v6175 = vsel %vm5488, %v5722, %v5239
      %v6176 = vsel %vm5488, %v5727, %v5242
      %v6177 = vsel %vm5488, %v5732, %v5245
      %v6178 = vsel %vm5488, %v5737, %v5248
      %v6179 = vsel %vm5488, %v5742, %v5251
      %v6180 = vsel %vm5488, %v5747, %v5254
      %v6181 = vsel %vm5488, %v5752, %v5257
      %v6182 = vsel %vm5488, %v5757, %v5260
      %v6183 = vsel %vm5488, %v5762, %v5263
      %v6184 = vsel %vm5488, %v5767, %v5266
      %v6185 = vsel %vm5488, %v5772, %v5269
      %v6186 = vsel %vm5488, %v5777, %v5272
      %v6187 = vsel %vm5488, %v5782, %v5275
      %v6188 = vsel %vm5488, %v5787, %v5278
      %v6189 = vsel %vm5488, %v5792, %v5281
      %v6190 = vsel %vm5488, %v5797, %v5284
      %v6191 = vsel %vm5488, %v5802, %v5287
      %v6192 = vsel %vm5488, %v5807, %v5290
      %v6193 = vsel %vm5488, %v5812, %v5293
      %v6194 = vsel %vm5488, %v5817, %v5296
      %v6195 = vsel %vm5488, %v5822, %v5299
      %v6196 = vsel %vm5488, %v5827, %v5302
      %v6197 = vsel %vm5488, %v5832, %v5305
      %v6198 = vsel %vm5488, %v5837, %v5308
      %v6199 = vsel %vm5488, %v5842, %v5311
      %v6200 = vsel %vm5488, %v5847, %v5314
      %v6201 = vsel %vm5488, %v5852, %v5317
      %v6202 = vsel %vm5488, %v5857, %v5320
      %v6203 = vsel %vm5488, %v5862, %v5323
      %v6204 = vsel %vm5488, %v5867, %v5326
      %v6205 = vsel %vm5488, %v5872, %v5329
      %v6206 = vsel %vm5488, %v5877, %v5332
      %v6207 = vsel %vm5488, %v5882, %v5335
      %v6208 = vsel %vm5488, %v5887, %v5338
      %v6209 = vsel %vm5488, %v5892, %v5341
      %v6210 = vsel %vm5488, %v5897, %v5344
      %v6211 = vsel %vm5488, %v5902, %v5347
      %v6212 = vsel %vm5488, %v5907, %v5350
      %v6213 = vsel %vm5488, %v5912, %v5353
      %v6214 = vsel %vm5488, %v5917, %v5356
      %v6215 = vsel %vm5488, %v5922, %v5359
      %v6216 = vsel %vm5488, %v5927, %v5362
      %v6217 = vsel %vm5488, %v5932, %v5365
      %v6218 = vsel %vm5488, %v5937, %v5368
      %v6219 = vsel %vm5488, %v5942, %v5371
      %v6220 = vsel %vm5488, %v5947, %v5374
      %v6221 = vsel %vm5488, %v5952, %v5377
      %v6222 = vsel %vm5488, %v5957, %v5380
      %v6223 = vsel %vm5488, %v5962, %v5383
      %v6224 = vsel %vm5488, %v5967, %v5386
      %v6225 = vsel %vm5488, %v5972, %v5389
      %v6226 = vsel %vm5488, %v5977, %v5392
      %v6227 = vsel %vm5488, %v5982, %v5395
      %v6228 = vsel %vm5488, %v5987, %v5398
      %v6229 = vsel %vm5488, %v5992, %v5401
      %v6230 = vsel %vm5488, %v5997, %v5404
      %v6231 = vsel %vm5488, %v6002, %v5407
      %v6232 = vsel %vm5488, %v6007, %v5410
      %v6233 = vsel %vm5488, %v6012, %v5413
      %v6234 = vsel %vm5488, %v6017, %v5416
      %v6235 = vsel %vm5488, %v6022, %v5419
      %v6236 = vsel %vm5488, %v6027, %v5422
      %v6237 = vsel %vm5488, %v6032, %v5425
      %v6238 = vsel %vm5488, %v6037, %v5428
      %v6239 = vsel %vm5488, %v6042, %v5431
      %v6240 = vsel %vm5488, %v6047, %v5434
      %v6241 = vsel %vm5488, %v6052, %v5437
      %v6242 = vsel %vm5488, %v6057, %v5440
      %v6243 = vsel %vm5488, %v6062, %v5443
      %v6244 = vsel %vm5488, %v6067, %v5446
      %v6245 = vsel %vm5488, %v6072, %v5449
      %v6246 = vsel %vm5488, %v6077, %v5452
      %v6247 = vsel %vm5488, %v6082, %v5455
      %v6248 = vsel %vm5488, %v6087, %v5458
      %v6249 = vsel %vm5488, %v6092, %v5461
      %v6250 = vsel %vm5488, %v6097, %v5464
      %v6251 = vsel %vm5488, %v6102, %v5467
      %v6252 = vsel %vm5488, %v6107, %v5470
      %v6253 = vsel %vm5488, %v6112, %v5473
      %v6254 = vsel %vm5488, %v6117, %v5476
      %v6255 = vsel %vm5488, %v6122, %v5479
      %v6256 = vsel %vm5488, %v6127, %v5482
      %vm6257 = vcmask 31744
      %6258 = vst.msk [vmem:[%s356] sm:$0xff] %vm6257, %v6129
      %6259 = vst.msk [vmem:[%s356 + $0x8] sm:$0xff] %vm6257, %v6130
      %6260 = vst.msk [vmem:[%s356 + $0x10] sm:$0xff] %vm6257, %v6131
      %6261 = vst.msk [vmem:[%s356 + $0x18] sm:$0xff] %vm6257, %v6132
      %6262 = vst.msk [vmem:[%s356 + $0x20] sm:$0xff] %vm6257, %v6133
      %6263 = vst.msk [vmem:[%s356 + $0x28] sm:$0xff] %vm6257, %v6134
      %6264 = vst.msk [vmem:[%s356 + $0x30] sm:$0xff] %vm6257, %v6135
      %6265 = vst.msk [vmem:[%s356 + $0x38] sm:$0xff] %vm6257, %v6136
      %6266 = vst.msk [vmem:[%s356 + $0x40] sm:$0xff] %vm6257, %v6137
      %6267 = vst.msk [vmem:[%s356 + $0x48] sm:$0xff] %vm6257, %v6138
      %6268 = vst.msk [vmem:[%s356 + $0x50] sm:$0xff] %vm6257, %v6139
      %6269 = vst.msk [vmem:[%s356 + $0x58] sm:$0xff] %vm6257, %v6140
      %6270 = vst.msk [vmem:[%s356 + $0x60] sm:$0xff] %vm6257, %v6141
      %6271 = vst.msk [vmem:[%s356 + $0x68] sm:$0xff] %vm6257, %v6142
      %6272 = vst.msk [vmem:[%s356 + $0x70] sm:$0xff] %vm6257, %v6143
      %6273 = vst.msk [vmem:[%s356 + $0x78] sm:$0xff] %vm6257, %v6144
      %6274 = vst.msk [vmem:[%s356 + $0x80] sm:$0xff] %vm6257, %v6145
      %6275 = vst.msk [vmem:[%s356 + $0x88] sm:$0xff] %vm6257, %v6146
      %6276 = vst.msk [vmem:[%s356 + $0x90] sm:$0xff] %vm6257, %v6147
      %6277 = vst.msk [vmem:[%s356 + $0x98] sm:$0xff] %vm6257, %v6148
      %6278 = vst.msk [vmem:[%s356 + $0xa0] sm:$0xff] %vm6257, %v6149
      %6279 = vst.msk [vmem:[%s356 + $0xa8] sm:$0xff] %vm6257, %v6150
      %6280 = vst.msk [vmem:[%s356 + $0xb0] sm:$0xff] %vm6257, %v6151
      %6281 = vst.msk [vmem:[%s356 + $0xb8] sm:$0xff] %vm6257, %v6152
      %6282 = vst.msk [vmem:[%s356 + $0xc0] sm:$0xff] %vm6257, %v6153
      %6283 = vst.msk [vmem:[%s356 + $0xc8] sm:$0xff] %vm6257, %v6154
      %6284 = vst.msk [vmem:[%s356 + $0xd0] sm:$0xff] %vm6257, %v6155
      %6285 = vst.msk [vmem:[%s356 + $0xd8] sm:$0xff] %vm6257, %v6156
      %6286 = vst.msk [vmem:[%s356 + $0xe0] sm:$0xff] %vm6257, %v6157
      %6287 = vst.msk [vmem:[%s356 + $0xe8] sm:$0xff] %vm6257, %v6158
      %6288 = vst.msk [vmem:[%s356 + $0xf0] sm:$0xff] %vm6257, %v6159
      %6289 = vst.msk [vmem:[%s356 + $0xf8] sm:$0xff] %vm6257, %v6160
      %6290 = vst.msk [vmem:[%s356 + $0x100] sm:$0xff] %vm6257, %v6161
      %6291 = vst.msk [vmem:[%s356 + $0x108] sm:$0xff] %vm6257, %v6162
      %6292 = vst.msk [vmem:[%s356 + $0x110] sm:$0xff] %vm6257, %v6163
      %6293 = vst.msk [vmem:[%s356 + $0x118] sm:$0xff] %vm6257, %v6164
      %6294 = vst.msk [vmem:[%s356 + $0x120] sm:$0xff] %vm6257, %v6165
      %6295 = vst.msk [vmem:[%s356 + $0x128] sm:$0xff] %vm6257, %v6166
      %6296 = vst.msk [vmem:[%s356 + $0x130] sm:$0xff] %vm6257, %v6167
      %6297 = vst.msk [vmem:[%s356 + $0x138] sm:$0xff] %vm6257, %v6168
      %6298 = vst.msk [vmem:[%s356 + $0x140] sm:$0xff] %vm6257, %v6169
      %6299 = vst.msk [vmem:[%s356 + $0x148] sm:$0xff] %vm6257, %v6170
      %6300 = vst.msk [vmem:[%s356 + $0x150] sm:$0xff] %vm6257, %v6171
      %6301 = vst.msk [vmem:[%s356 + $0x158] sm:$0xff] %vm6257, %v6172
      %6302 = vst.msk [vmem:[%s356 + $0x160] sm:$0xff] %vm6257, %v6173
      %6303 = vst.msk [vmem:[%s356 + $0x168] sm:$0xff] %vm6257, %v6174
      %6304 = vst.msk [vmem:[%s356 + $0x170] sm:$0xff] %vm6257, %v6175
      %6305 = vst.msk [vmem:[%s356 + $0x178] sm:$0xff] %vm6257, %v6176
      %6306 = vst.msk [vmem:[%s356 + $0x180] sm:$0xff] %vm6257, %v6177
      %6307 = vst.msk [vmem:[%s356 + $0x188] sm:$0xff] %vm6257, %v6178
      %6308 = vst.msk [vmem:[%s356 + $0x190] sm:$0xff] %vm6257, %v6179
      %6309 = vst.msk [vmem:[%s356 + $0x198] sm:$0xff] %vm6257, %v6180
      %6310 = vst.msk [vmem:[%s356 + $0x1a0] sm:$0xff] %vm6257, %v6181
      %6311 = vst.msk [vmem:[%s356 + $0x1a8] sm:$0xff] %vm6257, %v6182
      %6312 = vst.msk [vmem:[%s356 + $0x1b0] sm:$0xff] %vm6257, %v6183
      %6313 = vst.msk [vmem:[%s356 + $0x1b8] sm:$0xff] %vm6257, %v6184
      %6314 = vst.msk [vmem:[%s356 + $0x1c0] sm:$0xff] %vm6257, %v6185
      %6315 = vst.msk [vmem:[%s356 + $0x1c8] sm:$0xff] %vm6257, %v6186
      %6316 = vst.msk [vmem:[%s356 + $0x1d0] sm:$0xff] %vm6257, %v6187
      %6317 = vst.msk [vmem:[%s356 + $0x1d8] sm:$0xff] %vm6257, %v6188
      %6318 = vst.msk [vmem:[%s356 + $0x1e0] sm:$0xff] %vm6257, %v6189
      %6319 = vst.msk [vmem:[%s356 + $0x1e8] sm:$0xff] %vm6257, %v6190
      %6320 = vst.msk [vmem:[%s356 + $0x1f0] sm:$0xff] %vm6257, %v6191
      %6321 = vst.msk [vmem:[%s356 + $0x1f8] sm:$0xff] %vm6257, %v6192
      %6322 = vst.msk [vmem:[%s356 + $0x200] sm:$0xff] %vm6257, %v6193
      %6323 = vst.msk [vmem:[%s356 + $0x208] sm:$0xff] %vm6257, %v6194
      %6324 = vst.msk [vmem:[%s356 + $0x210] sm:$0xff] %vm6257, %v6195
      %6325 = vst.msk [vmem:[%s356 + $0x218] sm:$0xff] %vm6257, %v6196
      %6326 = vst.msk [vmem:[%s356 + $0x220] sm:$0xff] %vm6257, %v6197
      %6327 = vst.msk [vmem:[%s356 + $0x228] sm:$0xff] %vm6257, %v6198
      %6328 = vst.msk [vmem:[%s356 + $0x230] sm:$0xff] %vm6257, %v6199
      %6329 = vst.msk [vmem:[%s356 + $0x238] sm:$0xff] %vm6257, %v6200
      %6330 = vst.msk [vmem:[%s356 + $0x240] sm:$0xff] %vm6257, %v6201
      %6331 = vst.msk [vmem:[%s356 + $0x248] sm:$0xff] %vm6257, %v6202
      %6332 = vst.msk [vmem:[%s356 + $0x250] sm:$0xff] %vm6257, %v6203
      %6333 = vst.msk [vmem:[%s356 + $0x258] sm:$0xff] %vm6257, %v6204
      %6334 = vst.msk [vmem:[%s356 + $0x260] sm:$0xff] %vm6257, %v6205
      %6335 = vst.msk [vmem:[%s356 + $0x268] sm:$0xff] %vm6257, %v6206
      %6336 = vst.msk [vmem:[%s356 + $0x270] sm:$0xff] %vm6257, %v6207
      %6337 = vst.msk [vmem:[%s356 + $0x278] sm:$0xff] %vm6257, %v6208
      %6338 = vst.msk [vmem:[%s356 + $0x280] sm:$0xff] %vm6257, %v6209
      %6339 = vst.msk [vmem:[%s356 + $0x288] sm:$0xff] %vm6257, %v6210
      %6340 = vst.msk [vmem:[%s356 + $0x290] sm:$0xff] %vm6257, %v6211
      %6341 = vst.msk [vmem:[%s356 + $0x298] sm:$0xff] %vm6257, %v6212
      %6342 = vst.msk [vmem:[%s356 + $0x2a0] sm:$0xff] %vm6257, %v6213
      %6343 = vst.msk [vmem:[%s356 + $0x2a8] sm:$0xff] %vm6257, %v6214
      %6344 = vst.msk [vmem:[%s356 + $0x2b0] sm:$0xff] %vm6257, %v6215
      %6345 = vst.msk [vmem:[%s356 + $0x2b8] sm:$0xff] %vm6257, %v6216
      %6346 = vst.msk [vmem:[%s356 + $0x2c0] sm:$0xff] %vm6257, %v6217
      %6347 = vst.msk [vmem:[%s356 + $0x2c8] sm:$0xff] %vm6257, %v6218
      %6348 = vst.msk [vmem:[%s356 + $0x2d0] sm:$0xff] %vm6257, %v6219
      %6349 = vst.msk [vmem:[%s356 + $0x2d8] sm:$0xff] %vm6257, %v6220
      %6350 = vst.msk [vmem:[%s356 + $0x2e0] sm:$0xff] %vm6257, %v6221
      %6351 = vst.msk [vmem:[%s356 + $0x2e8] sm:$0xff] %vm6257, %v6222
      %6352 = vst.msk [vmem:[%s356 + $0x2f0] sm:$0xff] %vm6257, %v6223
      %6353 = vst.msk [vmem:[%s356 + $0x2f8] sm:$0xff] %vm6257, %v6224
      %6354 = vst.msk [vmem:[%s356 + $0x300] sm:$0xff] %vm6257, %v6225
      %6355 = vst.msk [vmem:[%s356 + $0x308] sm:$0xff] %vm6257, %v6226
      %6356 = vst.msk [vmem:[%s356 + $0x310] sm:$0xff] %vm6257, %v6227
      %6357 = vst.msk [vmem:[%s356 + $0x318] sm:$0xff] %vm6257, %v6228
      %6358 = vst.msk [vmem:[%s356 + $0x320] sm:$0xff] %vm6257, %v6229
      %6359 = vst.msk [vmem:[%s356 + $0x328] sm:$0xff] %vm6257, %v6230
      %6360 = vst.msk [vmem:[%s356 + $0x330] sm:$0xff] %vm6257, %v6231
      %6361 = vst.msk [vmem:[%s356 + $0x338] sm:$0xff] %vm6257, %v6232
      %6362 = vst.msk [vmem:[%s356 + $0x340] sm:$0xff] %vm6257, %v6233
      %6363 = vst.msk [vmem:[%s356 + $0x348] sm:$0xff] %vm6257, %v6234
      %6364 = vst.msk [vmem:[%s356 + $0x350] sm:$0xff] %vm6257, %v6235
      %6365 = vst.msk [vmem:[%s356 + $0x358] sm:$0xff] %vm6257, %v6236
      %6366 = vst.msk [vmem:[%s356 + $0x360] sm:$0xff] %vm6257, %v6237
      %6367 = vst.msk [vmem:[%s356 + $0x368] sm:$0xff] %vm6257, %v6238
      %6368 = vst.msk [vmem:[%s356 + $0x370] sm:$0xff] %vm6257, %v6239
      %6369 = vst.msk [vmem:[%s356 + $0x378] sm:$0xff] %vm6257, %v6240
      %6370 = vst.msk [vmem:[%s356 + $0x380] sm:$0xff] %vm6257, %v6241
      %6371 = vst.msk [vmem:[%s356 + $0x388] sm:$0xff] %vm6257, %v6242
      %6372 = vst.msk [vmem:[%s356 + $0x390] sm:$0xff] %vm6257, %v6243
      %6373 = vst.msk [vmem:[%s356 + $0x398] sm:$0xff] %vm6257, %v6244
      %6374 = vst.msk [vmem:[%s356 + $0x3a0] sm:$0xff] %vm6257, %v6245
      %6375 = vst.msk [vmem:[%s356 + $0x3a8] sm:$0xff] %vm6257, %v6246
      %6376 = vst.msk [vmem:[%s356 + $0x3b0] sm:$0xff] %vm6257, %v6247
      %6377 = vst.msk [vmem:[%s356 + $0x3b8] sm:$0xff] %vm6257, %v6248
      %6378 = vst.msk [vmem:[%s356 + $0x3c0] sm:$0xff] %vm6257, %v6249
      %6379 = vst.msk [vmem:[%s356 + $0x3c8] sm:$0xff] %vm6257, %v6250
      %6380 = vst.msk [vmem:[%s356 + $0x3d0] sm:$0xff] %vm6257, %v6251
      %6381 = vst.msk [vmem:[%s356 + $0x3d8] sm:$0xff] %vm6257, %v6252
      %6382 = vst.msk [vmem:[%s356 + $0x3e0] sm:$0xff] %vm6257, %v6253
      %6383 = vst.msk [vmem:[%s356 + $0x3e8] sm:$0xff] %vm6257, %v6254
      %6384 = vst.msk [vmem:[%s356 + $0x3f0] sm:$0xff] %vm6257, %v6255
      %6385 = vst.msk [vmem:[%s356 + $0x3f8] sm:$0xff] %vm6257, %v6256
      %s6386 = smul.u32 128, %s20
      %p6387 = scmp.lt.s32.totalorder %s6386, 255
      %s6388 = scalar_select %p6387, %s6386, 255
      %s6389 = smul.addr %s6388, 8
      %s6390 = scalar_lea.vmem %s9, %s6389
      // Predicated region
      $region57: #{tpu_custom_call.1} parent=55 // pred_check
        %p6391 = pneg %p237
      $region58: #{tpu_custom_call.1} parent=55 // pred_check_branch
        %6393 = sbr.rel (%p6391) target = $region60
      $region59: #{tpu_custom_call.1} parent=55 // pred_region
        %s6394 = smul.u32 128, %s20
      $region60: #{tpu_custom_call.1} parent=55 // pred_fallthru
        _
    $region56: #{tpu_custom_call.1} parent=5 // pred_fallthru
      _
    %p6395 = scmp.le.s32.totalorder 2, %s15
    // Predicated region
    $region61: #{tpu_custom_call.1} parent=5 // pred_check
      %p6396 = pneg %p6395
    $region62: #{tpu_custom_call.1} parent=5 // pred_check_branch
      %6398 = sbr.rel (%p6396) target = $region64
    $region63: #{tpu_custom_call.1} parent=5 // pred_region
      %s6399 = ssub.s32 %s15, 2
      // Predicated region
      $region65: #{tpu_custom_call.1} parent=63 // pred_check
        %p6400 = pneg %p243
      $region66: #{tpu_custom_call.1} parent=63 // pred_check_branch
        %6402 = sbr.rel (%p6400) target = $region68
      $region67: #{tpu_custom_call.1} parent=63 // pred_region
        %s6403 = smul.u32 128, %s21
        %p6404 = scmp.lt.s32.totalorder %s6403, 255
        %s6405 = scalar_select %p6404, %s6403, 255
        %s6406 = smul.addr %s6405, 8
        %s6407 = scalar_lea.vmem %s9, %s6406
      $region68: #{tpu_custom_call.1} parent=63 // pred_fallthru
        _
    $region64: #{tpu_custom_call.1} parent=5 // pred_fallthru
      _
  $region6: #{tpu_custom_call.1} parent=0 // loop_footer
    %s19 = sadd.s32 1, %s15
  $region7: #{tpu_custom_call.1} parent=0 // loop_footer_branch
    %14 = sbr.rel target = $region3
  $region8: #{tpu_custom_call.1} parent=0 // loop_exit
    _

</llo_original>
